<compile_context>
chip_gen: v7x
topology: tpu7x:2x2x1
jax: 0.10.0
libtpu: 0.0.40
codegen_flags: <defaults>
</compile_context>

<pallas_src>
import functools

import jax
import jax.numpy as jnp
from jax import lax
from jax.experimental import pallas as pl
from jax.experimental.pallas import tpu as pltpu

VMEM_LIMIT = 48 * 1024 * 1024      # scoped-VMEM cap; <=48 MiB keeps v7x (64 MiB/TC) safe
FULL_K_MAX = 2304                  # largest K kept fully resident (bf16 panel <= ~1.2 MiB)


def _round_up(x, m):
    return ((x + m - 1) // m) * m


def _apply_act(y, activation):
    # epilogue is always evaluated in f32 (no bf16 VPU/EUP dependence -> v5e-safe)
    if activation == "relu":
        return jnp.maximum(y, 0.0)
    if activation == "elu":
        return jnp.where(y > 0.0, y, jnp.expm1(y))
    if activation == "sigmoid":
        return jax.nn.sigmoid(y)
    return y


# ---------------------------------------------------------------------------
# Pallas kernels
# ---------------------------------------------------------------------------
def _matmul_nok_kernel(*refs, activation, has_residual):
    """Single-shot GEMM (full K in VMEM) with fused bias/residual/activation."""
    if has_residual:
        x_ref, w_ref, b_ref, r_ref, o_ref = refs
    else:
        x_ref, w_ref, b_ref, o_ref = refs
        r_ref = None
    y = jnp.dot(x_ref[...], w_ref[...], preferred_element_type=jnp.float32)
    y = y + b_ref[...]
    if has_residual:
        y = y + r_ref[...].astype(jnp.float32)
    o_ref[...] = _apply_act(y, activation).astype(o_ref.dtype)


def _matmul_kernel(*refs, activation, has_residual):
    """K-tiled GEMM with f32 accumulator; epilogue fused on the last K step."""
    if has_residual:
        x_ref, w_ref, b_ref, r_ref, o_ref, acc_ref = refs
    else:
        x_ref, w_ref, b_ref, o_ref, acc_ref = refs
        r_ref = None
    k = pl.program_id(2)

    @pl.when(k == 0)
    def _():
        acc_ref[...] = jnp.zeros_like(acc_ref)

    acc_ref[...] += jnp.dot(x_ref[...], w_ref[...],
                            preferred_element_type=jnp.float32)

    @pl.when(k == pl.num_programs(2) - 1)
    def _():
        y = acc_ref[...] + b_ref[...]
        if has_residual:
            y = y + r_ref[...].astype(jnp.float32)
        o_ref[...] = _apply_act(y, activation).astype(o_ref.dtype)


def _conv3x3_kernel(x_ref, xh_ref, w_ref, b_ref, o_ref,
                    acc_ref, xbuf_ref, panel_ref, *, shifts, activation):
    """Fused stride-1 3x3 conv over the flattened padded image ("wide output").

    x_ref is the main (TMc, Ck) block, xh_ref is a small halo block (HALO, Ck)
    directly following it.  The 9 kernel taps become shifted reads of the staged
    VMEM row buffer; they are packed into a block-local bf16 im2col panel
    (TMc, 9*Ck) and consumed by ONE MXU matmul with K = 9*Ck (no per-tap f32
    accumulator round-trips, MXU K-depth >= 1152).  Invalid (padding-row) outputs
    are sliced off by the caller.  c (inner grid axis) tiles the input channels;
    the full output-channel width stays resident in the f32 accumulator, so input
    staging is never repeated per output tile.
    """
    c = pl.program_id(1)

    @pl.when(c == 0)
    def _():
        acc_ref[...] = jnp.zeros_like(acc_ref)

    tm = x_ref.shape[0]
    ck = x_ref.shape[1]
    # Stage main block + halo once per (m, c) step.  f32 staging keeps the
    # unaligned-sublane tap slices on a 32-bit layout (known-good Mosaic lowering).
    xbuf_ref[:tm, :] = x_ref[...].astype(jnp.float32)
    xbuf_ref[tm:, :] = xh_ref[...].astype(jnp.float32)

    # Build the block-local im2col panel (lane offsets are multiples of 128).
    for t, s in enumerate(shifts):                       # 9 static tap shifts
        panel_ref[:, t * ck:(t + 1) * ck] = \
            xbuf_ref[s:s + tm, :].astype(jnp.bfloat16)

    acc_ref[...] += jnp.dot(panel_ref[...], w_ref[...],
                            preferred_element_type=jnp.float32)

    @pl.when(c == pl.num_programs(1) - 1)
    def _():
        y = acc_ref[...] + b_ref[...]
        o_ref[...] = _apply_act(y, activation).astype(o_ref.dtype)


# ---------------------------------------------------------------------------
# Pallas wrappers
# ---------------------------------------------------------------------------
def _matmul_bias_act(x2, w2, b, residual, activation, out_dtype):
    """act(x2 @ w2 + b [+ residual]); bf16 operands, f32 accumulate/epilogue."""
    M, K = x2.shape
    N = w2.shape[1]
    Kp, Np = _round_up(K, 128), _round_up(N, 128)
    TMm = min(512, _round_up(M, 128))
    # Smaller N tiles when M is tiny -> >=2 parallel tiles for v7x's two TCs.
    if M <= 256:
        TNn = 128
    else:
        TNn = 256 if Np % 256 == 0 else 128
    Mp = _round_up(M, TMm)

    xp = jnp.pad(x2, ((0, Mp - M), (0, Kp - K)))
    wp = jnp.pad(w2, ((0, Kp - K), (0, Np - N)))
    bp = jnp.pad(b.astype(jnp.float32).reshape(1, N), ((0, 0), (0, Np - N)))
    has_res = residual is not None

    if Kp <= FULL_K_MAX:
        # Full-K panel fits VMEM: no K grid axis, no accumulator scratch.
        inputs = [xp, wp, bp]
        in_specs = [
            pl.BlockSpec((TMm, Kp), lambda i, j: (i, 0)),
            pl.BlockSpec((Kp, TNn), lambda i, j: (0, j)),
            pl.BlockSpec((1, TNn), lambda i, j: (0, j)),
        ]
        if has_res:
            inputs.append(jnp.pad(residual, ((0, Mp - M), (0, Np - N))))
            in_specs.append(pl.BlockSpec((TMm, TNn), lambda i, j: (i, j)))
        kernel = functools.partial(_matmul_nok_kernel, activation=activation,
                                   has_residual=has_res)
        out = pl.pallas_call(
            kernel,
            out_shape=jax.ShapeDtypeStruct((Mp, Np), out_dtype),
            grid_spec=pltpu.PrefetchScalarGridSpec(
                num_scalar_prefetch=0,
                grid=(Mp // TMm, Np // TNn),
                in_specs=in_specs,
                out_specs=pl.BlockSpec((TMm, TNn), lambda i, j: (i, j)),
            ),
            compiler_params=pltpu.CompilerParams(
                dimension_semantics=("parallel", "parallel"),
                vmem_limit_bytes=VMEM_LIMIT),
        )(*inputs)
    else:
        # 256-deep K tiles: fill the v6e/v7x MXU exactly, stay cheap on v5e.
        TKk = 256 if Kp % 256 == 0 else 128
        inputs = [xp, wp, bp]
        in_specs = [
            pl.BlockSpec((TMm, TKk), lambda i, j, k: (i, k)),
            pl.BlockSpec((TKk, TNn), lambda i, j, k: (k, j)),
            pl.BlockSpec((1, TNn), lambda i, j, k: (0, j)),
        ]
        if has_res:
            inputs.append(jnp.pad(residual, ((0, Mp - M), (0, Np - N))))
            in_specs.append(pl.BlockSpec((TMm, TNn), lambda i, j, k: (i, j)))
        kernel = functools.partial(_matmul_kernel, activation=activation,
                                   has_residual=has_res)
        out = pl.pallas_call(
            kernel,
            out_shape=jax.ShapeDtypeStruct((Mp, Np), out_dtype),
            grid_spec=pltpu.PrefetchScalarGridSpec(
                num_scalar_prefetch=0,
                grid=(Mp // TMm, Np // TNn, Kp // TKk),
                in_specs=in_specs,
                out_specs=pl.BlockSpec((TMm, TNn), lambda i, j, k: (i, j)),
                scratch_shapes=[pltpu.VMEM((TMm, TNn), jnp.float32)],
            ),
            compiler_params=pltpu.CompilerParams(
                dimension_semantics=("parallel", "parallel", "arbitrary"),
                vmem_limit_bytes=VMEM_LIMIT),
        )(*inputs)
    return out[:M, :N]


@functools.partial(jax.jit, static_argnames=("stride", "activation", "out_dtype"))
def _conv1x1(x, w2, b, residual, *, stride, activation, out_dtype):
    """1x1 convolution = plain GEMM (no im2col at all)."""
    N, H, W, Cin = x.shape
    Cout = w2.shape[1]
    if stride > 1:
        x = x[:, ::stride, ::stride, :]
    Ho, Wo = x.shape[1], x.shape[2]
    x2 = x.reshape(N * Ho * Wo, Cin)
    r2 = residual.reshape(N * Ho * Wo, Cout) if residual is not None else None
    y = _matmul_bias_act(x2, w2, b, r2, activation, out_dtype)
    return y.reshape(N, Ho, Wo, Cout)


@functools.partial(jax.jit, static_argnames=("pad_mode", "activation", "out_dtype"))
def _conv3x3_s1(x, w2, b, *, pad_mode, activation, out_dtype):
    """Fused stride-1 3x3 conv (pad=1), zero or reflection padding, no HBM im2col."""
    N, H, W, Cin = x.shape
    Cout = w2.shape[1]
    mode = "reflect" if pad_mode == "reflect" else "constant"
    xp = jnp.pad(x, ((0, 0), (1, 1), (1, 1), (0, 0)), mode=mode)
    Hp, Wp = H + 2, W + 2

    # K tile chosen to minimize channel zero-padding (e.g. Cin=320 -> 384, not 512).
    Ck = 256 if Cin % 256 == 0 else 128
    Cin_p = _round_up(Cin, Ck)
    Np = _round_up(Cout, 128)

    max_shift = 2 * Wp + 2                         # largest tap shift
    HALO = _round_up(max_shift, 128)               # small halo block size
    TMc = HALO * (-(-512 // HALO))                 # >=512 rows, multiple of HALO

    S = N * Hp * Wp
    Mp = _round_up(S, TMc)
    Sp = Mp + HALO                                 # room for the last halo block

    xf = jnp.pad(xp.reshape(S, Cin), ((0, Sp - S), (0, Cin_p - Cin)))
    # Re-order weight rows so each K step is one contiguous (9*Ck, Np) panel:
    # new row index = c*9*Ck + t*Ck + k  <->  (tap t, cin = c*Ck + k).
    w3 = jnp.pad(w2.reshape(9, Cin, Cout),
                 ((0, 0), (0, Cin_p - Cin), (0, Np - Cout)))
    w9 = jnp.transpose(w3.reshape(9, Cin_p // Ck, Ck, Np), (1, 0, 2, 3))
    w9 = w9.reshape((Cin_p // Ck) * 9 * Ck, Np)
    bp = jnp.pad(b.astype(jnp.float32).reshape(1, Cout), ((0, 0), (0, Np - Cout)))

    shifts = tuple(ky * Wp + kx for ky in range(3) for kx in range(3))
    kernel = functools.partial(_conv3x3_kernel, shifts=shifts,
                               activation=activation)
    halo_ratio = TMc // HALO
    out = pl.pallas_call(
        kernel,
        out_shape=jax.ShapeDtypeStruct((Mp, Np), out_dtype),
        grid_spec=pltpu.PrefetchScalarGridSpec(
            num_scalar_prefetch=0,
            grid=(Mp // TMc, Cin_p // Ck),
            in_specs=[
                pl.BlockSpec((TMc, Ck), lambda m, c: (m, c)),
                # halo block right after the main block (in HALO-sized block units)
                pl.BlockSpec((HALO, Ck), lambda m, c: ((m + 1) * halo_ratio, c)),
                pl.BlockSpec((9 * Ck, Np), lambda m, c: (c, 0)),
                pl.BlockSpec((1, Np), lambda m, c: (0, 0)),
            ],
            out_specs=pl.BlockSpec((TMc, Np), lambda m, c: (m, 0)),
            scratch_shapes=[pltpu.VMEM((TMc, Np), jnp.float32),        # accumulator
                            pltpu.VMEM((TMc + HALO, Ck), jnp.float32),  # row buffer
                            pltpu.VMEM((TMc, 9 * Ck), jnp.bfloat16)],   # im2col panel
        ),
        compiler_params=pltpu.CompilerParams(
            dimension_semantics=("parallel", "arbitrary"),
            vmem_limit_bytes=VMEM_LIMIT),
    )(xf, xf, w9, bp)
    y = out[:S, :Cout].reshape(N, Hp, Wp, Cout)
    return y[:, :H, :W, :]


@functools.partial(jax.jit, static_argnames=("kh", "kw", "stride", "padding",
                                             "pad_mode", "activation", "out_dtype"))
def _conv_im2col(x, w2, b, residual, *, kh, kw, stride, padding, pad_mode,
                 activation, out_dtype):
    """Fallback (stem 7x7-s2 and stride-2 3x3 convs): small bf16 im2col + GEMM."""
    N, H, W, Cin = x.shape
    Cout = w2.shape[1]
    if padding > 0:
        mode = "reflect" if pad_mode == "reflect" else "constant"
        x = jnp.pad(x, ((0, 0), (padding, padding), (padding, padding), (0, 0)),
                    mode=mode)
    Hp, Wp = H + 2 * padding, W + 2 * padding
    Ho = (Hp - kh) // stride + 1
    Wo = (Wp - kw) // stride + 1
    cols = [x[:, ky:ky + stride * (Ho - 1) + 1:stride,
              kx:kx + stride * (Wo - 1) + 1:stride, :]
            for ky in range(kh) for kx in range(kw)]
    patches = jnp.stack(cols, axis=3).reshape(N * Ho * Wo, kh * kw * Cin)
    r2 = residual.reshape(N * Ho * Wo, Cout) if residual is not None else None
    y = _matmul_bias_act(patches, w2, b, r2, activation, out_dtype)
    return y.reshape(N, Ho, Wo, Cout)


def _apply_conv(x, p, *, stride=1, padding=0, pad_mode="zeros",
                activation="none", residual=None, out_dtype=jnp.bfloat16):
    kh, kw = p["kh"], p["kw"]
    if kh == 1 and kw == 1:
        return _conv1x1(x, p["w"], p["b"], residual, stride=stride,
                        activation=activation, out_dtype=out_dtype)
    if kh == 3 and kw == 3 and stride == 1 and padding == 1 and residual is None:
        return _conv3x3_s1(x, p["w"], p["b"], pad_mode=pad_mode,
                           activation=activation, out_dtype=out_dtype)
    return _conv_im2col(x, p["w"], p["b"], residual, kh=kh, kw=kw, stride=stride,
                        padding=padding, pad_mode=pad_mode,
                        activation=activation, out_dtype=out_dtype)


@jax.jit
def maxpool3x3_s2(x):
    # 3x3/s2/p1 max pool: fused XLA maximum-tree (no 9x stacked window tensor in HBM).
    N, H, W, C = x.shape
    Ho = (H + 2 - 3) // 2 + 1
    Wo = (W + 2 - 3) // 2 + 1
    xp = jnp.pad(x, ((0, 0), (1, 1), (1, 1), (0, 0)), constant_values=-jnp.inf)
    y = None
    for ky in range(3):
        for kx in range(3):
            win = xp[:, ky:ky + 2 * (Ho - 1) + 1:2, kx:kx + 2 * (Wo - 1) + 1:2, :]
            y = win if y is None else jnp.maximum(y, win)
    return y


@jax.jit
def upsample_nearest2x(x):
    # F.interpolate(scale_factor=2, mode="nearest")
    return jnp.repeat(jnp.repeat(x, 2, axis=1), 2, axis=2)


# ---------------------------------------------------------------------------
# Deterministic parameter construction (weights pre-transposed/packed once)
# ---------------------------------------------------------------------------
class KeyGen:
    def __init__(self, key):
        self._key = key

    def __call__(self):
        self._key, k = jax.random.split(self._key)
        return k


def _he_conv(gen, cout, cin, kh, kw):
    fan_in = cin * kh * kw
    return jax.random.normal(gen(), (cout, cin, kh, kw), jnp.float32) * \
        jnp.sqrt(2.0 / fan_in)


def _bn_params(gen, c):
    gamma = 1.0 + 0.1 * jax.random.normal(gen(), (c,), jnp.float32)
    beta = 0.1 * jax.random.normal(gen(), (c,), jnp.float32)
    mean = 0.01 * jax.random.normal(gen(), (c,), jnp.float32)
    var = jnp.ones((c,), jnp.float32)
    return gamma, beta, mean, var


def _pack(w_oihw, bias, kh, kw):
    """OIHW -> (KH*KW*Cin, Cout) bf16 (row order ky,kx,cin) + f32 bias, done once."""
    cout, cin = w_oihw.shape[0], w_oihw.shape[1]
    w2 = jnp.transpose(w_oihw, (2, 3, 1, 0)).reshape(kh * kw * cin, cout)
    return {"w": w2.astype(jnp.bfloat16), "b": bias.astype(jnp.float32),
            "kh": kh, "kw": kw}


def _conv_bn(gen, cout, cin, kh, kw):
    w = _he_conv(gen, cout, cin, kh, kw)
    gamma, beta, mean, var = _bn_params(gen, cout)
    scale = gamma / jnp.sqrt(var + 1e-5)
    return _pack(w * scale[:, None, None, None], beta - mean * scale, kh, kw)


def _conv_bias(gen, cout, cin, kh, kw):
    w = _he_conv(gen, cout, cin, kh, kw)
    b = 0.01 * jax.random.normal(gen(), (cout,), jnp.float32)
    return _pack(w, b, kh, kw)


NUM_CH_ENC = [64, 256, 512, 1024, 2048]   # ResnetEncoder(50).num_ch_enc
NUM_CH_DEC = [16, 32, 64, 128, 256]
SCALES = [0, 1, 2, 3]


def build_params(key):
    gen = KeyGen(key)
    enc = {"conv1": _conv_bn(gen, 64, 3, 7, 7)}
    inplanes = 64
    layer_cfg = [(64, 3, 1), (128, 4, 2), (256, 6, 2), (512, 3, 2)]
    for li, (planes, blocks, stride) in enumerate(layer_cfg):
        blist = []
        for bi in range(blocks):
            s = stride if bi == 0 else 1
            bp = {"stride": s,
                  "conv1": _conv_bn(gen, planes, inplanes, 1, 1),
                  "conv2": _conv_bn(gen, planes, planes, 3, 3),
                  "conv3": _conv_bn(gen, planes * 4, planes, 1, 1)}
            if s != 1 or inplanes != planes * 4:
                bp["down"] = _conv_bn(gen, planes * 4, inplanes, 1, 1)
            inplanes = planes * 4
            blist.append(bp)
        enc[f"layer{li + 1}"] = blist

    dec = {}
    for i in range(4, -1, -1):
        cin = NUM_CH_ENC[-1] if i == 4 else NUM_CH_DEC[i + 1]
        dec[("upconv", i, 0)] = _conv_bias(gen, NUM_CH_DEC[i], cin, 3, 3)
        cin = NUM_CH_DEC[i] + (NUM_CH_ENC[i - 1] if i > 0 else 0)
        dec[("upconv", i, 1)] = _conv_bias(gen, NUM_CH_DEC[i], cin, 3, 3)
    for s in SCALES:
        dec[("dispconv", s)] = _conv_bias(gen, 1, NUM_CH_DEC[s], 3, 3)
    return {"encoder": enc, "decoder": dec}


# ---------------------------------------------------------------------------
# Forward passes
# ---------------------------------------------------------------------------
def _bottleneck(bp, x):
    identity = x
    out = _apply_conv(x, bp["conv1"], activation="relu")
    out = _apply_conv(out, bp["conv2"], stride=bp["stride"], padding=1,
                      activation="relu")
    if "down" in bp:
        identity = _apply_conv(x, bp["down"], stride=bp["stride"],
                               activation="none")
    # conv3 + folded BN + residual add + relu, fused in the Pallas epilogue.
    return _apply_conv(out, bp["conv3"], residual=identity, activation="relu")


def encoder_forward(enc, x_nchw):
    x = (x_nchw - 0.45) / 0.225                                 # monodepth2 scaling
    x = jnp.transpose(x, (0, 2, 3, 1)).astype(jnp.bfloat16)     # NCHW -> NHWC bf16
    features = []
    x = _apply_conv(x, enc["conv1"], stride=2, padding=3, activation="relu")
    features.append(x)
    x = maxpool3x3_s2(x)
    for lname in ("layer1", "layer2", "layer3", "layer4"):
        for bp in enc[lname]:
            x = _bottleneck(bp, x)
        features.append(x)
    return features


def decoder_forward(dec, features):
    outputs = {}
    x = features[-1]
    for i in range(4, -1, -1):
        x = _apply_conv(x, dec[("upconv", i, 0)], padding=1, pad_mode="reflect",
                        activation="elu")
        x = upsample_nearest2x(x)
        if i > 0:
            x = jnp.concatenate([x, features[i - 1]], axis=-1)
        x = _apply_conv(x, dec[("upconv", i, 1)], padding=1, pad_mode="reflect",
                        activation="elu")
        if i in SCALES:
            # Cout=1 heads pad N to 128 on the MXU — overhead-bound tail, f32 output.
            d = _apply_conv(x, dec[("dispconv", i)], padding=1, pad_mode="reflect",
                            activation="sigmoid", out_dtype=jnp.float32)
            outputs[("disp", i)] = jnp.transpose(d, (0, 3, 1, 2))  # back to NCHW
    return outputs


def depth_generator_forward(params, x_nchw):
    feats = encoder_forward(params["encoder"], x_nchw)
    return decoder_forward(params["decoder"], feats)


# ---------------------------------------------------------------------------
if __name__ == "__main__":
    root = jax.random.PRNGKey(0)
    keys = jax.random.split(root, 12)
    (k_in, k_param, k1, k2, k3, k4, k5, k6, k7, k8, k9, _) = keys

    # --- self-check 1: fused 3x3 Pallas conv vs lax.conv (single K step) ----------
    xt = jax.random.uniform(k1, (1, 5, 6, 3), jnp.float32).astype(jnp.bfloat16)
    wt = (0.2 * jax.random.normal(k2, (3, 3, 3, 4), jnp.float32)).astype(jnp.bfloat16)
    bt = jnp.zeros((4,), jnp.float32)
    got = _conv3x3_s1(xt, wt.reshape(27, 4), bt, pad_mode="zeros",
                      activation="none", out_dtype=jnp.float32)
    ref = lax.conv_general_dilated(
        xt.astype(jnp.float32), wt.astype(jnp.float32), (1, 1), ((1, 1), (1, 1)),
        dimension_numbers=("NHWC", "HWIO", "NHWC"))
    assert got.shape == ref.shape, (got.shape, ref.shape)
    assert bool(jnp.allclose(got, ref, atol=1e-2, rtol=1e-2)), "fused conv mismatch"

    # --- self-check 2: multi-K-step fused 3x3 (Cin=160 -> 2 c-steps) + bias + relu -
    xt2 = jax.random.uniform(k3, (1, 4, 5, 160), jnp.float32).astype(jnp.bfloat16)
    wt2 = (0.1 * jax.random.normal(k4, (3, 3, 160, 6), jnp.float32)).astype(jnp.bfloat16)
    bt2 = 0.1 * jax.random.normal(k5, (6,), jnp.float32)
    got2 = _conv3x3_s1(xt2, wt2.reshape(9 * 160, 6), bt2, pad_mode="zeros",
                       activation="relu", out_dtype=jnp.float32)
    ref2 = lax.conv_general_dilated(
        xt2.astype(jnp.float32), wt2.astype(jnp.float32), (1, 1), ((1, 1), (1, 1)),
        dimension_numbers=("NHWC", "HWIO", "NHWC"))
    ref2 = jnp.maximum(ref2 + bt2, 0.0)
    assert bool(jnp.allclose(got2, ref2, atol=5e-2, rtol=5e-2)), "multi-step conv mismatch"

    # --- self-check 3: 1x1 conv with fused residual + relu epilogue ----------------
    xm = jax.random.normal(k6, (1, 4, 4, 96), jnp.float32).astype(jnp.bfloat16)
    wm = (0.1 * jax.random.normal(k7, (96, 128), jnp.float32)).astype(jnp.bfloat16)
    bm = 0.05 * jax.random.normal(k8, (128,), jnp.float32)
    rm = jax.random.normal(k9, (1, 4, 4, 128), jnp.float32).astype(jnp.bfloat16)
    pm = {"w": wm, "b": bm, "kh": 1, "kw": 1}
    got3 = _apply_conv(xm, pm, residual=rm, activation="relu", out_dtype=jnp.float32)
    ref3 = jnp.maximum(
        jnp.einsum("nhwc,cd->nhwd", xm.astype(jnp.float32), wm.astype(jnp.float32))
        + bm + rm.astype(jnp.float32), 0.0)
    assert bool(jnp.allclose(got3, ref3, atol=5e-2, rtol=5e-2)), "residual GEMM mismatch"

    # --- full DepthGenerator forward -----------------------------------------------
    # 64x64 is the smallest spatial size compatible with the /32 encoder
    # downsampling + reflection padding in the decoder.
    x = jax.random.uniform(k_in, (1, 3, 64, 64), jnp.float32)
    params = build_params(k_param)

    outputs = depth_generator_forward(params, x)
    outputs = jax.block_until_ready(outputs)

    expected = {0: (1, 1, 64, 64), 1: (1, 1, 32, 32),
                2: (1, 1, 16, 16), 3: (1, 1, 8, 8)}
    for s in SCALES:
        d = outputs[("disp", s)]
        assert d.shape == expected[s], (s, d.shape)
        assert bool(jnp.all(jnp.isfinite(d))), "non-finite disparity"
        assert bool(jnp.all((d >= 0.0) & (d <= 1.0))), "sigmoid range violated"
    print("KERNEL_OK")
</pallas_src>

<mosaic_0001>
module attributes {stable_mosaic.version = 11 : i64} {
  func.func @_conv3x3_kernel(%arg0: i32, %arg1: i32, %arg2: memref<512x128xbf16, #tpu.memory_space<vmem>>, %arg3: memref<128x128xbf16, #tpu.memory_space<vmem>>, %arg4: memref<1152x128xbf16, #tpu.memory_space<vmem>>, %arg5: memref<1x128xf32, #tpu.memory_space<vmem>>, %arg6: memref<512x128xf32, #tpu.memory_space<vmem>>, %arg7: memref<512x128xf32, #tpu.memory_space<vmem>>, %arg8: memref<640x128xf32, #tpu.memory_space<vmem>>, %arg9: memref<512x1152xbf16, #tpu.memory_space<vmem>>) attributes {dimension_semantics = [#tpu.dimension_semantics<parallel>, #tpu.dimension_semantics<arbitrary>], iteration_bounds = array<i64: 1, 1>, scalar_prefetch = 0 : i64, scratch_operands = 3 : i64, tpu.core_type = #tpu.core_type<tc>, window_params = [{transform_indices = @transform_0, window_bounds = array<i64: 512, 128>}, {transform_indices = @transform_1, window_bounds = array<i64: 128, 128>}, {transform_indices = @transform_2, window_bounds = array<i64: 1152, 128>}, {pipeline_mode = #tpu.pipeline_mode<synchronous>, transform_indices = @transform_3, window_bounds = array<i64: 1, 128>}, {transform_indices = @transform_4, window_bounds = array<i64: 512, 128>}]} {
    %c0_i32 = arith.constant 0 : i32
    %0 = arith.cmpi eq, %arg1, %c0_i32 : i32
    %1 = arith.extui %0 : i1 to i32
    %c0_i32_0 = arith.constant 0 : i32
    %2 = arith.cmpi ne, %1, %c0_i32_0 : i32
    scf.if %2 {
      %cst_38 = arith.constant 0.000000e+00 : f32
      %45 = vector.broadcast %cst_38 : f32 to vector<512x128xf32>
      %c0_39 = arith.constant 0 : index
      %c0_40 = arith.constant 0 : index
      %46 = vector.load %arg7[%c0_39, %c0_40] : memref<512x128xf32, #tpu.memory_space<vmem>>, vector<512x128xf32>
      tpu.vector_store %arg7[%c0_39, %c0_40], %45 {strides = array<i32>} : memref<512x128xf32, #tpu.memory_space<vmem>>, vector<512x128xf32>,
    } else {
    }
    %c0 = arith.constant 0 : index
    %c0_1 = arith.constant 0 : index
    %3 = vector.load %arg2[%c0, %c0_1] : memref<512x128xbf16, #tpu.memory_space<vmem>>, vector<512x128xbf16>
    %4 = arith.extf %3 : vector<512x128xbf16> to vector<512x128xf32>
    %c0_2 = arith.constant 0 : index
    %c0_3 = arith.constant 0 : index
    %5 = vector.load %arg8[%c0_2, %c0_3] : memref<640x128xf32, #tpu.memory_space<vmem>>, vector<512x128xf32>
    tpu.vector_store %arg8[%c0_2, %c0_3], %4 {strides = array<i32>} : memref<640x128xf32, #tpu.memory_space<vmem>>, vector<512x128xf32>,
    %c0_4 = arith.constant 0 : index
    %c0_5 = arith.constant 0 : index
    %6 = vector.load %arg3[%c0_4, %c0_5] : memref<128x128xbf16, #tpu.memory_space<vmem>>, vector<128x128xbf16>
    %7 = arith.extf %6 : vector<128x128xbf16> to vector<128x128xf32>
    %c512 = arith.constant 512 : index
    %c0_6 = arith.constant 0 : index
    %8 = vector.load %arg8[%c512, %c0_6] : memref<640x128xf32, #tpu.memory_space<vmem>>, vector<128x128xf32>
    tpu.vector_store %arg8[%c512, %c0_6], %7 {strides = array<i32>} : memref<640x128xf32, #tpu.memory_space<vmem>>, vector<128x128xf32>,
    %c0_7 = arith.constant 0 : index
    %c0_8 = arith.constant 0 : index
    %9 = vector.load %arg8[%c0_7, %c0_8] : memref<640x128xf32, #tpu.memory_space<vmem>>, vector<512x128xf32>
    %10 = arith.truncf %9 : vector<512x128xf32> to vector<512x128xbf16>
    %c0_9 = arith.constant 0 : index
    %c0_10 = arith.constant 0 : index
    %11 = vector.load %arg9[%c0_9, %c0_10] : memref<512x1152xbf16, #tpu.memory_space<vmem>>, vector<512x128xbf16>
    tpu.vector_store %arg9[%c0_9, %c0_10], %10 {strides = array<i32>} : memref<512x1152xbf16, #tpu.memory_space<vmem>>, vector<512x128xbf16>,
    %c1 = arith.constant 1 : index
    %c0_11 = arith.constant 0 : index
    %12 = vector.load %arg8[%c1, %c0_11] : memref<640x128xf32, #tpu.memory_space<vmem>>, vector<512x128xf32>
    %13 = arith.truncf %12 : vector<512x128xf32> to vector<512x128xbf16>
    %c0_12 = arith.constant 0 : index
    %c128 = arith.constant 128 : index
    %14 = vector.load %arg9[%c0_12, %c128] : memref<512x1152xbf16, #tpu.memory_space<vmem>>, vector<512x128xbf16>
    tpu.vector_store %arg9[%c0_12, %c128], %13 {strides = array<i32>} : memref<512x1152xbf16, #tpu.memory_space<vmem>>, vector<512x128xbf16>,
    %c2 = arith.constant 2 : index
    %c0_13 = arith.constant 0 : index
    %15 = vector.load %arg8[%c2, %c0_13] : memref<640x128xf32, #tpu.memory_space<vmem>>, vector<512x128xf32>
    %16 = arith.truncf %15 : vector<512x128xf32> to vector<512x128xbf16>
    %c0_14 = arith.constant 0 : index
    %c256 = arith.constant 256 : index
    %17 = vector.load %arg9[%c0_14, %c256] : memref<512x1152xbf16, #tpu.memory_space<vmem>>, vector<512x128xbf16>
    tpu.vector_store %arg9[%c0_14, %c256], %16 {strides = array<i32>} : memref<512x1152xbf16, #tpu.memory_space<vmem>>, vector<512x128xbf16>,
    %c8 = arith.constant 8 : index
    %c0_15 = arith.constant 0 : index
    %18 = vector.load %arg8[%c8, %c0_15] : memref<640x128xf32, #tpu.memory_space<vmem>>, vector<512x128xf32>
    %19 = arith.truncf %18 : vector<512x128xf32> to vector<512x128xbf16>
    %c0_16 = arith.constant 0 : index
    %c384 = arith.constant 384 : index
    %20 = vector.load %arg9[%c0_16, %c384] : memref<512x1152xbf16, #tpu.memory_space<vmem>>, vector<512x128xbf16>
    tpu.vector_store %arg9[%c0_16, %c384], %19 {strides = array<i32>} : memref<512x1152xbf16, #tpu.memory_space<vmem>>, vector<512x128xbf16>,
    %c9 = arith.constant 9 : index
    %c0_17 = arith.constant 0 : index
    %21 = vector.load %arg8[%c9, %c0_17] : memref<640x128xf32, #tpu.memory_space<vmem>>, vector<512x128xf32>
    %22 = arith.truncf %21 : vector<512x128xf32> to vector<512x128xbf16>
    %c0_18 = arith.constant 0 : index
    %c512_19 = arith.constant 512 : index
    %23 = vector.load %arg9[%c0_18, %c512_19] : memref<512x1152xbf16, #tpu.memory_space<vmem>>, vector<512x128xbf16>
    tpu.vector_store %arg9[%c0_18, %c512_19], %22 {strides = array<i32>} : memref<512x1152xbf16, #tpu.memory_space<vmem>>, vector<512x128xbf16>,
    %c10 = arith.constant 10 : index
    %c0_20 = arith.constant 0 : index
    %24 = vector.load %arg8[%c10, %c0_20] : memref<640x128xf32, #tpu.memory_space<vmem>>, vector<512x128xf32>
    %25 = arith.truncf %24 : vector<512x128xf32> to vector<512x128xbf16>
    %c0_21 = arith.constant 0 : index
    %c640 = arith.constant 640 : index
    %26 = vector.load %arg9[%c0_21, %c640] : memref<512x1152xbf16, #tpu.memory_space<vmem>>, vector<512x128xbf16>
    tpu.vector_store %arg9[%c0_21, %c640], %25 {strides = array<i32>} : memref<512x1152xbf16, #tpu.memory_space<vmem>>, vector<512x128xbf16>,
    %c16 = arith.constant 16 : index
    %c0_22 = arith.constant 0 : index
    %27 = vector.load %arg8[%c16, %c0_22] : memref<640x128xf32, #tpu.memory_space<vmem>>, vector<512x128xf32>
    %28 = arith.truncf %27 : vector<512x128xf32> to vector<512x128xbf16>
    %c0_23 = arith.constant 0 : index
    %c768 = arith.constant 768 : index
    %29 = vector.load %arg9[%c0_23, %c768] : memref<512x1152xbf16, #tpu.memory_space<vmem>>, vector<512x128xbf16>
    tpu.vector_store %arg9[%c0_23, %c768], %28 {strides = array<i32>} : memref<512x1152xbf16, #tpu.memory_space<vmem>>, vector<512x128xbf16>,
    %c17 = arith.constant 17 : index
    %c0_24 = arith.constant 0 : index
    %30 = vector.load %arg8[%c17, %c0_24] : memref<640x128xf32, #tpu.memory_space<vmem>>, vector<512x128xf32>
    %31 = arith.truncf %30 : vector<512x128xf32> to vector<512x128xbf16>
    %c0_25 = arith.constant 0 : index
    %c896 = arith.constant 896 : index
    %32 = vector.load %arg9[%c0_25, %c896] : memref<512x1152xbf16, #tpu.memory_space<vmem>>, vector<512x128xbf16>
    tpu.vector_store %arg9[%c0_25, %c896], %31 {strides = array<i32>} : memref<512x1152xbf16, #tpu.memory_space<vmem>>, vector<512x128xbf16>,
    %c18 = arith.constant 18 : index
    %c0_26 = arith.constant 0 : index
    %33 = vector.load %arg8[%c18, %c0_26] : memref<640x128xf32, #tpu.memory_space<vmem>>, vector<512x128xf32>
    %34 = arith.truncf %33 : vector<512x128xf32> to vector<512x128xbf16>
    %c0_27 = arith.constant 0 : index
    %c1024 = arith.constant 1024 : index
    %35 = vector.load %arg9[%c0_27, %c1024] : memref<512x1152xbf16, #tpu.memory_space<vmem>>, vector<512x128xbf16>
    tpu.vector_store %arg9[%c0_27, %c1024], %34 {strides = array<i32>} : memref<512x1152xbf16, #tpu.memory_space<vmem>>, vector<512x128xbf16>,
    %c0_28 = arith.constant 0 : index
    %c0_29 = arith.constant 0 : index
    %36 = vector.load %arg7[%c0_28, %c0_29] : memref<512x128xf32, #tpu.memory_space<vmem>>, vector<512x128xf32>
    %c0_30 = arith.constant 0 : index
    %c0_31 = arith.constant 0 : index
    %37 = vector.load %arg9[%c0_30, %c0_31] : memref<512x1152xbf16, #tpu.memory_space<vmem>>, vector<512x1152xbf16>
    %c0_32 = arith.constant 0 : index
    %c0_33 = arith.constant 0 : index
    %38 = vector.load %arg4[%c0_32, %c0_33] : memref<1152x128xbf16, #tpu.memory_space<vmem>>, vector<1152x128xbf16>
    %cst = arith.constant dense<0.000000e+00> : vector<512x128xf32>
    %39 = tpu.matmul %37, %38, %cst {dimension_numbers = #tpu.dot_dimension_numbers<[1], [0], [0], [1], [0, 0, 1, 1], [], []>} : vector<512x1152xbf16>, vector<1152x128xbf16>, vector<512x128xf32> -> vector<512x128xf32>
    %40 = arith.addf %36, %39 : vector<512x128xf32>
    %c0_34 = arith.constant 0 : index
    %c0_35 = arith.constant 0 : index
    %41 = vector.load %arg7[%c0_34, %c0_35] : memref<512x128xf32, #tpu.memory_space<vmem>>, vector<512x128xf32>
    tpu.vector_store %arg7[%c0_34, %c0_35], %40 {strides = array<i32>} : memref<512x128xf32, #tpu.memory_space<vmem>>, vector<512x128xf32>,
    %c0_i32_36 = arith.constant 0 : i32
    %42 = arith.cmpi eq, %arg1, %c0_i32_36 : i32
    %43 = arith.extui %42 : i1 to i32
    %c0_i32_37 = arith.constant 0 : i32
    %44 = arith.cmpi ne, %43, %c0_i32_37 : i32
    scf.if %44 {
      %c0_38 = arith.constant 0 : index
      %c0_39 = arith.constant 0 : index
      %45 = vector.load %arg7[%c0_38, %c0_39] : memref<512x128xf32, #tpu.memory_space<vmem>>, vector<512x128xf32>
      %c0_40 = arith.constant 0 : index
      %c0_41 = arith.constant 0 : index
      %46 = vector.load %arg5[%c0_40, %c0_41] : memref<1x128xf32, #tpu.memory_space<vmem>>, vector<1x128xf32>
      %47 = vector.broadcast %46 : vector<1x128xf32> to vector<512x128xf32>
      %48 = arith.addf %45, %47 : vector<512x128xf32>
      %c0_42 = arith.constant 0 : index
      %c0_43 = arith.constant 0 : index
      %49 = vector.load %arg6[%c0_42, %c0_43] : memref<512x128xf32, #tpu.memory_space<vmem>>, vector<512x128xf32>
      tpu.vector_store %arg6[%c0_42, %c0_43], %48 {strides = array<i32>} : memref<512x128xf32, #tpu.memory_space<vmem>>, vector<512x128xf32>,
    } else {
    }
    return
  }
  func.func @transform_0(%arg0: i32, %arg1: i32) -> (i32, i32) {
    %c0_i32 = arith.constant 0 : i32
    return %arg0, %arg1 : i32, i32
  }
  func.func @transform_1(%arg0: i32, %arg1: i32) -> (i32, i32) {
    %c1_i32 = arith.constant 1 : i32
    %0 = arith.addi %arg0, %c1_i32 : i32
    %c4_i32 = arith.constant 4 : i32
    %1 = arith.muli %0, %c4_i32 : i32
    %c0_i32 = arith.constant 0 : i32
    return %1, %arg1 : i32, i32
  }
  func.func @transform_2(%arg0: i32, %arg1: i32) -> (i32, i32) {
    %c0_i32 = arith.constant 0 : i32
    %c0_i32_0 = arith.constant 0 : i32
    return %arg1, %c0_i32 : i32, i32
  }
  func.func @transform_3(%arg0: i32, %arg1: i32) -> (i32, i32) {
    %c0_i32 = arith.constant 0 : i32
    %c0_i32_0 = arith.constant 0 : i32
    %c0_i32_1 = arith.constant 0 : i32
    return %c0_i32, %c0_i32_0 : i32, i32
  }
  func.func @transform_4(%arg0: i32, %arg1: i32) -> (i32, i32) {
    %c0_i32 = arith.constant 0 : i32
    %c0_i32_0 = arith.constant 0 : i32
    return %arg0, %c0_i32 : i32, i32
  }
}

</mosaic_0001>

<llo_original>
// kernel: _conv3x3_s1.1
$region0: #{_conv3x3_s1.1}
  #allocation0 [shape = 'u32[]', space=smem, size = 0x4, offset = 0x4, fixed_abs, tag = 'smem constant byte address 0x4 - core index']
  #allocation1 [shape = 'u32[144,128]{1,0:T(1,128)}', space=vmem, size = 0x12000, scoped, tag = 'internal scratch']
  #allocation2 [shape = 'f32[512,128]{1,0:T(8,128)}', space=vmem, size = 0x40000, scoped, tag = 'scratch operand']
  #allocation3 [shape = 'f32[640,128]{1,0:T(8,128)}', space=vmem, size = 0x50000, scoped, tag = 'scratch operand']
  #allocation4 [shape = 'bf16[512,1152]{1,0:T(16,128)(2,1)}', space=vmem, size = 0x120000, scoped, tag = 'scratch operand']
  %s0 = inlined_call_operand.vmem [shape: bf16[640,128], index: 0, kind: input, shape index: {}, may-alias: {0,1}]
  %s1 = inlined_call_operand.vmem [shape: bf16[640,128], index: 1, kind: input, shape index: {}, may-alias: {0,1}]
  %s2 = inlined_call_operand.vmem [shape: bf16[1152,128], index: 2, kind: input, shape index: {}]
  %s3 = inlined_call_operand.vmem [shape: f32[1,128], index: 3, kind: input, shape index: {}]
  %s4 = inlined_call_operand.vmem [shape: f32[512,128], index: 4, kind: output, shape index: {}]
  %s5 = sld [smem:[#allocation0]]
  $region34: #{_conv3x3_s1.1} parent=0
    _
  %s7 = ssub.s32 1, %s5
  %s8 = scalar_select 0, %s7, %s5
  // Predicated region
  $region2: #{_conv3x3_s1.1} parent=0 // pred_check
    _
  $region3: #{_conv3x3_s1.1} parent=0 // pred_check_branch
    %10 = sbr.rel (0) target = $region5
  $region4: #{_conv3x3_s1.1} parent=0 // pred_region
    _
  $region5: #{_conv3x3_s1.1} parent=0 // pred_fallthru
    _
  // Predicated region
  $region6: #{_conv3x3_s1.1} parent=0 // pred_check
    _
  $region7: #{_conv3x3_s1.1} parent=0 // pred_check_branch
    %12 = sbr.rel (0) target = $region9
  $region8: #{_conv3x3_s1.1} parent=0 // pred_region
    %s13 = sadd.s32 0, 1
    %s14 = smul.u32 %s13, 4
    %s15 = smul.u32 16, %s14
    %p16 = scmp.lt.s32.totalorder %s15, 79
    %s17 = scalar_select %p16, %s15, 79
    %s18 = smul.addr %s17, 4
    %s19 = scalar_lea.vmem %s1, %s18
    %s20 = sadd.s32 0, 1
    %s21 = smul.u32 %s20, 4
    %s22 = smul.u32 16, %s21
  $region9: #{_conv3x3_s1.1} parent=0 // pred_fallthru
    _
  // Predicated region
  $region10: #{_conv3x3_s1.1} parent=0 // pred_check
    _
  $region11: #{_conv3x3_s1.1} parent=0 // pred_check_branch
    %24 = sbr.rel (0) target = $region13
  $region12: #{_conv3x3_s1.1} parent=0 // pred_region
    _
  $region13: #{_conv3x3_s1.1} parent=0 // pred_fallthru
    _
  // Predicated region
  $region14: #{_conv3x3_s1.1} parent=0 // pred_check
    _
  $region15: #{_conv3x3_s1.1} parent=0 // pred_check_branch
    %26 = sbr.rel (0) target = $region17
  $region16: #{_conv3x3_s1.1} parent=0 // pred_region
    _
  $region17: #{_conv3x3_s1.1} parent=0 // pred_fallthru
    _
  %s27 = sadd.s32 0, 1
  %s28 = smul.u32 %s27, 4
  %s29 = smul.u32 16, %s28
  %p30 = scmp.lt.s32.totalorder %s29, 79
  %s31 = scalar_select %p30, %s29, 79
  %s32 = smul.addr %s31, 4
  %s33 = scalar_lea.vmem %s1, %s32
  %s34 = sadd.s32 0, 1
  %s35 = smul.u32 %s34, 4
  %s36 = smul.u32 16, %s35
  %p37 = scmp.lt.s32.totalorder %s36, 79
  %s38 = scalar_select %p37, %s36, 79
  %s39 = smul.addr %s38, 4
  %s40 = scalar_lea.vmem %s1, %s39
  %s41 = sadd.s32 0, 1
  %s42 = smul.u32 %s41, 4
  %s43 = smul.u32 16, %s42
  %p45 = scmp.eq.s32.totalorder 0, 0
  // Predicated region
  $region18: #{_conv3x3_s1.1} parent=0 // pred_check
    %p46 = pneg %p45
  $region19: #{_conv3x3_s1.1} parent=0 // pred_check_branch
    %48 = sbr.rel (%p46) target = $region21
  $region20: #{_conv3x3_s1.1} parent=0 // pred_region
    %49 = vst [vmem:[#allocation2] sm:$0xff] 0.0
    %50 = vst [vmem:[#allocation2 + $0x8] sm:$0xff] 0.0
    %51 = vst [vmem:[#allocation2 + $0x10] sm:$0xff] 0.0
    %52 = vst [vmem:[#allocation2 + $0x18] sm:$0xff] 0.0
    %53 = vst [vmem:[#allocation2 + $0x20] sm:$0xff] 0.0
    %54 = vst [vmem:[#allocation2 + $0x28] sm:$0xff] 0.0
    %55 = vst [vmem:[#allocation2 + $0x30] sm:$0xff] 0.0
    %56 = vst [vmem:[#allocation2 + $0x38] sm:$0xff] 0.0
    %57 = vst [vmem:[#allocation2 + $0x40] sm:$0xff] 0.0
    %58 = vst [vmem:[#allocation2 + $0x48] sm:$0xff] 0.0
    %59 = vst [vmem:[#allocation2 + $0x50] sm:$0xff] 0.0
    %60 = vst [vmem:[#allocation2 + $0x58] sm:$0xff] 0.0
    %61 = vst [vmem:[#allocation2 + $0x60] sm:$0xff] 0.0
    %62 = vst [vmem:[#allocation2 + $0x68] sm:$0xff] 0.0
    %63 = vst [vmem:[#allocation2 + $0x70] sm:$0xff] 0.0
    %64 = vst [vmem:[#allocation2 + $0x78] sm:$0xff] 0.0
    %65 = vst [vmem:[#allocation2 + $0x80] sm:$0xff] 0.0
    %66 = vst [vmem:[#allocation2 + $0x88] sm:$0xff] 0.0
    %67 = vst [vmem:[#allocation2 + $0x90] sm:$0xff] 0.0
    %68 = vst [vmem:[#allocation2 + $0x98] sm:$0xff] 0.0
    %69 = vst [vmem:[#allocation2 + $0xa0] sm:$0xff] 0.0
    %70 = vst [vmem:[#allocation2 + $0xa8] sm:$0xff] 0.0
    %71 = vst [vmem:[#allocation2 + $0xb0] sm:$0xff] 0.0
    %72 = vst [vmem:[#allocation2 + $0xb8] sm:$0xff] 0.0
    %73 = vst [vmem:[#allocation2 + $0xc0] sm:$0xff] 0.0
    %74 = vst [vmem:[#allocation2 + $0xc8] sm:$0xff] 0.0
    %75 = vst [vmem:[#allocation2 + $0xd0] sm:$0xff] 0.0
    %76 = vst [vmem:[#allocation2 + $0xd8] sm:$0xff] 0.0
    %77 = vst [vmem:[#allocation2 + $0xe0] sm:$0xff] 0.0
    %78 = vst [vmem:[#allocation2 + $0xe8] sm:$0xff] 0.0
    %79 = vst [vmem:[#allocation2 + $0xf0] sm:$0xff] 0.0
    %80 = vst [vmem:[#allocation2 + $0xf8] sm:$0xff] 0.0
    %81 = vst [vmem:[#allocation2 + $0x100] sm:$0xff] 0.0
    %82 = vst [vmem:[#allocation2 + $0x108] sm:$0xff] 0.0
    %83 = vst [vmem:[#allocation2 + $0x110] sm:$0xff] 0.0
    %84 = vst [vmem:[#allocation2 + $0x118] sm:$0xff] 0.0
    %85 = vst [vmem:[#allocation2 + $0x120] sm:$0xff] 0.0
    %86 = vst [vmem:[#allocation2 + $0x128] sm:$0xff] 0.0
    %87 = vst [vmem:[#allocation2 + $0x130] sm:$0xff] 0.0
    %88 = vst [vmem:[#allocation2 + $0x138] sm:$0xff] 0.0
    %89 = vst [vmem:[#allocation2 + $0x140] sm:$0xff] 0.0
    %90 = vst [vmem:[#allocation2 + $0x148] sm:$0xff] 0.0
    %91 = vst [vmem:[#allocation2 + $0x150] sm:$0xff] 0.0
    %92 = vst [vmem:[#allocation2 + $0x158] sm:$0xff] 0.0
    %93 = vst [vmem:[#allocation2 + $0x160] sm:$0xff] 0.0
    %94 = vst [vmem:[#allocation2 + $0x168] sm:$0xff] 0.0
    %95 = vst [vmem:[#allocation2 + $0x170] sm:$0xff] 0.0
    %96 = vst [vmem:[#allocation2 + $0x178] sm:$0xff] 0.0
    %97 = vst [vmem:[#allocation2 + $0x180] sm:$0xff] 0.0
    %98 = vst [vmem:[#allocation2 + $0x188] sm:$0xff] 0.0
    %99 = vst [vmem:[#allocation2 + $0x190] sm:$0xff] 0.0
    %100 = vst [vmem:[#allocation2 + $0x198] sm:$0xff] 0.0
    %101 = vst [vmem:[#allocation2 + $0x1a0] sm:$0xff] 0.0
    %102 = vst [vmem:[#allocation2 + $0x1a8] sm:$0xff] 0.0
    %103 = vst [vmem:[#allocation2 + $0x1b0] sm:$0xff] 0.0
    %104 = vst [vmem:[#allocation2 + $0x1b8] sm:$0xff] 0.0
    %105 = vst [vmem:[#allocation2 + $0x1c0] sm:$0xff] 0.0
    %106 = vst [vmem:[#allocation2 + $0x1c8] sm:$0xff] 0.0
    %107 = vst [vmem:[#allocation2 + $0x1d0] sm:$0xff] 0.0
    %108 = vst [vmem:[#allocation2 + $0x1d8] sm:$0xff] 0.0
    %109 = vst [vmem:[#allocation2 + $0x1e0] sm:$0xff] 0.0
    %110 = vst [vmem:[#allocation2 + $0x1e8] sm:$0xff] 0.0
    %111 = vst [vmem:[#allocation2 + $0x1f0] sm:$0xff] 0.0
    %112 = vst [vmem:[#allocation2 + $0x1f8] sm:$0xff] 0.0
  $region21: #{_conv3x3_s1.1} parent=0 // pred_fallthru
    _
  %v113 = vld [vmem:[%s0] sm:$0xf]
  %v114 = vld [vmem:[%s0 + $0x4] sm:$0xf]
  %v115 = vld [vmem:[%s0 + $0x8] sm:$0xf]
  %v116 = vld [vmem:[%s0 + $0xc] sm:$0xf]
  %v117 = vld [vmem:[%s0 + $0x10] sm:$0xf]
  %v118 = vld [vmem:[%s0 + $0x14] sm:$0xf]
  %v119 = vld [vmem:[%s0 + $0x18] sm:$0xf]
  %v120 = vld [vmem:[%s0 + $0x1c] sm:$0xf]
  %v121 = vld [vmem:[%s0 + $0x20] sm:$0xf]
  %v122 = vld [vmem:[%s0 + $0x24] sm:$0xf]
  %v123 = vld [vmem:[%s0 + $0x28] sm:$0xf]
  %v124 = vld [vmem:[%s0 + $0x2c] sm:$0xf]
  %v125 = vld [vmem:[%s0 + $0x30] sm:$0xf]
  %v126 = vld [vmem:[%s0 + $0x34] sm:$0xf]
  %v127 = vld [vmem:[%s0 + $0x38] sm:$0xf]
  %v128 = vld [vmem:[%s0 + $0x3c] sm:$0xf]
  %v129 = vld [vmem:[%s0 + $0x40] sm:$0xf]
  %v130 = vld [vmem:[%s0 + $0x44] sm:$0xf]
  %v131 = vld [vmem:[%s0 + $0x48] sm:$0xf]
  %v132 = vld [vmem:[%s0 + $0x4c] sm:$0xf]
  %v133 = vld [vmem:[%s0 + $0x50] sm:$0xf]
  %v134 = vld [vmem:[%s0 + $0x54] sm:$0xf]
  %v135 = vld [vmem:[%s0 + $0x58] sm:$0xf]
  %v136 = vld [vmem:[%s0 + $0x5c] sm:$0xf]
  %v137 = vld [vmem:[%s0 + $0x60] sm:$0xf]
  %v138 = vld [vmem:[%s0 + $0x64] sm:$0xf]
  %v139 = vld [vmem:[%s0 + $0x68] sm:$0xf]
  %v140 = vld [vmem:[%s0 + $0x6c] sm:$0xf]
  %v141 = vld [vmem:[%s0 + $0x70] sm:$0xf]
  %v142 = vld [vmem:[%s0 + $0x74] sm:$0xf]
  %v143 = vld [vmem:[%s0 + $0x78] sm:$0xf]
  %v144 = vld [vmem:[%s0 + $0x7c] sm:$0xf]
  %v145 = vld [vmem:[%s0 + $0x80] sm:$0xf]
  %v146 = vld [vmem:[%s0 + $0x84] sm:$0xf]
  %v147 = vld [vmem:[%s0 + $0x88] sm:$0xf]
  %v148 = vld [vmem:[%s0 + $0x8c] sm:$0xf]
  %v149 = vld [vmem:[%s0 + $0x90] sm:$0xf]
  %v150 = vld [vmem:[%s0 + $0x94] sm:$0xf]
  %v151 = vld [vmem:[%s0 + $0x98] sm:$0xf]
  %v152 = vld [vmem:[%s0 + $0x9c] sm:$0xf]
  %v153 = vld [vmem:[%s0 + $0xa0] sm:$0xf]
  %v154 = vld [vmem:[%s0 + $0xa4] sm:$0xf]
  %v155 = vld [vmem:[%s0 + $0xa8] sm:$0xf]
  %v156 = vld [vmem:[%s0 + $0xac] sm:$0xf]
  %v157 = vld [vmem:[%s0 + $0xb0] sm:$0xf]
  %v158 = vld [vmem:[%s0 + $0xb4] sm:$0xf]
  %v159 = vld [vmem:[%s0 + $0xb8] sm:$0xf]
  %v160 = vld [vmem:[%s0 + $0xbc] sm:$0xf]
  %v161 = vld [vmem:[%s0 + $0xc0] sm:$0xf]
  %v162 = vld [vmem:[%s0 + $0xc4] sm:$0xf]
  %v163 = vld [vmem:[%s0 + $0xc8] sm:$0xf]
  %v164 = vld [vmem:[%s0 + $0xcc] sm:$0xf]
  %v165 = vld [vmem:[%s0 + $0xd0] sm:$0xf]
  %v166 = vld [vmem:[%s0 + $0xd4] sm:$0xf]
  %v167 = vld [vmem:[%s0 + $0xd8] sm:$0xf]
  %v168 = vld [vmem:[%s0 + $0xdc] sm:$0xf]
  %v169 = vld [vmem:[%s0 + $0xe0] sm:$0xf]
  %v170 = vld [vmem:[%s0 + $0xe4] sm:$0xf]
  %v171 = vld [vmem:[%s0 + $0xe8] sm:$0xf]
  %v172 = vld [vmem:[%s0 + $0xec] sm:$0xf]
  %v173 = vld [vmem:[%s0 + $0xf0] sm:$0xf]
  %v174 = vld [vmem:[%s0 + $0xf4] sm:$0xf]
  %v175 = vld [vmem:[%s0 + $0xf8] sm:$0xf]
  %v176 = vld [vmem:[%s0 + $0xfc] sm:$0xf]
  %v177 = vunpack.c.l.bf16 %v113
  %v178 = vunpack.c.l.bf16 %v114
  %v179 = vunpack.c.l.bf16 %v115
  %v180 = vunpack.c.l.bf16 %v116
  %v181 = vunpack.c.l.bf16 %v117
  %v182 = vunpack.c.l.bf16 %v118
  %v183 = vunpack.c.l.bf16 %v119
  %v184 = vunpack.c.l.bf16 %v120
  %v185 = vunpack.c.l.bf16 %v121
  %v186 = vunpack.c.l.bf16 %v122
  %v187 = vunpack.c.l.bf16 %v123
  %v188 = vunpack.c.l.bf16 %v124
  %v189 = vunpack.c.l.bf16 %v125
  %v190 = vunpack.c.l.bf16 %v126
  %v191 = vunpack.c.l.bf16 %v127
  %v192 = vunpack.c.l.bf16 %v128
  %v193 = vunpack.c.l.bf16 %v129
  %v194 = vunpack.c.l.bf16 %v130
  %v195 = vunpack.c.l.bf16 %v131
  %v196 = vunpack.c.l.bf16 %v132
  %v197 = vunpack.c.l.bf16 %v133
  %v198 = vunpack.c.l.bf16 %v134
  %v199 = vunpack.c.l.bf16 %v135
  %v200 = vunpack.c.l.bf16 %v136
  %v201 = vunpack.c.l.bf16 %v137
  %v202 = vunpack.c.l.bf16 %v138
  %v203 = vunpack.c.l.bf16 %v139
  %v204 = vunpack.c.l.bf16 %v140
  %v205 = vunpack.c.l.bf16 %v141
  %v206 = vunpack.c.l.bf16 %v142
  %v207 = vunpack.c.l.bf16 %v143
  %v208 = vunpack.c.l.bf16 %v144
  %v209 = vunpack.c.l.bf16 %v145
  %v210 = vunpack.c.l.bf16 %v146
  %v211 = vunpack.c.l.bf16 %v147
  %v212 = vunpack.c.l.bf16 %v148
  %v213 = vunpack.c.l.bf16 %v149
  %v214 = vunpack.c.l.bf16 %v150
  %v215 = vunpack.c.l.bf16 %v151
  %v216 = vunpack.c.l.bf16 %v152
  %v217 = vunpack.c.l.bf16 %v153
  %v218 = vunpack.c.l.bf16 %v154
  %v219 = vunpack.c.l.bf16 %v155
  %v220 = vunpack.c.l.bf16 %v156
  %v221 = vunpack.c.l.bf16 %v157
  %v222 = vunpack.c.l.bf16 %v158
  %v223 = vunpack.c.l.bf16 %v159
  %v224 = vunpack.c.l.bf16 %v160
  %v225 = vunpack.c.l.bf16 %v161
  %v226 = vunpack.c.l.bf16 %v162
  %v227 = vunpack.c.l.bf16 %v163
  %v228 = vunpack.c.l.bf16 %v164
  %v229 = vunpack.c.l.bf16 %v165
  %v230 = vunpack.c.l.bf16 %v166
  %v231 = vunpack.c.l.bf16 %v167
  %v232 = vunpack.c.l.bf16 %v168
  %v233 = vunpack.c.l.bf16 %v169
  %v234 = vunpack.c.l.bf16 %v170
  %v235 = vunpack.c.l.bf16 %v171
  %v236 = vunpack.c.l.bf16 %v172
  %v237 = vunpack.c.l.bf16 %v173
  %v238 = vunpack.c.l.bf16 %v174
  %v239 = vunpack.c.l.bf16 %v175
  %v240 = vunpack.c.l.bf16 %v176
  %241 = vst [vmem:[#allocation3] sm:$0xff] %v177
  %242 = vst [vmem:[#allocation3 + $0x8] sm:$0xff] %v178
  %243 = vst [vmem:[#allocation3 + $0x10] sm:$0xff] %v179
  %244 = vst [vmem:[#allocation3 + $0x18] sm:$0xff] %v180
  %245 = vst [vmem:[#allocation3 + $0x20] sm:$0xff] %v181
  %246 = vst [vmem:[#allocation3 + $0x28] sm:$0xff] %v182
  %247 = vst [vmem:[#allocation3 + $0x30] sm:$0xff] %v183
  %248 = vst [vmem:[#allocation3 + $0x38] sm:$0xff] %v184
  %249 = vst [vmem:[#allocation3 + $0x40] sm:$0xff] %v185
  %250 = vst [vmem:[#allocation3 + $0x48] sm:$0xff] %v186
  %251 = vst [vmem:[#allocation3 + $0x50] sm:$0xff] %v187
  %252 = vst [vmem:[#allocation3 + $0x58] sm:$0xff] %v188
  %253 = vst [vmem:[#allocation3 + $0x60] sm:$0xff] %v189
  %254 = vst [vmem:[#allocation3 + $0x68] sm:$0xff] %v190
  %255 = vst [vmem:[#allocation3 + $0x70] sm:$0xff] %v191
  %256 = vst [vmem:[#allocation3 + $0x78] sm:$0xff] %v192
  %257 = vst [vmem:[#allocation3 + $0x80] sm:$0xff] %v193
  %258 = vst [vmem:[#allocation3 + $0x88] sm:$0xff] %v194
  %259 = vst [vmem:[#allocation3 + $0x90] sm:$0xff] %v195
  %260 = vst [vmem:[#allocation3 + $0x98] sm:$0xff] %v196
  %261 = vst [vmem:[#allocation3 + $0xa0] sm:$0xff] %v197
  %262 = vst [vmem:[#allocation3 + $0xa8] sm:$0xff] %v198
  %263 = vst [vmem:[#allocation3 + $0xb0] sm:$0xff] %v199
  %264 = vst [vmem:[#allocation3 + $0xb8] sm:$0xff] %v200
  %265 = vst [vmem:[#allocation3 + $0xc0] sm:$0xff] %v201
  %266 = vst [vmem:[#allocation3 + $0xc8] sm:$0xff] %v202
  %267 = vst [vmem:[#allocation3 + $0xd0] sm:$0xff] %v203
  %268 = vst [vmem:[#allocation3 + $0xd8] sm:$0xff] %v204
  %269 = vst [vmem:[#allocation3 + $0xe0] sm:$0xff] %v205
  %270 = vst [vmem:[#allocation3 + $0xe8] sm:$0xff] %v206
  %271 = vst [vmem:[#allocation3 + $0xf0] sm:$0xff] %v207
  %272 = vst [vmem:[#allocation3 + $0xf8] sm:$0xff] %v208
  %273 = vst [vmem:[#allocation3 + $0x100] sm:$0xff] %v209
  %274 = vst [vmem:[#allocation3 + $0x108] sm:$0xff] %v210
  %275 = vst [vmem:[#allocation3 + $0x110] sm:$0xff] %v211
  %276 = vst [vmem:[#allocation3 + $0x118] sm:$0xff] %v212
  %277 = vst [vmem:[#allocation3 + $0x120] sm:$0xff] %v213
  %278 = vst [vmem:[#allocation3 + $0x128] sm:$0xff] %v214
  %279 = vst [vmem:[#allocation3 + $0x130] sm:$0xff] %v215
  %280 = vst [vmem:[#allocation3 + $0x138] sm:$0xff] %v216
  %281 = vst [vmem:[#allocation3 + $0x140] sm:$0xff] %v217
  %282 = vst [vmem:[#allocation3 + $0x148] sm:$0xff] %v218
  %283 = vst [vmem:[#allocation3 + $0x150] sm:$0xff] %v219
  %284 = vst [vmem:[#allocation3 + $0x158] sm:$0xff] %v220
  %285 = vst [vmem:[#allocation3 + $0x160] sm:$0xff] %v221
  %286 = vst [vmem:[#allocation3 + $0x168] sm:$0xff] %v222
  %287 = vst [vmem:[#allocation3 + $0x170] sm:$0xff] %v223
  %288 = vst [vmem:[#allocation3 + $0x178] sm:$0xff] %v224
  %289 = vst [vmem:[#allocation3 + $0x180] sm:$0xff] %v225
  %290 = vst [vmem:[#allocation3 + $0x188] sm:$0xff] %v226
  %291 = vst [vmem:[#allocation3 + $0x190] sm:$0xff] %v227
  %292 = vst [vmem:[#allocation3 + $0x198] sm:$0xff] %v228
  %293 = vst [vmem:[#allocation3 + $0x1a0] sm:$0xff] %v229
  %294 = vst [vmem:[#allocation3 + $0x1a8] sm:$0xff] %v230
  %295 = vst [vmem:[#allocation3 + $0x1b0] sm:$0xff] %v231
  %296 = vst [vmem:[#allocation3 + $0x1b8] sm:$0xff] %v232
  %297 = vst [vmem:[#allocation3 + $0x1c0] sm:$0xff] %v233
  %298 = vst [vmem:[#allocation3 + $0x1c8] sm:$0xff] %v234
  %299 = vst [vmem:[#allocation3 + $0x1d0] sm:$0xff] %v235
  %300 = vst [vmem:[#allocation3 + $0x1d8] sm:$0xff] %v236
  %301 = vst [vmem:[#allocation3 + $0x1e0] sm:$0xff] %v237
  %302 = vst [vmem:[#allocation3 + $0x1e8] sm:$0xff] %v238
  %303 = vst [vmem:[#allocation3 + $0x1f0] sm:$0xff] %v239
  %304 = vst [vmem:[#allocation3 + $0x1f8] sm:$0xff] %v240
  %v305 = vld [vmem:[%s40] sm:$0xf]
  %v306 = vld [vmem:[%s40 + $0x4] sm:$0xf]
  %v307 = vld [vmem:[%s40 + $0x8] sm:$0xf]
  %v308 = vld [vmem:[%s40 + $0xc] sm:$0xf]
  %v309 = vld [vmem:[%s40 + $0x10] sm:$0xf]
  %v310 = vld [vmem:[%s40 + $0x14] sm:$0xf]
  %v311 = vld [vmem:[%s40 + $0x18] sm:$0xf]
  %v312 = vld [vmem:[%s40 + $0x1c] sm:$0xf]
  %v313 = vld [vmem:[%s40 + $0x20] sm:$0xf]
  %v314 = vld [vmem:[%s40 + $0x24] sm:$0xf]
  %v315 = vld [vmem:[%s40 + $0x28] sm:$0xf]
  %v316 = vld [vmem:[%s40 + $0x2c] sm:$0xf]
  %v317 = vld [vmem:[%s40 + $0x30] sm:$0xf]
  %v318 = vld [vmem:[%s40 + $0x34] sm:$0xf]
  %v319 = vld [vmem:[%s40 + $0x38] sm:$0xf]
  %v320 = vld [vmem:[%s40 + $0x3c] sm:$0xf]
  %v321 = vunpack.c.l.bf16 %v305
  %v322 = vunpack.c.l.bf16 %v306
  %v323 = vunpack.c.l.bf16 %v307
  %v324 = vunpack.c.l.bf16 %v308
  %v325 = vunpack.c.l.bf16 %v309
  %v326 = vunpack.c.l.bf16 %v310
  %v327 = vunpack.c.l.bf16 %v311
  %v328 = vunpack.c.l.bf16 %v312
  %v329 = vunpack.c.l.bf16 %v313
  %v330 = vunpack.c.l.bf16 %v314
  %v331 = vunpack.c.l.bf16 %v315
  %v332 = vunpack.c.l.bf16 %v316
  %v333 = vunpack.c.l.bf16 %v317
  %v334 = vunpack.c.l.bf16 %v318
  %v335 = vunpack.c.l.bf16 %v319
  %v336 = vunpack.c.l.bf16 %v320
  %337 = vst [vmem:[#allocation3 + $0x200] sm:$0xff] %v321
  %338 = vst [vmem:[#allocation3 + $0x208] sm:$0xff] %v322
  %339 = vst [vmem:[#allocation3 + $0x210] sm:$0xff] %v323
  %340 = vst [vmem:[#allocation3 + $0x218] sm:$0xff] %v324
  %341 = vst [vmem:[#allocation3 + $0x220] sm:$0xff] %v325
  %342 = vst [vmem:[#allocation3 + $0x228] sm:$0xff] %v326
  %343 = vst [vmem:[#allocation3 + $0x230] sm:$0xff] %v327
  %344 = vst [vmem:[#allocation3 + $0x238] sm:$0xff] %v328
  %345 = vst [vmem:[#allocation3 + $0x240] sm:$0xff] %v329
  %346 = vst [vmem:[#allocation3 + $0x248] sm:$0xff] %v330
  %347 = vst [vmem:[#allocation3 + $0x250] sm:$0xff] %v331
  %348 = vst [vmem:[#allocation3 + $0x258] sm:$0xff] %v332
  %349 = vst [vmem:[#allocation3 + $0x260] sm:$0xff] %v333
  %350 = vst [vmem:[#allocation3 + $0x268] sm:$0xff] %v334
  %351 = vst [vmem:[#allocation3 + $0x270] sm:$0xff] %v335
  %352 = vst [vmem:[#allocation3 + $0x278] sm:$0xff] %v336
  %v353 = vld [vmem:[#allocation3] sm:$0xff]
  %v354 = vld [vmem:[#allocation3 + $0x8] sm:$0xff]
  %v355 = vld [vmem:[#allocation3 + $0x10] sm:$0xff]
  %v356 = vld [vmem:[#allocation3 + $0x18] sm:$0xff]
  %v357 = vld [vmem:[#allocation3 + $0x20] sm:$0xff]
  %v358 = vld [vmem:[#allocation3 + $0x28] sm:$0xff]
  %v359 = vld [vmem:[#allocation3 + $0x30] sm:$0xff]
  %v360 = vld [vmem:[#allocation3 + $0x38] sm:$0xff]
  %v361 = vld [vmem:[#allocation3 + $0x40] sm:$0xff]
  %v362 = vld [vmem:[#allocation3 + $0x48] sm:$0xff]
  %v363 = vld [vmem:[#allocation3 + $0x50] sm:$0xff]
  %v364 = vld [vmem:[#allocation3 + $0x58] sm:$0xff]
  %v365 = vld [vmem:[#allocation3 + $0x60] sm:$0xff]
  %v366 = vld [vmem:[#allocation3 + $0x68] sm:$0xff]
  %v367 = vld [vmem:[#allocation3 + $0x70] sm:$0xff]
  %v368 = vld [vmem:[#allocation3 + $0x78] sm:$0xff]
  %v369 = vld [vmem:[#allocation3 + $0x80] sm:$0xff]
  %v370 = vld [vmem:[#allocation3 + $0x88] sm:$0xff]
  %v371 = vld [vmem:[#allocation3 + $0x90] sm:$0xff]
  %v372 = vld [vmem:[#allocation3 + $0x98] sm:$0xff]
  %v373 = vld [vmem:[#allocation3 + $0xa0] sm:$0xff]
  %v374 = vld [vmem:[#allocation3 + $0xa8] sm:$0xff]
  %v375 = vld [vmem:[#allocation3 + $0xb0] sm:$0xff]
  %v376 = vld [vmem:[#allocation3 + $0xb8] sm:$0xff]
  %v377 = vld [vmem:[#allocation3 + $0xc0] sm:$0xff]
  %v378 = vld [vmem:[#allocation3 + $0xc8] sm:$0xff]
  %v379 = vld [vmem:[#allocation3 + $0xd0] sm:$0xff]
  %v380 = vld [vmem:[#allocation3 + $0xd8] sm:$0xff]
  %v381 = vld [vmem:[#allocation3 + $0xe0] sm:$0xff]
  %v382 = vld [vmem:[#allocation3 + $0xe8] sm:$0xff]
  %v383 = vld [vmem:[#allocation3 + $0xf0] sm:$0xff]
  %v384 = vld [vmem:[#allocation3 + $0xf8] sm:$0xff]
  %v385 = vld [vmem:[#allocation3 + $0x100] sm:$0xff]
  %v386 = vld [vmem:[#allocation3 + $0x108] sm:$0xff]
  %v387 = vld [vmem:[#allocation3 + $0x110] sm:$0xff]
  %v388 = vld [vmem:[#allocation3 + $0x118] sm:$0xff]
  %v389 = vld [vmem:[#allocation3 + $0x120] sm:$0xff]
  %v390 = vld [vmem:[#allocation3 + $0x128] sm:$0xff]
  %v391 = vld [vmem:[#allocation3 + $0x130] sm:$0xff]
  %v392 = vld [vmem:[#allocation3 + $0x138] sm:$0xff]
  %v393 = vld [vmem:[#allocation3 + $0x140] sm:$0xff]
  %v394 = vld [vmem:[#allocation3 + $0x148] sm:$0xff]
  %v395 = vld [vmem:[#allocation3 + $0x150] sm:$0xff]
  %v396 = vld [vmem:[#allocation3 + $0x158] sm:$0xff]
  %v397 = vld [vmem:[#allocation3 + $0x160] sm:$0xff]
  %v398 = vld [vmem:[#allocation3 + $0x168] sm:$0xff]
  %v399 = vld [vmem:[#allocation3 + $0x170] sm:$0xff]
  %v400 = vld [vmem:[#allocation3 + $0x178] sm:$0xff]
  %v401 = vld [vmem:[#allocation3 + $0x180] sm:$0xff]
  %v402 = vld [vmem:[#allocation3 + $0x188] sm:$0xff]
  %v403 = vld [vmem:[#allocation3 + $0x190] sm:$0xff]
  %v404 = vld [vmem:[#allocation3 + $0x198] sm:$0xff]
  %v405 = vld [vmem:[#allocation3 + $0x1a0] sm:$0xff]
  %v406 = vld [vmem:[#allocation3 + $0x1a8] sm:$0xff]
  %v407 = vld [vmem:[#allocation3 + $0x1b0] sm:$0xff]
  %v408 = vld [vmem:[#allocation3 + $0x1b8] sm:$0xff]
  %v409 = vld [vmem:[#allocation3 + $0x1c0] sm:$0xff]
  %v410 = vld [vmem:[#allocation3 + $0x1c8] sm:$0xff]
  %v411 = vld [vmem:[#allocation3 + $0x1d0] sm:$0xff]
  %v412 = vld [vmem:[#allocation3 + $0x1d8] sm:$0xff]
  %v413 = vld [vmem:[#allocation3 + $0x1e0] sm:$0xff]
  %v414 = vld [vmem:[#allocation3 + $0x1e8] sm:$0xff]
  %v415 = vld [vmem:[#allocation3 + $0x1f0] sm:$0xff]
  %v416 = vld [vmem:[#allocation3 + $0x1f8] sm:$0xff]
  %v417 = vpack.c.bf16 %v354, %v353
  %v418 = vpack.c.bf16 %v356, %v355
  %v419 = vpack.c.bf16 %v358, %v357
  %v420 = vpack.c.bf16 %v360, %v359
  %v421 = vpack.c.bf16 %v362, %v361
  %v422 = vpack.c.bf16 %v364, %v363
  %v423 = vpack.c.bf16 %v366, %v365
  %v424 = vpack.c.bf16 %v368, %v367
  %v425 = vpack.c.bf16 %v370, %v369
  %v426 = vpack.c.bf16 %v372, %v371
  %v427 = vpack.c.bf16 %v374, %v373
  %v428 = vpack.c.bf16 %v376, %v375
  %v429 = vpack.c.bf16 %v378, %v377
  %v430 = vpack.c.bf16 %v380, %v379
  %v431 = vpack.c.bf16 %v382, %v381
  %v432 = vpack.c.bf16 %v384, %v383
  %v433 = vpack.c.bf16 %v386, %v385
  %v434 = vpack.c.bf16 %v388, %v387
  %v435 = vpack.c.bf16 %v390, %v389
  %v436 = vpack.c.bf16 %v392, %v391
  %v437 = vpack.c.bf16 %v394, %v393
  %v438 = vpack.c.bf16 %v396, %v395
  %v439 = vpack.c.bf16 %v398, %v397
  %v440 = vpack.c.bf16 %v400, %v399
  %v441 = vpack.c.bf16 %v402, %v401
  %v442 = vpack.c.bf16 %v404, %v403
  %v443 = vpack.c.bf16 %v406, %v405
  %v444 = vpack.c.bf16 %v408, %v407
  %v445 = vpack.c.bf16 %v410, %v409
  %v446 = vpack.c.bf16 %v412, %v411
  %v447 = vpack.c.bf16 %v414, %v413
  %v448 = vpack.c.bf16 %v416, %v415
  %449 = vst [vmem:[#allocation4] sm:$0xff] %v417
  %450 = vst [vmem:[#allocation4 + $0x48] sm:$0xff] %v418
  %451 = vst [vmem:[#allocation4 + $0x90] sm:$0xff] %v419
  %452 = vst [vmem:[#allocation4 + $0xd8] sm:$0xff] %v420
  %453 = vst [vmem:[#allocation4 + $0x120] sm:$0xff] %v421
  %454 = vst [vmem:[#allocation4 + $0x168] sm:$0xff] %v422
  %455 = vst [vmem:[#allocation4 + $0x1b0] sm:$0xff] %v423
  %456 = vst [vmem:[#allocation4 + $0x1f8] sm:$0xff] %v424
  %457 = vst [vmem:[#allocation4 + $0x240] sm:$0xff] %v425
  %458 = vst [vmem:[#allocation4 + $0x288] sm:$0xff] %v426
  %459 = vst [vmem:[#allocation4 + $0x2d0] sm:$0xff] %v427
  %460 = vst [vmem:[#allocation4 + $0x318] sm:$0xff] %v428
  %461 = vst [vmem:[#allocation4 + $0x360] sm:$0xff] %v429
  %462 = vst [vmem:[#allocation4 + $0x3a8] sm:$0xff] %v430
  %463 = vst [vmem:[#allocation4 + $0x3f0] sm:$0xff] %v431
  %464 = vst [vmem:[#allocation4 + $0x438] sm:$0xff] %v432
  %465 = vst [vmem:[#allocation4 + $0x480] sm:$0xff] %v433
  %466 = vst [vmem:[#allocation4 + $0x4c8] sm:$0xff] %v434
  %467 = vst [vmem:[#allocation4 + $0x510] sm:$0xff] %v435
  %468 = vst [vmem:[#allocation4 + $0x558] sm:$0xff] %v436
  %469 = vst [vmem:[#allocation4 + $0x5a0] sm:$0xff] %v437
  %470 = vst [vmem:[#allocation4 + $0x5e8] sm:$0xff] %v438
  %471 = vst [vmem:[#allocation4 + $0x630] sm:$0xff] %v439
  %472 = vst [vmem:[#allocation4 + $0x678] sm:$0xff] %v440
  %473 = vst [vmem:[#allocation4 + $0x6c0] sm:$0xff] %v441
  %474 = vst [vmem:[#allocation4 + $0x708] sm:$0xff] %v442
  %475 = vst [vmem:[#allocation4 + $0x750] sm:$0xff] %v443
  %476 = vst [vmem:[#allocation4 + $0x798] sm:$0xff] %v444
  %477 = vst [vmem:[#allocation4 + $0x7e0] sm:$0xff] %v445
  %478 = vst [vmem:[#allocation4 + $0x828] sm:$0xff] %v446
  %479 = vst [vmem:[#allocation4 + $0x870] sm:$0xff] %v447
  %480 = vst [vmem:[#allocation4 + $0x8b8] sm:$0xff] %v448
  %v481 = vld [vmem:[#allocation3 + $0x1] sm:$0xff]
  %v482 = vld [vmem:[#allocation3 + $0x9] sm:$0xff]
  %v483 = vld [vmem:[#allocation3 + $0x11] sm:$0xff]
  %v484 = vld [vmem:[#allocation3 + $0x19] sm:$0xff]
  %v485 = vld [vmem:[#allocation3 + $0x21] sm:$0xff]
  %v486 = vld [vmem:[#allocation3 + $0x29] sm:$0xff]
  %v487 = vld [vmem:[#allocation3 + $0x31] sm:$0xff]
  %v488 = vld [vmem:[#allocation3 + $0x39] sm:$0xff]
  %v489 = vld [vmem:[#allocation3 + $0x41] sm:$0xff]
  %v490 = vld [vmem:[#allocation3 + $0x49] sm:$0xff]
  %v491 = vld [vmem:[#allocation3 + $0x51] sm:$0xff]
  %v492 = vld [vmem:[#allocation3 + $0x59] sm:$0xff]
  %v493 = vld [vmem:[#allocation3 + $0x61] sm:$0xff]
  %v494 = vld [vmem:[#allocation3 + $0x69] sm:$0xff]
  %v495 = vld [vmem:[#allocation3 + $0x71] sm:$0xff]
  %v496 = vld [vmem:[#allocation3 + $0x79] sm:$0xff]
  %v497 = vld [vmem:[#allocation3 + $0x81] sm:$0xff]
  %v498 = vld [vmem:[#allocation3 + $0x89] sm:$0xff]
  %v499 = vld [vmem:[#allocation3 + $0x91] sm:$0xff]
  %v500 = vld [vmem:[#allocation3 + $0x99] sm:$0xff]
  %v501 = vld [vmem:[#allocation3 + $0xa1] sm:$0xff]
  %v502 = vld [vmem:[#allocation3 + $0xa9] sm:$0xff]
  %v503 = vld [vmem:[#allocation3 + $0xb1] sm:$0xff]
  %v504 = vld [vmem:[#allocation3 + $0xb9] sm:$0xff]
  %v505 = vld [vmem:[#allocation3 + $0xc1] sm:$0xff]
  %v506 = vld [vmem:[#allocation3 + $0xc9] sm:$0xff]
  %v507 = vld [vmem:[#allocation3 + $0xd1] sm:$0xff]
  %v508 = vld [vmem:[#allocation3 + $0xd9] sm:$0xff]
  %v509 = vld [vmem:[#allocation3 + $0xe1] sm:$0xff]
  %v510 = vld [vmem:[#allocation3 + $0xe9] sm:$0xff]
  %v511 = vld [vmem:[#allocation3 + $0xf1] sm:$0xff]
  %v512 = vld [vmem:[#allocation3 + $0xf9] sm:$0xff]
  %v513 = vld [vmem:[#allocation3 + $0x101] sm:$0xff]
  %v514 = vld [vmem:[#allocation3 + $0x109] sm:$0xff]
  %v515 = vld [vmem:[#allocation3 + $0x111] sm:$0xff]
  %v516 = vld [vmem:[#allocation3 + $0x119] sm:$0xff]
  %v517 = vld [vmem:[#allocation3 + $0x121] sm:$0xff]
  %v518 = vld [vmem:[#allocation3 + $0x129] sm:$0xff]
  %v519 = vld [vmem:[#allocation3 + $0x131] sm:$0xff]
  %v520 = vld [vmem:[#allocation3 + $0x139] sm:$0xff]
  %v521 = vld [vmem:[#allocation3 + $0x141] sm:$0xff]
  %v522 = vld [vmem:[#allocation3 + $0x149] sm:$0xff]
  %v523 = vld [vmem:[#allocation3 + $0x151] sm:$0xff]
  %v524 = vld [vmem:[#allocation3 + $0x159] sm:$0xff]
  %v525 = vld [vmem:[#allocation3 + $0x161] sm:$0xff]
  %v526 = vld [vmem:[#allocation3 + $0x169] sm:$0xff]
  %v527 = vld [vmem:[#allocation3 + $0x171] sm:$0xff]
  %v528 = vld [vmem:[#allocation3 + $0x179] sm:$0xff]
  %v529 = vld [vmem:[#allocation3 + $0x181] sm:$0xff]
  %v530 = vld [vmem:[#allocation3 + $0x189] sm:$0xff]
  %v531 = vld [vmem:[#allocation3 + $0x191] sm:$0xff]
  %v532 = vld [vmem:[#allocation3 + $0x199] sm:$0xff]
  %v533 = vld [vmem:[#allocation3 + $0x1a1] sm:$0xff]
  %v534 = vld [vmem:[#allocation3 + $0x1a9] sm:$0xff]
  %v535 = vld [vmem:[#allocation3 + $0x1b1] sm:$0xff]
  %v536 = vld [vmem:[#allocation3 + $0x1b9] sm:$0xff]
  %v537 = vld [vmem:[#allocation3 + $0x1c1] sm:$0xff]
  %v538 = vld [vmem:[#allocation3 + $0x1c9] sm:$0xff]
  %v539 = vld [vmem:[#allocation3 + $0x1d1] sm:$0xff]
  %v540 = vld [vmem:[#allocation3 + $0x1d9] sm:$0xff]
  %v541 = vld [vmem:[#allocation3 + $0x1e1] sm:$0xff]
  %v542 = vld [vmem:[#allocation3 + $0x1e9] sm:$0xff]
  %v543 = vld [vmem:[#allocation3 + $0x1f1] sm:$0xff]
  %v544 = vld [vmem:[#allocation3 + $0x1f9] sm:$0xff]
  %v545 = vpack.c.bf16 %v482, %v481
  %v546 = vpack.c.bf16 %v484, %v483
  %v547 = vpack.c.bf16 %v486, %v485
  %v548 = vpack.c.bf16 %v488, %v487
  %v549 = vpack.c.bf16 %v490, %v489
  %v550 = vpack.c.bf16 %v492, %v491
  %v551 = vpack.c.bf16 %v494, %v493
  %v552 = vpack.c.bf16 %v496, %v495
  %v553 = vpack.c.bf16 %v498, %v497
  %v554 = vpack.c.bf16 %v500, %v499
  %v555 = vpack.c.bf16 %v502, %v501
  %v556 = vpack.c.bf16 %v504, %v503
  %v557 = vpack.c.bf16 %v506, %v505
  %v558 = vpack.c.bf16 %v508, %v507
  %v559 = vpack.c.bf16 %v510, %v509
  %v560 = vpack.c.bf16 %v512, %v511
  %v561 = vpack.c.bf16 %v514, %v513
  %v562 = vpack.c.bf16 %v516, %v515
  %v563 = vpack.c.bf16 %v518, %v517
  %v564 = vpack.c.bf16 %v520, %v519
  %v565 = vpack.c.bf16 %v522, %v521
  %v566 = vpack.c.bf16 %v524, %v523
  %v567 = vpack.c.bf16 %v526, %v525
  %v568 = vpack.c.bf16 %v528, %v527
  %v569 = vpack.c.bf16 %v530, %v529
  %v570 = vpack.c.bf16 %v532, %v531
  %v571 = vpack.c.bf16 %v534, %v533
  %v572 = vpack.c.bf16 %v536, %v535
  %v573 = vpack.c.bf16 %v538, %v537
  %v574 = vpack.c.bf16 %v540, %v539
  %v575 = vpack.c.bf16 %v542, %v541
  %v576 = vpack.c.bf16 %v544, %v543
  %577 = vst [vmem:[#allocation4 + $0x8] sm:$0xff] %v545
  %578 = vst [vmem:[#allocation4 + $0x50] sm:$0xff] %v546
  %579 = vst [vmem:[#allocation4 + $0x98] sm:$0xff] %v547
  %580 = vst [vmem:[#allocation4 + $0xe0] sm:$0xff] %v548
  %581 = vst [vmem:[#allocation4 + $0x128] sm:$0xff] %v549
  %582 = vst [vmem:[#allocation4 + $0x170] sm:$0xff] %v550
  %583 = vst [vmem:[#allocation4 + $0x1b8] sm:$0xff] %v551
  %584 = vst [vmem:[#allocation4 + $0x200] sm:$0xff] %v552
  %585 = vst [vmem:[#allocation4 + $0x248] sm:$0xff] %v553
  %586 = vst [vmem:[#allocation4 + $0x290] sm:$0xff] %v554
  %587 = vst [vmem:[#allocation4 + $0x2d8] sm:$0xff] %v555
  %588 = vst [vmem:[#allocation4 + $0x320] sm:$0xff] %v556
  %589 = vst [vmem:[#allocation4 + $0x368] sm:$0xff] %v557
  %590 = vst [vmem:[#allocation4 + $0x3b0] sm:$0xff] %v558
  %591 = vst [vmem:[#allocation4 + $0x3f8] sm:$0xff] %v559
  %592 = vst [vmem:[#allocation4 + $0x440] sm:$0xff] %v560
  %593 = vst [vmem:[#allocation4 + $0x488] sm:$0xff] %v561
  %594 = vst [vmem:[#allocation4 + $0x4d0] sm:$0xff] %v562
  %595 = vst [vmem:[#allocation4 + $0x518] sm:$0xff] %v563
  %596 = vst [vmem:[#allocation4 + $0x560] sm:$0xff] %v564
  %597 = vst [vmem:[#allocation4 + $0x5a8] sm:$0xff] %v565
  %598 = vst [vmem:[#allocation4 + $0x5f0] sm:$0xff] %v566
  %599 = vst [vmem:[#allocation4 + $0x638] sm:$0xff] %v567
  %600 = vst [vmem:[#allocation4 + $0x680] sm:$0xff] %v568
  %601 = vst [vmem:[#allocation4 + $0x6c8] sm:$0xff] %v569
  %602 = vst [vmem:[#allocation4 + $0x710] sm:$0xff] %v570
  %603 = vst [vmem:[#allocation4 + $0x758] sm:$0xff] %v571
  %604 = vst [vmem:[#allocation4 + $0x7a0] sm:$0xff] %v572
  %605 = vst [vmem:[#allocation4 + $0x7e8] sm:$0xff] %v573
  %606 = vst [vmem:[#allocation4 + $0x830] sm:$0xff] %v574
  %607 = vst [vmem:[#allocation4 + $0x878] sm:$0xff] %v575
  %608 = vst [vmem:[#allocation4 + $0x8c0] sm:$0xff] %v576
  %v609 = vld [vmem:[#allocation3 + $0x2] sm:$0xff]
  %v610 = vld [vmem:[#allocation3 + $0xa] sm:$0xff]
  %v611 = vld [vmem:[#allocation3 + $0x12] sm:$0xff]
  %v612 = vld [vmem:[#allocation3 + $0x1a] sm:$0xff]
  %v613 = vld [vmem:[#allocation3 + $0x22] sm:$0xff]
  %v614 = vld [vmem:[#allocation3 + $0x2a] sm:$0xff]
  %v615 = vld [vmem:[#allocation3 + $0x32] sm:$0xff]
  %v616 = vld [vmem:[#allocation3 + $0x3a] sm:$0xff]
  %v617 = vld [vmem:[#allocation3 + $0x42] sm:$0xff]
  %v618 = vld [vmem:[#allocation3 + $0x4a] sm:$0xff]
  %v619 = vld [vmem:[#allocation3 + $0x52] sm:$0xff]
  %v620 = vld [vmem:[#allocation3 + $0x5a] sm:$0xff]
  %v621 = vld [vmem:[#allocation3 + $0x62] sm:$0xff]
  %v622 = vld [vmem:[#allocation3 + $0x6a] sm:$0xff]
  %v623 = vld [vmem:[#allocation3 + $0x72] sm:$0xff]
  %v624 = vld [vmem:[#allocation3 + $0x7a] sm:$0xff]
  %v625 = vld [vmem:[#allocation3 + $0x82] sm:$0xff]
  %v626 = vld [vmem:[#allocation3 + $0x8a] sm:$0xff]
  %v627 = vld [vmem:[#allocation3 + $0x92] sm:$0xff]
  %v628 = vld [vmem:[#allocation3 + $0x9a] sm:$0xff]
  %v629 = vld [vmem:[#allocation3 + $0xa2] sm:$0xff]
  %v630 = vld [vmem:[#allocation3 + $0xaa] sm:$0xff]
  %v631 = vld [vmem:[#allocation3 + $0xb2] sm:$0xff]
  %v632 = vld [vmem:[#allocation3 + $0xba] sm:$0xff]
  %v633 = vld [vmem:[#allocation3 + $0xc2] sm:$0xff]
  %v634 = vld [vmem:[#allocation3 + $0xca] sm:$0xff]
  %v635 = vld [vmem:[#allocation3 + $0xd2] sm:$0xff]
  %v636 = vld [vmem:[#allocation3 + $0xda] sm:$0xff]
  %v637 = vld [vmem:[#allocation3 + $0xe2] sm:$0xff]
  %v638 = vld [vmem:[#allocation3 + $0xea] sm:$0xff]
  %v639 = vld [vmem:[#allocation3 + $0xf2] sm:$0xff]
  %v640 = vld [vmem:[#allocation3 + $0xfa] sm:$0xff]
  %v641 = vld [vmem:[#allocation3 + $0x102] sm:$0xff]
  %v642 = vld [vmem:[#allocation3 + $0x10a] sm:$0xff]
  %v643 = vld [vmem:[#allocation3 + $0x112] sm:$0xff]
  %v644 = vld [vmem:[#allocation3 + $0x11a] sm:$0xff]
  %v645 = vld [vmem:[#allocation3 + $0x122] sm:$0xff]
  %v646 = vld [vmem:[#allocation3 + $0x12a] sm:$0xff]
  %v647 = vld [vmem:[#allocation3 + $0x132] sm:$0xff]
  %v648 = vld [vmem:[#allocation3 + $0x13a] sm:$0xff]
  %v649 = vld [vmem:[#allocation3 + $0x142] sm:$0xff]
  %v650 = vld [vmem:[#allocation3 + $0x14a] sm:$0xff]
  %v651 = vld [vmem:[#allocation3 + $0x152] sm:$0xff]
  %v652 = vld [vmem:[#allocation3 + $0x15a] sm:$0xff]
  %v653 = vld [vmem:[#allocation3 + $0x162] sm:$0xff]
  %v654 = vld [vmem:[#allocation3 + $0x16a] sm:$0xff]
  %v655 = vld [vmem:[#allocation3 + $0x172] sm:$0xff]
  %v656 = vld [vmem:[#allocation3 + $0x17a] sm:$0xff]
  %v657 = vld [vmem:[#allocation3 + $0x182] sm:$0xff]
  %v658 = vld [vmem:[#allocation3 + $0x18a] sm:$0xff]
  %v659 = vld [vmem:[#allocation3 + $0x192] sm:$0xff]
  %v660 = vld [vmem:[#allocation3 + $0x19a] sm:$0xff]
  %v661 = vld [vmem:[#allocation3 + $0x1a2] sm:$0xff]
  %v662 = vld [vmem:[#allocation3 + $0x1aa] sm:$0xff]
  %v663 = vld [vmem:[#allocation3 + $0x1b2] sm:$0xff]
  %v664 = vld [vmem:[#allocation3 + $0x1ba] sm:$0xff]
  %v665 = vld [vmem:[#allocation3 + $0x1c2] sm:$0xff]
  %v666 = vld [vmem:[#allocation3 + $0x1ca] sm:$0xff]
  %v667 = vld [vmem:[#allocation3 + $0x1d2] sm:$0xff]
  %v668 = vld [vmem:[#allocation3 + $0x1da] sm:$0xff]
  %v669 = vld [vmem:[#allocation3 + $0x1e2] sm:$0xff]
  %v670 = vld [vmem:[#allocation3 + $0x1ea] sm:$0xff]
  %v671 = vld [vmem:[#allocation3 + $0x1f2] sm:$0xff]
  %v672 = vld [vmem:[#allocation3 + $0x1fa] sm:$0xff]
  %v673 = vpack.c.bf16 %v610, %v609
  %v674 = vpack.c.bf16 %v612, %v611
  %v675 = vpack.c.bf16 %v614, %v613
  %v676 = vpack.c.bf16 %v616, %v615
  %v677 = vpack.c.bf16 %v618, %v617
  %v678 = vpack.c.bf16 %v620, %v619
  %v679 = vpack.c.bf16 %v622, %v621
  %v680 = vpack.c.bf16 %v624, %v623
  %v681 = vpack.c.bf16 %v626, %v625
  %v682 = vpack.c.bf16 %v628, %v627
  %v683 = vpack.c.bf16 %v630, %v629
  %v684 = vpack.c.bf16 %v632, %v631
  %v685 = vpack.c.bf16 %v634, %v633
  %v686 = vpack.c.bf16 %v636, %v635
  %v687 = vpack.c.bf16 %v638, %v637
  %v688 = vpack.c.bf16 %v640, %v639
  %v689 = vpack.c.bf16 %v642, %v641
  %v690 = vpack.c.bf16 %v644, %v643
  %v691 = vpack.c.bf16 %v646, %v645
  %v692 = vpack.c.bf16 %v648, %v647
  %v693 = vpack.c.bf16 %v650, %v649
  %v694 = vpack.c.bf16 %v652, %v651
  %v695 = vpack.c.bf16 %v654, %v653
  %v696 = vpack.c.bf16 %v656, %v655
  %v697 = vpack.c.bf16 %v658, %v657
  %v698 = vpack.c.bf16 %v660, %v659
  %v699 = vpack.c.bf16 %v662, %v661
  %v700 = vpack.c.bf16 %v664, %v663
  %v701 = vpack.c.bf16 %v666, %v665
  %v702 = vpack.c.bf16 %v668, %v667
  %v703 = vpack.c.bf16 %v670, %v669
  %v704 = vpack.c.bf16 %v672, %v671
  %705 = vst [vmem:[#allocation4 + $0x10] sm:$0xff] %v673
  %706 = vst [vmem:[#allocation4 + $0x58] sm:$0xff] %v674
  %707 = vst [vmem:[#allocation4 + $0xa0] sm:$0xff] %v675
  %708 = vst [vmem:[#allocation4 + $0xe8] sm:$0xff] %v676
  %709 = vst [vmem:[#allocation4 + $0x130] sm:$0xff] %v677
  %710 = vst [vmem:[#allocation4 + $0x178] sm:$0xff] %v678
  %711 = vst [vmem:[#allocation4 + $0x1c0] sm:$0xff] %v679
  %712 = vst [vmem:[#allocation4 + $0x208] sm:$0xff] %v680
  %713 = vst [vmem:[#allocation4 + $0x250] sm:$0xff] %v681
  %714 = vst [vmem:[#allocation4 + $0x298] sm:$0xff] %v682
  %715 = vst [vmem:[#allocation4 + $0x2e0] sm:$0xff] %v683
  %716 = vst [vmem:[#allocation4 + $0x328] sm:$0xff] %v684
  %717 = vst [vmem:[#allocation4 + $0x370] sm:$0xff] %v685
  %718 = vst [vmem:[#allocation4 + $0x3b8] sm:$0xff] %v686
  %719 = vst [vmem:[#allocation4 + $0x400] sm:$0xff] %v687
  %720 = vst [vmem:[#allocation4 + $0x448] sm:$0xff] %v688
  %721 = vst [vmem:[#allocation4 + $0x490] sm:$0xff] %v689
  %722 = vst [vmem:[#allocation4 + $0x4d8] sm:$0xff] %v690
  %723 = vst [vmem:[#allocation4 + $0x520] sm:$0xff] %v691
  %724 = vst [vmem:[#allocation4 + $0x568] sm:$0xff] %v692
  %725 = vst [vmem:[#allocation4 + $0x5b0] sm:$0xff] %v693
  %726 = vst [vmem:[#allocation4 + $0x5f8] sm:$0xff] %v694
  %727 = vst [vmem:[#allocation4 + $0x640] sm:$0xff] %v695
  %728 = vst [vmem:[#allocation4 + $0x688] sm:$0xff] %v696
  %729 = vst [vmem:[#allocation4 + $0x6d0] sm:$0xff] %v697
  %730 = vst [vmem:[#allocation4 + $0x718] sm:$0xff] %v698
  %731 = vst [vmem:[#allocation4 + $0x760] sm:$0xff] %v699
  %732 = vst [vmem:[#allocation4 + $0x7a8] sm:$0xff] %v700
  %733 = vst [vmem:[#allocation4 + $0x7f0] sm:$0xff] %v701
  %734 = vst [vmem:[#allocation4 + $0x838] sm:$0xff] %v702
  %735 = vst [vmem:[#allocation4 + $0x880] sm:$0xff] %v703
  %736 = vst [vmem:[#allocation4 + $0x8c8] sm:$0xff] %v704
  %v737 = vld [vmem:[#allocation3 + $0x8] sm:$0xff]
  %v738 = vld [vmem:[#allocation3 + $0x10] sm:$0xff]
  %v739 = vld [vmem:[#allocation3 + $0x18] sm:$0xff]
  %v740 = vld [vmem:[#allocation3 + $0x20] sm:$0xff]
  %v741 = vld [vmem:[#allocation3 + $0x28] sm:$0xff]
  %v742 = vld [vmem:[#allocation3 + $0x30] sm:$0xff]
  %v743 = vld [vmem:[#allocation3 + $0x38] sm:$0xff]
  %v744 = vld [vmem:[#allocation3 + $0x40] sm:$0xff]
  %v745 = vld [vmem:[#allocation3 + $0x48] sm:$0xff]
  %v746 = vld [vmem:[#allocation3 + $0x50] sm:$0xff]
  %v747 = vld [vmem:[#allocation3 + $0x58] sm:$0xff]
  %v748 = vld [vmem:[#allocation3 + $0x60] sm:$0xff]
  %v749 = vld [vmem:[#allocation3 + $0x68] sm:$0xff]
  %v750 = vld [vmem:[#allocation3 + $0x70] sm:$0xff]
  %v751 = vld [vmem:[#allocation3 + $0x78] sm:$0xff]
  %v752 = vld [vmem:[#allocation3 + $0x80] sm:$0xff]
  %v753 = vld [vmem:[#allocation3 + $0x88] sm:$0xff]
  %v754 = vld [vmem:[#allocation3 + $0x90] sm:$0xff]
  %v755 = vld [vmem:[#allocation3 + $0x98] sm:$0xff]
  %v756 = vld [vmem:[#allocation3 + $0xa0] sm:$0xff]
  %v757 = vld [vmem:[#allocation3 + $0xa8] sm:$0xff]
  %v758 = vld [vmem:[#allocation3 + $0xb0] sm:$0xff]
  %v759 = vld [vmem:[#allocation3 + $0xb8] sm:$0xff]
  %v760 = vld [vmem:[#allocation3 + $0xc0] sm:$0xff]
  %v761 = vld [vmem:[#allocation3 + $0xc8] sm:$0xff]
  %v762 = vld [vmem:[#allocation3 + $0xd0] sm:$0xff]
  %v763 = vld [vmem:[#allocation3 + $0xd8] sm:$0xff]
  %v764 = vld [vmem:[#allocation3 + $0xe0] sm:$0xff]
  %v765 = vld [vmem:[#allocation3 + $0xe8] sm:$0xff]
  %v766 = vld [vmem:[#allocation3 + $0xf0] sm:$0xff]
  %v767 = vld [vmem:[#allocation3 + $0xf8] sm:$0xff]
  %v768 = vld [vmem:[#allocation3 + $0x100] sm:$0xff]
  %v769 = vld [vmem:[#allocation3 + $0x108] sm:$0xff]
  %v770 = vld [vmem:[#allocation3 + $0x110] sm:$0xff]
  %v771 = vld [vmem:[#allocation3 + $0x118] sm:$0xff]
  %v772 = vld [vmem:[#allocation3 + $0x120] sm:$0xff]
  %v773 = vld [vmem:[#allocation3 + $0x128] sm:$0xff]
  %v774 = vld [vmem:[#allocation3 + $0x130] sm:$0xff]
  %v775 = vld [vmem:[#allocation3 + $0x138] sm:$0xff]
  %v776 = vld [vmem:[#allocation3 + $0x140] sm:$0xff]
  %v777 = vld [vmem:[#allocation3 + $0x148] sm:$0xff]
  %v778 = vld [vmem:[#allocation3 + $0x150] sm:$0xff]
  %v779 = vld [vmem:[#allocation3 + $0x158] sm:$0xff]
  %v780 = vld [vmem:[#allocation3 + $0x160] sm:$0xff]
  %v781 = vld [vmem:[#allocation3 + $0x168] sm:$0xff]
  %v782 = vld [vmem:[#allocation3 + $0x170] sm:$0xff]
  %v783 = vld [vmem:[#allocation3 + $0x178] sm:$0xff]
  %v784 = vld [vmem:[#allocation3 + $0x180] sm:$0xff]
  %v785 = vld [vmem:[#allocation3 + $0x188] sm:$0xff]
  %v786 = vld [vmem:[#allocation3 + $0x190] sm:$0xff]
  %v787 = vld [vmem:[#allocation3 + $0x198] sm:$0xff]
  %v788 = vld [vmem:[#allocation3 + $0x1a0] sm:$0xff]
  %v789 = vld [vmem:[#allocation3 + $0x1a8] sm:$0xff]
  %v790 = vld [vmem:[#allocation3 + $0x1b0] sm:$0xff]
  %v791 = vld [vmem:[#allocation3 + $0x1b8] sm:$0xff]
  %v792 = vld [vmem:[#allocation3 + $0x1c0] sm:$0xff]
  %v793 = vld [vmem:[#allocation3 + $0x1c8] sm:$0xff]
  %v794 = vld [vmem:[#allocation3 + $0x1d0] sm:$0xff]
  %v795 = vld [vmem:[#allocation3 + $0x1d8] sm:$0xff]
  %v796 = vld [vmem:[#allocation3 + $0x1e0] sm:$0xff]
  %v797 = vld [vmem:[#allocation3 + $0x1e8] sm:$0xff]
  %v798 = vld [vmem:[#allocation3 + $0x1f0] sm:$0xff]
  %v799 = vld [vmem:[#allocation3 + $0x1f8] sm:$0xff]
  %v800 = vld [vmem:[#allocation3 + $0x200] sm:$0xff]
  %v801 = vpack.c.bf16 %v738, %v737
  %v802 = vpack.c.bf16 %v740, %v739
  %v803 = vpack.c.bf16 %v742, %v741
  %v804 = vpack.c.bf16 %v744, %v743
  %v805 = vpack.c.bf16 %v746, %v745
  %v806 = vpack.c.bf16 %v748, %v747
  %v807 = vpack.c.bf16 %v750, %v749
  %v808 = vpack.c.bf16 %v752, %v751
  %v809 = vpack.c.bf16 %v754, %v753
  %v810 = vpack.c.bf16 %v756, %v755
  %v811 = vpack.c.bf16 %v758, %v757
  %v812 = vpack.c.bf16 %v760, %v759
  %v813 = vpack.c.bf16 %v762, %v761
  %v814 = vpack.c.bf16 %v764, %v763
  %v815 = vpack.c.bf16 %v766, %v765
  %v816 = vpack.c.bf16 %v768, %v767
  %v817 = vpack.c.bf16 %v770, %v769
  %v818 = vpack.c.bf16 %v772, %v771
  %v819 = vpack.c.bf16 %v774, %v773
  %v820 = vpack.c.bf16 %v776, %v775
  %v821 = vpack.c.bf16 %v778, %v777
  %v822 = vpack.c.bf16 %v780, %v779
  %v823 = vpack.c.bf16 %v782, %v781
  %v824 = vpack.c.bf16 %v784, %v783
  %v825 = vpack.c.bf16 %v786, %v785
  %v826 = vpack.c.bf16 %v788, %v787
  %v827 = vpack.c.bf16 %v790, %v789
  %v828 = vpack.c.bf16 %v792, %v791
  %v829 = vpack.c.bf16 %v794, %v793
  %v830 = vpack.c.bf16 %v796, %v795
  %v831 = vpack.c.bf16 %v798, %v797
  %v832 = vpack.c.bf16 %v800, %v799
  %833 = vst [vmem:[#allocation4 + $0x18] sm:$0xff] %v801
  %834 = vst [vmem:[#allocation4 + $0x60] sm:$0xff] %v802
  %835 = vst [vmem:[#allocation4 + $0xa8] sm:$0xff] %v803
  %836 = vst [vmem:[#allocation4 + $0xf0] sm:$0xff] %v804
  %837 = vst [vmem:[#allocation4 + $0x138] sm:$0xff] %v805
  %838 = vst [vmem:[#allocation4 + $0x180] sm:$0xff] %v806
  %839 = vst [vmem:[#allocation4 + $0x1c8] sm:$0xff] %v807
  %840 = vst [vmem:[#allocation4 + $0x210] sm:$0xff] %v808
  %841 = vst [vmem:[#allocation4 + $0x258] sm:$0xff] %v809
  %842 = vst [vmem:[#allocation4 + $0x2a0] sm:$0xff] %v810
  %843 = vst [vmem:[#allocation4 + $0x2e8] sm:$0xff] %v811
  %844 = vst [vmem:[#allocation4 + $0x330] sm:$0xff] %v812
  %845 = vst [vmem:[#allocation4 + $0x378] sm:$0xff] %v813
  %846 = vst [vmem:[#allocation4 + $0x3c0] sm:$0xff] %v814
  %847 = vst [vmem:[#allocation4 + $0x408] sm:$0xff] %v815
  %848 = vst [vmem:[#allocation4 + $0x450] sm:$0xff] %v816
  %849 = vst [vmem:[#allocation4 + $0x498] sm:$0xff] %v817
  %850 = vst [vmem:[#allocation4 + $0x4e0] sm:$0xff] %v818
  %851 = vst [vmem:[#allocation4 + $0x528] sm:$0xff] %v819
  %852 = vst [vmem:[#allocation4 + $0x570] sm:$0xff] %v820
  %853 = vst [vmem:[#allocation4 + $0x5b8] sm:$0xff] %v821
  %854 = vst [vmem:[#allocation4 + $0x600] sm:$0xff] %v822
  %855 = vst [vmem:[#allocation4 + $0x648] sm:$0xff] %v823
  %856 = vst [vmem:[#allocation4 + $0x690] sm:$0xff] %v824
  %857 = vst [vmem:[#allocation4 + $0x6d8] sm:$0xff] %v825
  %858 = vst [vmem:[#allocation4 + $0x720] sm:$0xff] %v826
  %859 = vst [vmem:[#allocation4 + $0x768] sm:$0xff] %v827
  %860 = vst [vmem:[#allocation4 + $0x7b0] sm:$0xff] %v828
  %861 = vst [vmem:[#allocation4 + $0x7f8] sm:$0xff] %v829
  %862 = vst [vmem:[#allocation4 + $0x840] sm:$0xff] %v830
  %863 = vst [vmem:[#allocation4 + $0x888] sm:$0xff] %v831
  %864 = vst [vmem:[#allocation4 + $0x8d0] sm:$0xff] %v832
  %v865 = vld [vmem:[#allocation3 + $0x9] sm:$0xff]
  %v866 = vld [vmem:[#allocation3 + $0x11] sm:$0xff]
  %v867 = vld [vmem:[#allocation3 + $0x19] sm:$0xff]
  %v868 = vld [vmem:[#allocation3 + $0x21] sm:$0xff]
  %v869 = vld [vmem:[#allocation3 + $0x29] sm:$0xff]
  %v870 = vld [vmem:[#allocation3 + $0x31] sm:$0xff]
  %v871 = vld [vmem:[#allocation3 + $0x39] sm:$0xff]
  %v872 = vld [vmem:[#allocation3 + $0x41] sm:$0xff]
  %v873 = vld [vmem:[#allocation3 + $0x49] sm:$0xff]
  %v874 = vld [vmem:[#allocation3 + $0x51] sm:$0xff]
  %v875 = vld [vmem:[#allocation3 + $0x59] sm:$0xff]
  %v876 = vld [vmem:[#allocation3 + $0x61] sm:$0xff]
  %v877 = vld [vmem:[#allocation3 + $0x69] sm:$0xff]
  %v878 = vld [vmem:[#allocation3 + $0x71] sm:$0xff]
  %v879 = vld [vmem:[#allocation3 + $0x79] sm:$0xff]
  %v880 = vld [vmem:[#allocation3 + $0x81] sm:$0xff]
  %v881 = vld [vmem:[#allocation3 + $0x89] sm:$0xff]
  %v882 = vld [vmem:[#allocation3 + $0x91] sm:$0xff]
  %v883 = vld [vmem:[#allocation3 + $0x99] sm:$0xff]
  %v884 = vld [vmem:[#allocation3 + $0xa1] sm:$0xff]
  %v885 = vld [vmem:[#allocation3 + $0xa9] sm:$0xff]
  %v886 = vld [vmem:[#allocation3 + $0xb1] sm:$0xff]
  %v887 = vld [vmem:[#allocation3 + $0xb9] sm:$0xff]
  %v888 = vld [vmem:[#allocation3 + $0xc1] sm:$0xff]
  %v889 = vld [vmem:[#allocation3 + $0xc9] sm:$0xff]
  %v890 = vld [vmem:[#allocation3 + $0xd1] sm:$0xff]
  %v891 = vld [vmem:[#allocation3 + $0xd9] sm:$0xff]
  %v892 = vld [vmem:[#allocation3 + $0xe1] sm:$0xff]
  %v893 = vld [vmem:[#allocation3 + $0xe9] sm:$0xff]
  %v894 = vld [vmem:[#allocation3 + $0xf1] sm:$0xff]
  %v895 = vld [vmem:[#allocation3 + $0xf9] sm:$0xff]
  %v896 = vld [vmem:[#allocation3 + $0x101] sm:$0xff]
  %v897 = vld [vmem:[#allocation3 + $0x109] sm:$0xff]
  %v898 = vld [vmem:[#allocation3 + $0x111] sm:$0xff]
  %v899 = vld [vmem:[#allocation3 + $0x119] sm:$0xff]
  %v900 = vld [vmem:[#allocation3 + $0x121] sm:$0xff]
  %v901 = vld [vmem:[#allocation3 + $0x129] sm:$0xff]
  %v902 = vld [vmem:[#allocation3 + $0x131] sm:$0xff]
  %v903 = vld [vmem:[#allocation3 + $0x139] sm:$0xff]
  %v904 = vld [vmem:[#allocation3 + $0x141] sm:$0xff]
  %v905 = vld [vmem:[#allocation3 + $0x149] sm:$0xff]
  %v906 = vld [vmem:[#allocation3 + $0x151] sm:$0xff]
  %v907 = vld [vmem:[#allocation3 + $0x159] sm:$0xff]
  %v908 = vld [vmem:[#allocation3 + $0x161] sm:$0xff]
  %v909 = vld [vmem:[#allocation3 + $0x169] sm:$0xff]
  %v910 = vld [vmem:[#allocation3 + $0x171] sm:$0xff]
  %v911 = vld [vmem:[#allocation3 + $0x179] sm:$0xff]
  %v912 = vld [vmem:[#allocation3 + $0x181] sm:$0xff]
  %v913 = vld [vmem:[#allocation3 + $0x189] sm:$0xff]
  %v914 = vld [vmem:[#allocation3 + $0x191] sm:$0xff]
  %v915 = vld [vmem:[#allocation3 + $0x199] sm:$0xff]
  %v916 = vld [vmem:[#allocation3 + $0x1a1] sm:$0xff]
  %v917 = vld [vmem:[#allocation3 + $0x1a9] sm:$0xff]
  %v918 = vld [vmem:[#allocation3 + $0x1b1] sm:$0xff]
  %v919 = vld [vmem:[#allocation3 + $0x1b9] sm:$0xff]
  %v920 = vld [vmem:[#allocation3 + $0x1c1] sm:$0xff]
  %v921 = vld [vmem:[#allocation3 + $0x1c9] sm:$0xff]
  %v922 = vld [vmem:[#allocation3 + $0x1d1] sm:$0xff]
  %v923 = vld [vmem:[#allocation3 + $0x1d9] sm:$0xff]
  %v924 = vld [vmem:[#allocation3 + $0x1e1] sm:$0xff]
  %v925 = vld [vmem:[#allocation3 + $0x1e9] sm:$0xff]
  %v926 = vld [vmem:[#allocation3 + $0x1f1] sm:$0xff]
  %v927 = vld [vmem:[#allocation3 + $0x1f9] sm:$0xff]
  %v928 = vld [vmem:[#allocation3 + $0x201] sm:$0xff]
  %v929 = vpack.c.bf16 %v866, %v865
  %v930 = vpack.c.bf16 %v868, %v867
  %v931 = vpack.c.bf16 %v870, %v869
  %v932 = vpack.c.bf16 %v872, %v871
  %v933 = vpack.c.bf16 %v874, %v873
  %v934 = vpack.c.bf16 %v876, %v875
  %v935 = vpack.c.bf16 %v878, %v877
  %v936 = vpack.c.bf16 %v880, %v879
  %v937 = vpack.c.bf16 %v882, %v881
  %v938 = vpack.c.bf16 %v884, %v883
  %v939 = vpack.c.bf16 %v886, %v885
  %v940 = vpack.c.bf16 %v888, %v887
  %v941 = vpack.c.bf16 %v890, %v889
  %v942 = vpack.c.bf16 %v892, %v891
  %v943 = vpack.c.bf16 %v894, %v893
  %v944 = vpack.c.bf16 %v896, %v895
  %v945 = vpack.c.bf16 %v898, %v897
  %v946 = vpack.c.bf16 %v900, %v899
  %v947 = vpack.c.bf16 %v902, %v901
  %v948 = vpack.c.bf16 %v904, %v903
  %v949 = vpack.c.bf16 %v906, %v905
  %v950 = vpack.c.bf16 %v908, %v907
  %v951 = vpack.c.bf16 %v910, %v909
  %v952 = vpack.c.bf16 %v912, %v911
  %v953 = vpack.c.bf16 %v914, %v913
  %v954 = vpack.c.bf16 %v916, %v915
  %v955 = vpack.c.bf16 %v918, %v917
  %v956 = vpack.c.bf16 %v920, %v919
  %v957 = vpack.c.bf16 %v922, %v921
  %v958 = vpack.c.bf16 %v924, %v923
  %v959 = vpack.c.bf16 %v926, %v925
  %v960 = vpack.c.bf16 %v928, %v927
  %961 = vst [vmem:[#allocation4 + $0x20] sm:$0xff] %v929
  %962 = vst [vmem:[#allocation4 + $0x68] sm:$0xff] %v930
  %963 = vst [vmem:[#allocation4 + $0xb0] sm:$0xff] %v931
  %964 = vst [vmem:[#allocation4 + $0xf8] sm:$0xff] %v932
  %965 = vst [vmem:[#allocation4 + $0x140] sm:$0xff] %v933
  %966 = vst [vmem:[#allocation4 + $0x188] sm:$0xff] %v934
  %967 = vst [vmem:[#allocation4 + $0x1d0] sm:$0xff] %v935
  %968 = vst [vmem:[#allocation4 + $0x218] sm:$0xff] %v936
  %969 = vst [vmem:[#allocation4 + $0x260] sm:$0xff] %v937
  %970 = vst [vmem:[#allocation4 + $0x2a8] sm:$0xff] %v938
  %971 = vst [vmem:[#allocation4 + $0x2f0] sm:$0xff] %v939
  %972 = vst [vmem:[#allocation4 + $0x338] sm:$0xff] %v940
  %973 = vst [vmem:[#allocation4 + $0x380] sm:$0xff] %v941
  %974 = vst [vmem:[#allocation4 + $0x3c8] sm:$0xff] %v942
  %975 = vst [vmem:[#allocation4 + $0x410] sm:$0xff] %v943
  %976 = vst [vmem:[#allocation4 + $0x458] sm:$0xff] %v944
  %977 = vst [vmem:[#allocation4 + $0x4a0] sm:$0xff] %v945
  %978 = vst [vmem:[#allocation4 + $0x4e8] sm:$0xff] %v946
  %979 = vst [vmem:[#allocation4 + $0x530] sm:$0xff] %v947
  %980 = vst [vmem:[#allocation4 + $0x578] sm:$0xff] %v948
  %981 = vst [vmem:[#allocation4 + $0x5c0] sm:$0xff] %v949
  %982 = vst [vmem:[#allocation4 + $0x608] sm:$0xff] %v950
  %983 = vst [vmem:[#allocation4 + $0x650] sm:$0xff] %v951
  %984 = vst [vmem:[#allocation4 + $0x698] sm:$0xff] %v952
  %985 = vst [vmem:[#allocation4 + $0x6e0] sm:$0xff] %v953
  %986 = vst [vmem:[#allocation4 + $0x728] sm:$0xff] %v954
  %987 = vst [vmem:[#allocation4 + $0x770] sm:$0xff] %v955
  %988 = vst [vmem:[#allocation4 + $0x7b8] sm:$0xff] %v956
  %989 = vst [vmem:[#allocation4 + $0x800] sm:$0xff] %v957
  %990 = vst [vmem:[#allocation4 + $0x848] sm:$0xff] %v958
  %991 = vst [vmem:[#allocation4 + $0x890] sm:$0xff] %v959
  %992 = vst [vmem:[#allocation4 + $0x8d8] sm:$0xff] %v960
  %v993 = vld [vmem:[#allocation3 + $0xa] sm:$0xff]
  %v994 = vld [vmem:[#allocation3 + $0x12] sm:$0xff]
  %v995 = vld [vmem:[#allocation3 + $0x1a] sm:$0xff]
  %v996 = vld [vmem:[#allocation3 + $0x22] sm:$0xff]
  %v997 = vld [vmem:[#allocation3 + $0x2a] sm:$0xff]
  %v998 = vld [vmem:[#allocation3 + $0x32] sm:$0xff]
  %v999 = vld [vmem:[#allocation3 + $0x3a] sm:$0xff]
  %v1000 = vld [vmem:[#allocation3 + $0x42] sm:$0xff]
  %v1001 = vld [vmem:[#allocation3 + $0x4a] sm:$0xff]
  %v1002 = vld [vmem:[#allocation3 + $0x52] sm:$0xff]
  %v1003 = vld [vmem:[#allocation3 + $0x5a] sm:$0xff]
  %v1004 = vld [vmem:[#allocation3 + $0x62] sm:$0xff]
  %v1005 = vld [vmem:[#allocation3 + $0x6a] sm:$0xff]
  %v1006 = vld [vmem:[#allocation3 + $0x72] sm:$0xff]
  %v1007 = vld [vmem:[#allocation3 + $0x7a] sm:$0xff]
  %v1008 = vld [vmem:[#allocation3 + $0x82] sm:$0xff]
  %v1009 = vld [vmem:[#allocation3 + $0x8a] sm:$0xff]
  %v1010 = vld [vmem:[#allocation3 + $0x92] sm:$0xff]
  %v1011 = vld [vmem:[#allocation3 + $0x9a] sm:$0xff]
  %v1012 = vld [vmem:[#allocation3 + $0xa2] sm:$0xff]
  %v1013 = vld [vmem:[#allocation3 + $0xaa] sm:$0xff]
  %v1014 = vld [vmem:[#allocation3 + $0xb2] sm:$0xff]
  %v1015 = vld [vmem:[#allocation3 + $0xba] sm:$0xff]
  %v1016 = vld [vmem:[#allocation3 + $0xc2] sm:$0xff]
  %v1017 = vld [vmem:[#allocation3 + $0xca] sm:$0xff]
  %v1018 = vld [vmem:[#allocation3 + $0xd2] sm:$0xff]
  %v1019 = vld [vmem:[#allocation3 + $0xda] sm:$0xff]
  %v1020 = vld [vmem:[#allocation3 + $0xe2] sm:$0xff]
  %v1021 = vld [vmem:[#allocation3 + $0xea] sm:$0xff]
  %v1022 = vld [vmem:[#allocation3 + $0xf2] sm:$0xff]
  %v1023 = vld [vmem:[#allocation3 + $0xfa] sm:$0xff]
  %v1024 = vld [vmem:[#allocation3 + $0x102] sm:$0xff]
  %v1025 = vld [vmem:[#allocation3 + $0x10a] sm:$0xff]
  %v1026 = vld [vmem:[#allocation3 + $0x112] sm:$0xff]
  %v1027 = vld [vmem:[#allocation3 + $0x11a] sm:$0xff]
  %v1028 = vld [vmem:[#allocation3 + $0x122] sm:$0xff]
  %v1029 = vld [vmem:[#allocation3 + $0x12a] sm:$0xff]
  %v1030 = vld [vmem:[#allocation3 + $0x132] sm:$0xff]
  %v1031 = vld [vmem:[#allocation3 + $0x13a] sm:$0xff]
  %v1032 = vld [vmem:[#allocation3 + $0x142] sm:$0xff]
  %v1033 = vld [vmem:[#allocation3 + $0x14a] sm:$0xff]
  %v1034 = vld [vmem:[#allocation3 + $0x152] sm:$0xff]
  %v1035 = vld [vmem:[#allocation3 + $0x15a] sm:$0xff]
  %v1036 = vld [vmem:[#allocation3 + $0x162] sm:$0xff]
  %v1037 = vld [vmem:[#allocation3 + $0x16a] sm:$0xff]
  %v1038 = vld [vmem:[#allocation3 + $0x172] sm:$0xff]
  %v1039 = vld [vmem:[#allocation3 + $0x17a] sm:$0xff]
  %v1040 = vld [vmem:[#allocation3 + $0x182] sm:$0xff]
  %v1041 = vld [vmem:[#allocation3 + $0x18a] sm:$0xff]
  %v1042 = vld [vmem:[#allocation3 + $0x192] sm:$0xff]
  %v1043 = vld [vmem:[#allocation3 + $0x19a] sm:$0xff]
  %v1044 = vld [vmem:[#allocation3 + $0x1a2] sm:$0xff]
  %v1045 = vld [vmem:[#allocation3 + $0x1aa] sm:$0xff]
  %v1046 = vld [vmem:[#allocation3 + $0x1b2] sm:$0xff]
  %v1047 = vld [vmem:[#allocation3 + $0x1ba] sm:$0xff]
  %v1048 = vld [vmem:[#allocation3 + $0x1c2] sm:$0xff]
  %v1049 = vld [vmem:[#allocation3 + $0x1ca] sm:$0xff]
  %v1050 = vld [vmem:[#allocation3 + $0x1d2] sm:$0xff]
  %v1051 = vld [vmem:[#allocation3 + $0x1da] sm:$0xff]
  %v1052 = vld [vmem:[#allocation3 + $0x1e2] sm:$0xff]
  %v1053 = vld [vmem:[#allocation3 + $0x1ea] sm:$0xff]
  %v1054 = vld [vmem:[#allocation3 + $0x1f2] sm:$0xff]
  %v1055 = vld [vmem:[#allocation3 + $0x1fa] sm:$0xff]
  %v1056 = vld [vmem:[#allocation3 + $0x202] sm:$0xff]
  %v1057 = vpack.c.bf16 %v994, %v993
  %v1058 = vpack.c.bf16 %v996, %v995
  %v1059 = vpack.c.bf16 %v998, %v997
  %v1060 = vpack.c.bf16 %v1000, %v999
  %v1061 = vpack.c.bf16 %v1002, %v1001
  %v1062 = vpack.c.bf16 %v1004, %v1003
  %v1063 = vpack.c.bf16 %v1006, %v1005
  %v1064 = vpack.c.bf16 %v1008, %v1007
  %v1065 = vpack.c.bf16 %v1010, %v1009
  %v1066 = vpack.c.bf16 %v1012, %v1011
  %v1067 = vpack.c.bf16 %v1014, %v1013
  %v1068 = vpack.c.bf16 %v1016, %v1015
  %v1069 = vpack.c.bf16 %v1018, %v1017
  %v1070 = vpack.c.bf16 %v1020, %v1019
  %v1071 = vpack.c.bf16 %v1022, %v1021
  %v1072 = vpack.c.bf16 %v1024, %v1023
  %v1073 = vpack.c.bf16 %v1026, %v1025
  %v1074 = vpack.c.bf16 %v1028, %v1027
  %v1075 = vpack.c.bf16 %v1030, %v1029
  %v1076 = vpack.c.bf16 %v1032, %v1031
  %v1077 = vpack.c.bf16 %v1034, %v1033
  %v1078 = vpack.c.bf16 %v1036, %v1035
  %v1079 = vpack.c.bf16 %v1038, %v1037
  %v1080 = vpack.c.bf16 %v1040, %v1039
  %v1081 = vpack.c.bf16 %v1042, %v1041
  %v1082 = vpack.c.bf16 %v1044, %v1043
  %v1083 = vpack.c.bf16 %v1046, %v1045
  %v1084 = vpack.c.bf16 %v1048, %v1047
  %v1085 = vpack.c.bf16 %v1050, %v1049
  %v1086 = vpack.c.bf16 %v1052, %v1051
  %v1087 = vpack.c.bf16 %v1054, %v1053
  %v1088 = vpack.c.bf16 %v1056, %v1055
  %1089 = vst [vmem:[#allocation4 + $0x28] sm:$0xff] %v1057
  %1090 = vst [vmem:[#allocation4 + $0x70] sm:$0xff] %v1058
  %1091 = vst [vmem:[#allocation4 + $0xb8] sm:$0xff] %v1059
  %1092 = vst [vmem:[#allocation4 + $0x100] sm:$0xff] %v1060
  %1093 = vst [vmem:[#allocation4 + $0x148] sm:$0xff] %v1061
  %1094 = vst [vmem:[#allocation4 + $0x190] sm:$0xff] %v1062
  %1095 = vst [vmem:[#allocation4 + $0x1d8] sm:$0xff] %v1063
  %1096 = vst [vmem:[#allocation4 + $0x220] sm:$0xff] %v1064
  %1097 = vst [vmem:[#allocation4 + $0x268] sm:$0xff] %v1065
  %1098 = vst [vmem:[#allocation4 + $0x2b0] sm:$0xff] %v1066
  %1099 = vst [vmem:[#allocation4 + $0x2f8] sm:$0xff] %v1067
  %1100 = vst [vmem:[#allocation4 + $0x340] sm:$0xff] %v1068
  %1101 = vst [vmem:[#allocation4 + $0x388] sm:$0xff] %v1069
  %1102 = vst [vmem:[#allocation4 + $0x3d0] sm:$0xff] %v1070
  %1103 = vst [vmem:[#allocation4 + $0x418] sm:$0xff] %v1071
  %1104 = vst [vmem:[#allocation4 + $0x460] sm:$0xff] %v1072
  %1105 = vst [vmem:[#allocation4 + $0x4a8] sm:$0xff] %v1073
  %1106 = vst [vmem:[#allocation4 + $0x4f0] sm:$0xff] %v1074
  %1107 = vst [vmem:[#allocation4 + $0x538] sm:$0xff] %v1075
  %1108 = vst [vmem:[#allocation4 + $0x580] sm:$0xff] %v1076
  %1109 = vst [vmem:[#allocation4 + $0x5c8] sm:$0xff] %v1077
  %1110 = vst [vmem:[#allocation4 + $0x610] sm:$0xff] %v1078
  %1111 = vst [vmem:[#allocation4 + $0x658] sm:$0xff] %v1079
  %1112 = vst [vmem:[#allocation4 + $0x6a0] sm:$0xff] %v1080
  %1113 = vst [vmem:[#allocation4 + $0x6e8] sm:$0xff] %v1081
  %1114 = vst [vmem:[#allocation4 + $0x730] sm:$0xff] %v1082
  %1115 = vst [vmem:[#allocation4 + $0x778] sm:$0xff] %v1083
  %1116 = vst [vmem:[#allocation4 + $0x7c0] sm:$0xff] %v1084
  %1117 = vst [vmem:[#allocation4 + $0x808] sm:$0xff] %v1085
  %1118 = vst [vmem:[#allocation4 + $0x850] sm:$0xff] %v1086
  %1119 = vst [vmem:[#allocation4 + $0x898] sm:$0xff] %v1087
  %1120 = vst [vmem:[#allocation4 + $0x8e0] sm:$0xff] %v1088
  %v1121 = vld [vmem:[#allocation3 + $0x10] sm:$0xff]
  %v1122 = vld [vmem:[#allocation3 + $0x18] sm:$0xff]
  %v1123 = vld [vmem:[#allocation3 + $0x20] sm:$0xff]
  %v1124 = vld [vmem:[#allocation3 + $0x28] sm:$0xff]
  %v1125 = vld [vmem:[#allocation3 + $0x30] sm:$0xff]
  %v1126 = vld [vmem:[#allocation3 + $0x38] sm:$0xff]
  %v1127 = vld [vmem:[#allocation3 + $0x40] sm:$0xff]
  %v1128 = vld [vmem:[#allocation3 + $0x48] sm:$0xff]
  %v1129 = vld [vmem:[#allocation3 + $0x50] sm:$0xff]
  %v1130 = vld [vmem:[#allocation3 + $0x58] sm:$0xff]
  %v1131 = vld [vmem:[#allocation3 + $0x60] sm:$0xff]
  %v1132 = vld [vmem:[#allocation3 + $0x68] sm:$0xff]
  %v1133 = vld [vmem:[#allocation3 + $0x70] sm:$0xff]
  %v1134 = vld [vmem:[#allocation3 + $0x78] sm:$0xff]
  %v1135 = vld [vmem:[#allocation3 + $0x80] sm:$0xff]
  %v1136 = vld [vmem:[#allocation3 + $0x88] sm:$0xff]
  %v1137 = vld [vmem:[#allocation3 + $0x90] sm:$0xff]
  %v1138 = vld [vmem:[#allocation3 + $0x98] sm:$0xff]
  %v1139 = vld [vmem:[#allocation3 + $0xa0] sm:$0xff]
  %v1140 = vld [vmem:[#allocation3 + $0xa8] sm:$0xff]
  %v1141 = vld [vmem:[#allocation3 + $0xb0] sm:$0xff]
  %v1142 = vld [vmem:[#allocation3 + $0xb8] sm:$0xff]
  %v1143 = vld [vmem:[#allocation3 + $0xc0] sm:$0xff]
  %v1144 = vld [vmem:[#allocation3 + $0xc8] sm:$0xff]
  %v1145 = vld [vmem:[#allocation3 + $0xd0] sm:$0xff]
  %v1146 = vld [vmem:[#allocation3 + $0xd8] sm:$0xff]
  %v1147 = vld [vmem:[#allocation3 + $0xe0] sm:$0xff]
  %v1148 = vld [vmem:[#allocation3 + $0xe8] sm:$0xff]
  %v1149 = vld [vmem:[#allocation3 + $0xf0] sm:$0xff]
  %v1150 = vld [vmem:[#allocation3 + $0xf8] sm:$0xff]
  %v1151 = vld [vmem:[#allocation3 + $0x100] sm:$0xff]
  %v1152 = vld [vmem:[#allocation3 + $0x108] sm:$0xff]
  %v1153 = vld [vmem:[#allocation3 + $0x110] sm:$0xff]
  %v1154 = vld [vmem:[#allocation3 + $0x118] sm:$0xff]
  %v1155 = vld [vmem:[#allocation3 + $0x120] sm:$0xff]
  %v1156 = vld [vmem:[#allocation3 + $0x128] sm:$0xff]
  %v1157 = vld [vmem:[#allocation3 + $0x130] sm:$0xff]
  %v1158 = vld [vmem:[#allocation3 + $0x138] sm:$0xff]
  %v1159 = vld [vmem:[#allocation3 + $0x140] sm:$0xff]
  %v1160 = vld [vmem:[#allocation3 + $0x148] sm:$0xff]
  %v1161 = vld [vmem:[#allocation3 + $0x150] sm:$0xff]
  %v1162 = vld [vmem:[#allocation3 + $0x158] sm:$0xff]
  %v1163 = vld [vmem:[#allocation3 + $0x160] sm:$0xff]
  %v1164 = vld [vmem:[#allocation3 + $0x168] sm:$0xff]
  %v1165 = vld [vmem:[#allocation3 + $0x170] sm:$0xff]
  %v1166 = vld [vmem:[#allocation3 + $0x178] sm:$0xff]
  %v1167 = vld [vmem:[#allocation3 + $0x180] sm:$0xff]
  %v1168 = vld [vmem:[#allocation3 + $0x188] sm:$0xff]
  %v1169 = vld [vmem:[#allocation3 + $0x190] sm:$0xff]
  %v1170 = vld [vmem:[#allocation3 + $0x198] sm:$0xff]
  %v1171 = vld [vmem:[#allocation3 + $0x1a0] sm:$0xff]
  %v1172 = vld [vmem:[#allocation3 + $0x1a8] sm:$0xff]
  %v1173 = vld [vmem:[#allocation3 + $0x1b0] sm:$0xff]
  %v1174 = vld [vmem:[#allocation3 + $0x1b8] sm:$0xff]
  %v1175 = vld [vmem:[#allocation3 + $0x1c0] sm:$0xff]
  %v1176 = vld [vmem:[#allocation3 + $0x1c8] sm:$0xff]
  %v1177 = vld [vmem:[#allocation3 + $0x1d0] sm:$0xff]
  %v1178 = vld [vmem:[#allocation3 + $0x1d8] sm:$0xff]
  %v1179 = vld [vmem:[#allocation3 + $0x1e0] sm:$0xff]
  %v1180 = vld [vmem:[#allocation3 + $0x1e8] sm:$0xff]
  %v1181 = vld [vmem:[#allocation3 + $0x1f0] sm:$0xff]
  %v1182 = vld [vmem:[#allocation3 + $0x1f8] sm:$0xff]
  %v1183 = vld [vmem:[#allocation3 + $0x200] sm:$0xff]
  %v1184 = vld [vmem:[#allocation3 + $0x208] sm:$0xff]
  %v1185 = vpack.c.bf16 %v1122, %v1121
  %v1186 = vpack.c.bf16 %v1124, %v1123
  %v1187 = vpack.c.bf16 %v1126, %v1125
  %v1188 = vpack.c.bf16 %v1128, %v1127
  %v1189 = vpack.c.bf16 %v1130, %v1129
  %v1190 = vpack.c.bf16 %v1132, %v1131
  %v1191 = vpack.c.bf16 %v1134, %v1133
  %v1192 = vpack.c.bf16 %v1136, %v1135
  %v1193 = vpack.c.bf16 %v1138, %v1137
  %v1194 = vpack.c.bf16 %v1140, %v1139
  %v1195 = vpack.c.bf16 %v1142, %v1141
  %v1196 = vpack.c.bf16 %v1144, %v1143
  %v1197 = vpack.c.bf16 %v1146, %v1145
  %v1198 = vpack.c.bf16 %v1148, %v1147
  %v1199 = vpack.c.bf16 %v1150, %v1149
  %v1200 = vpack.c.bf16 %v1152, %v1151
  %v1201 = vpack.c.bf16 %v1154, %v1153
  %v1202 = vpack.c.bf16 %v1156, %v1155
  %v1203 = vpack.c.bf16 %v1158, %v1157
  %v1204 = vpack.c.bf16 %v1160, %v1159
  %v1205 = vpack.c.bf16 %v1162, %v1161
  %v1206 = vpack.c.bf16 %v1164, %v1163
  %v1207 = vpack.c.bf16 %v1166, %v1165
  %v1208 = vpack.c.bf16 %v1168, %v1167
  %v1209 = vpack.c.bf16 %v1170, %v1169
  %v1210 = vpack.c.bf16 %v1172, %v1171
  %v1211 = vpack.c.bf16 %v1174, %v1173
  %v1212 = vpack.c.bf16 %v1176, %v1175
  %v1213 = vpack.c.bf16 %v1178, %v1177
  %v1214 = vpack.c.bf16 %v1180, %v1179
  %v1215 = vpack.c.bf16 %v1182, %v1181
  %v1216 = vpack.c.bf16 %v1184, %v1183
  %1217 = vst [vmem:[#allocation4 + $0x30] sm:$0xff] %v1185
  %1218 = vst [vmem:[#allocation4 + $0x78] sm:$0xff] %v1186
  %1219 = vst [vmem:[#allocation4 + $0xc0] sm:$0xff] %v1187
  %1220 = vst [vmem:[#allocation4 + $0x108] sm:$0xff] %v1188
  %1221 = vst [vmem:[#allocation4 + $0x150] sm:$0xff] %v1189
  %1222 = vst [vmem:[#allocation4 + $0x198] sm:$0xff] %v1190
  %1223 = vst [vmem:[#allocation4 + $0x1e0] sm:$0xff] %v1191
  %1224 = vst [vmem:[#allocation4 + $0x228] sm:$0xff] %v1192
  %1225 = vst [vmem:[#allocation4 + $0x270] sm:$0xff] %v1193
  %1226 = vst [vmem:[#allocation4 + $0x2b8] sm:$0xff] %v1194
  %1227 = vst [vmem:[#allocation4 + $0x300] sm:$0xff] %v1195
  %1228 = vst [vmem:[#allocation4 + $0x348] sm:$0xff] %v1196
  %1229 = vst [vmem:[#allocation4 + $0x390] sm:$0xff] %v1197
  %1230 = vst [vmem:[#allocation4 + $0x3d8] sm:$0xff] %v1198
  %1231 = vst [vmem:[#allocation4 + $0x420] sm:$0xff] %v1199
  %1232 = vst [vmem:[#allocation4 + $0x468] sm:$0xff] %v1200
  %1233 = vst [vmem:[#allocation4 + $0x4b0] sm:$0xff] %v1201
  %1234 = vst [vmem:[#allocation4 + $0x4f8] sm:$0xff] %v1202
  %1235 = vst [vmem:[#allocation4 + $0x540] sm:$0xff] %v1203
  %1236 = vst [vmem:[#allocation4 + $0x588] sm:$0xff] %v1204
  %1237 = vst [vmem:[#allocation4 + $0x5d0] sm:$0xff] %v1205
  %1238 = vst [vmem:[#allocation4 + $0x618] sm:$0xff] %v1206
  %1239 = vst [vmem:[#allocation4 + $0x660] sm:$0xff] %v1207
  %1240 = vst [vmem:[#allocation4 + $0x6a8] sm:$0xff] %v1208
  %1241 = vst [vmem:[#allocation4 + $0x6f0] sm:$0xff] %v1209
  %1242 = vst [vmem:[#allocation4 + $0x738] sm:$0xff] %v1210
  %1243 = vst [vmem:[#allocation4 + $0x780] sm:$0xff] %v1211
  %1244 = vst [vmem:[#allocation4 + $0x7c8] sm:$0xff] %v1212
  %1245 = vst [vmem:[#allocation4 + $0x810] sm:$0xff] %v1213
  %1246 = vst [vmem:[#allocation4 + $0x858] sm:$0xff] %v1214
  %1247 = vst [vmem:[#allocation4 + $0x8a0] sm:$0xff] %v1215
  %1248 = vst [vmem:[#allocation4 + $0x8e8] sm:$0xff] %v1216
  %v1249 = vld [vmem:[#allocation3 + $0x11] sm:$0xff]
  %v1250 = vld [vmem:[#allocation3 + $0x19] sm:$0xff]
  %v1251 = vld [vmem:[#allocation3 + $0x21] sm:$0xff]
  %v1252 = vld [vmem:[#allocation3 + $0x29] sm:$0xff]
  %v1253 = vld [vmem:[#allocation3 + $0x31] sm:$0xff]
  %v1254 = vld [vmem:[#allocation3 + $0x39] sm:$0xff]
  %v1255 = vld [vmem:[#allocation3 + $0x41] sm:$0xff]
  %v1256 = vld [vmem:[#allocation3 + $0x49] sm:$0xff]
  %v1257 = vld [vmem:[#allocation3 + $0x51] sm:$0xff]
  %v1258 = vld [vmem:[#allocation3 + $0x59] sm:$0xff]
  %v1259 = vld [vmem:[#allocation3 + $0x61] sm:$0xff]
  %v1260 = vld [vmem:[#allocation3 + $0x69] sm:$0xff]
  %v1261 = vld [vmem:[#allocation3 + $0x71] sm:$0xff]
  %v1262 = vld [vmem:[#allocation3 + $0x79] sm:$0xff]
  %v1263 = vld [vmem:[#allocation3 + $0x81] sm:$0xff]
  %v1264 = vld [vmem:[#allocation3 + $0x89] sm:$0xff]
  %v1265 = vld [vmem:[#allocation3 + $0x91] sm:$0xff]
  %v1266 = vld [vmem:[#allocation3 + $0x99] sm:$0xff]
  %v1267 = vld [vmem:[#allocation3 + $0xa1] sm:$0xff]
  %v1268 = vld [vmem:[#allocation3 + $0xa9] sm:$0xff]
  %v1269 = vld [vmem:[#allocation3 + $0xb1] sm:$0xff]
  %v1270 = vld [vmem:[#allocation3 + $0xb9] sm:$0xff]
  %v1271 = vld [vmem:[#allocation3 + $0xc1] sm:$0xff]
  %v1272 = vld [vmem:[#allocation3 + $0xc9] sm:$0xff]
  %v1273 = vld [vmem:[#allocation3 + $0xd1] sm:$0xff]
  %v1274 = vld [vmem:[#allocation3 + $0xd9] sm:$0xff]
  %v1275 = vld [vmem:[#allocation3 + $0xe1] sm:$0xff]
  %v1276 = vld [vmem:[#allocation3 + $0xe9] sm:$0xff]
  %v1277 = vld [vmem:[#allocation3 + $0xf1] sm:$0xff]
  %v1278 = vld [vmem:[#allocation3 + $0xf9] sm:$0xff]
  %v1279 = vld [vmem:[#allocation3 + $0x101] sm:$0xff]
  %v1280 = vld [vmem:[#allocation3 + $0x109] sm:$0xff]
  %v1281 = vld [vmem:[#allocation3 + $0x111] sm:$0xff]
  %v1282 = vld [vmem:[#allocation3 + $0x119] sm:$0xff]
  %v1283 = vld [vmem:[#allocation3 + $0x121] sm:$0xff]
  %v1284 = vld [vmem:[#allocation3 + $0x129] sm:$0xff]
  %v1285 = vld [vmem:[#allocation3 + $0x131] sm:$0xff]
  %v1286 = vld [vmem:[#allocation3 + $0x139] sm:$0xff]
  %v1287 = vld [vmem:[#allocation3 + $0x141] sm:$0xff]
  %v1288 = vld [vmem:[#allocation3 + $0x149] sm:$0xff]
  %v1289 = vld [vmem:[#allocation3 + $0x151] sm:$0xff]
  %v1290 = vld [vmem:[#allocation3 + $0x159] sm:$0xff]
  %v1291 = vld [vmem:[#allocation3 + $0x161] sm:$0xff]
  %v1292 = vld [vmem:[#allocation3 + $0x169] sm:$0xff]
  %v1293 = vld [vmem:[#allocation3 + $0x171] sm:$0xff]
  %v1294 = vld [vmem:[#allocation3 + $0x179] sm:$0xff]
  %v1295 = vld [vmem:[#allocation3 + $0x181] sm:$0xff]
  %v1296 = vld [vmem:[#allocation3 + $0x189] sm:$0xff]
  %v1297 = vld [vmem:[#allocation3 + $0x191] sm:$0xff]
  %v1298 = vld [vmem:[#allocation3 + $0x199] sm:$0xff]
  %v1299 = vld [vmem:[#allocation3 + $0x1a1] sm:$0xff]
  %v1300 = vld [vmem:[#allocation3 + $0x1a9] sm:$0xff]
  %v1301 = vld [vmem:[#allocation3 + $0x1b1] sm:$0xff]
  %v1302 = vld [vmem:[#allocation3 + $0x1b9] sm:$0xff]
  %v1303 = vld [vmem:[#allocation3 + $0x1c1] sm:$0xff]
  %v1304 = vld [vmem:[#allocation3 + $0x1c9] sm:$0xff]
  %v1305 = vld [vmem:[#allocation3 + $0x1d1] sm:$0xff]
  %v1306 = vld [vmem:[#allocation3 + $0x1d9] sm:$0xff]
  %v1307 = vld [vmem:[#allocation3 + $0x1e1] sm:$0xff]
  %v1308 = vld [vmem:[#allocation3 + $0x1e9] sm:$0xff]
  %v1309 = vld [vmem:[#allocation3 + $0x1f1] sm:$0xff]
  %v1310 = vld [vmem:[#allocation3 + $0x1f9] sm:$0xff]
  %v1311 = vld [vmem:[#allocation3 + $0x201] sm:$0xff]
  %v1312 = vld [vmem:[#allocation3 + $0x209] sm:$0xff]
  %v1313 = vpack.c.bf16 %v1250, %v1249
  %v1314 = vpack.c.bf16 %v1252, %v1251
  %v1315 = vpack.c.bf16 %v1254, %v1253
  %v1316 = vpack.c.bf16 %v1256, %v1255
  %v1317 = vpack.c.bf16 %v1258, %v1257
  %v1318 = vpack.c.bf16 %v1260, %v1259
  %v1319 = vpack.c.bf16 %v1262, %v1261
  %v1320 = vpack.c.bf16 %v1264, %v1263
  %v1321 = vpack.c.bf16 %v1266, %v1265
  %v1322 = vpack.c.bf16 %v1268, %v1267
  %v1323 = vpack.c.bf16 %v1270, %v1269
  %v1324 = vpack.c.bf16 %v1272, %v1271
  %v1325 = vpack.c.bf16 %v1274, %v1273
  %v1326 = vpack.c.bf16 %v1276, %v1275
  %v1327 = vpack.c.bf16 %v1278, %v1277
  %v1328 = vpack.c.bf16 %v1280, %v1279
  %v1329 = vpack.c.bf16 %v1282, %v1281
  %v1330 = vpack.c.bf16 %v1284, %v1283
  %v1331 = vpack.c.bf16 %v1286, %v1285
  %v1332 = vpack.c.bf16 %v1288, %v1287
  %v1333 = vpack.c.bf16 %v1290, %v1289
  %v1334 = vpack.c.bf16 %v1292, %v1291
  %v1335 = vpack.c.bf16 %v1294, %v1293
  %v1336 = vpack.c.bf16 %v1296, %v1295
  %v1337 = vpack.c.bf16 %v1298, %v1297
  %v1338 = vpack.c.bf16 %v1300, %v1299
  %v1339 = vpack.c.bf16 %v1302, %v1301
  %v1340 = vpack.c.bf16 %v1304, %v1303
  %v1341 = vpack.c.bf16 %v1306, %v1305
  %v1342 = vpack.c.bf16 %v1308, %v1307
  %v1343 = vpack.c.bf16 %v1310, %v1309
  %v1344 = vpack.c.bf16 %v1312, %v1311
  %1345 = vst [vmem:[#allocation4 + $0x38] sm:$0xff] %v1313
  %1346 = vst [vmem:[#allocation4 + $0x80] sm:$0xff] %v1314
  %1347 = vst [vmem:[#allocation4 + $0xc8] sm:$0xff] %v1315
  %1348 = vst [vmem:[#allocation4 + $0x110] sm:$0xff] %v1316
  %1349 = vst [vmem:[#allocation4 + $0x158] sm:$0xff] %v1317
  %1350 = vst [vmem:[#allocation4 + $0x1a0] sm:$0xff] %v1318
  %1351 = vst [vmem:[#allocation4 + $0x1e8] sm:$0xff] %v1319
  %1352 = vst [vmem:[#allocation4 + $0x230] sm:$0xff] %v1320
  %1353 = vst [vmem:[#allocation4 + $0x278] sm:$0xff] %v1321
  %1354 = vst [vmem:[#allocation4 + $0x2c0] sm:$0xff] %v1322
  %1355 = vst [vmem:[#allocation4 + $0x308] sm:$0xff] %v1323
  %1356 = vst [vmem:[#allocation4 + $0x350] sm:$0xff] %v1324
  %1357 = vst [vmem:[#allocation4 + $0x398] sm:$0xff] %v1325
  %1358 = vst [vmem:[#allocation4 + $0x3e0] sm:$0xff] %v1326
  %1359 = vst [vmem:[#allocation4 + $0x428] sm:$0xff] %v1327
  %1360 = vst [vmem:[#allocation4 + $0x470] sm:$0xff] %v1328
  %1361 = vst [vmem:[#allocation4 + $0x4b8] sm:$0xff] %v1329
  %1362 = vst [vmem:[#allocation4 + $0x500] sm:$0xff] %v1330
  %1363 = vst [vmem:[#allocation4 + $0x548] sm:$0xff] %v1331
  %1364 = vst [vmem:[#allocation4 + $0x590] sm:$0xff] %v1332
  %1365 = vst [vmem:[#allocation4 + $0x5d8] sm:$0xff] %v1333
  %1366 = vst [vmem:[#allocation4 + $0x620] sm:$0xff] %v1334
  %1367 = vst [vmem:[#allocation4 + $0x668] sm:$0xff] %v1335
  %1368 = vst [vmem:[#allocation4 + $0x6b0] sm:$0xff] %v1336
  %1369 = vst [vmem:[#allocation4 + $0x6f8] sm:$0xff] %v1337
  %1370 = vst [vmem:[#allocation4 + $0x740] sm:$0xff] %v1338
  %1371 = vst [vmem:[#allocation4 + $0x788] sm:$0xff] %v1339
  %1372 = vst [vmem:[#allocation4 + $0x7d0] sm:$0xff] %v1340
  %1373 = vst [vmem:[#allocation4 + $0x818] sm:$0xff] %v1341
  %1374 = vst [vmem:[#allocation4 + $0x860] sm:$0xff] %v1342
  %1375 = vst [vmem:[#allocation4 + $0x8a8] sm:$0xff] %v1343
  %1376 = vst [vmem:[#allocation4 + $0x8f0] sm:$0xff] %v1344
  %v1377 = vld [vmem:[#allocation3 + $0x12] sm:$0xff]
  %v1378 = vld [vmem:[#allocation3 + $0x1a] sm:$0xff]
  %v1379 = vld [vmem:[#allocation3 + $0x22] sm:$0xff]
  %v1380 = vld [vmem:[#allocation3 + $0x2a] sm:$0xff]
  %v1381 = vld [vmem:[#allocation3 + $0x32] sm:$0xff]
  %v1382 = vld [vmem:[#allocation3 + $0x3a] sm:$0xff]
  %v1383 = vld [vmem:[#allocation3 + $0x42] sm:$0xff]
  %v1384 = vld [vmem:[#allocation3 + $0x4a] sm:$0xff]
  %v1385 = vld [vmem:[#allocation3 + $0x52] sm:$0xff]
  %v1386 = vld [vmem:[#allocation3 + $0x5a] sm:$0xff]
  %v1387 = vld [vmem:[#allocation3 + $0x62] sm:$0xff]
  %v1388 = vld [vmem:[#allocation3 + $0x6a] sm:$0xff]
  %v1389 = vld [vmem:[#allocation3 + $0x72] sm:$0xff]
  %v1390 = vld [vmem:[#allocation3 + $0x7a] sm:$0xff]
  %v1391 = vld [vmem:[#allocation3 + $0x82] sm:$0xff]
  %v1392 = vld [vmem:[#allocation3 + $0x8a] sm:$0xff]
  %v1393 = vld [vmem:[#allocation3 + $0x92] sm:$0xff]
  %v1394 = vld [vmem:[#allocation3 + $0x9a] sm:$0xff]
  %v1395 = vld [vmem:[#allocation3 + $0xa2] sm:$0xff]
  %v1396 = vld [vmem:[#allocation3 + $0xaa] sm:$0xff]
  %v1397 = vld [vmem:[#allocation3 + $0xb2] sm:$0xff]
  %v1398 = vld [vmem:[#allocation3 + $0xba] sm:$0xff]
  %v1399 = vld [vmem:[#allocation3 + $0xc2] sm:$0xff]
  %v1400 = vld [vmem:[#allocation3 + $0xca] sm:$0xff]
  %v1401 = vld [vmem:[#allocation3 + $0xd2] sm:$0xff]
  %v1402 = vld [vmem:[#allocation3 + $0xda] sm:$0xff]
  %v1403 = vld [vmem:[#allocation3 + $0xe2] sm:$0xff]
  %v1404 = vld [vmem:[#allocation3 + $0xea] sm:$0xff]
  %v1405 = vld [vmem:[#allocation3 + $0xf2] sm:$0xff]
  %v1406 = vld [vmem:[#allocation3 + $0xfa] sm:$0xff]
  %v1407 = vld [vmem:[#allocation3 + $0x102] sm:$0xff]
  %v1408 = vld [vmem:[#allocation3 + $0x10a] sm:$0xff]
  %v1409 = vld [vmem:[#allocation3 + $0x112] sm:$0xff]
  %v1410 = vld [vmem:[#allocation3 + $0x11a] sm:$0xff]
  %v1411 = vld [vmem:[#allocation3 + $0x122] sm:$0xff]
  %v1412 = vld [vmem:[#allocation3 + $0x12a] sm:$0xff]
  %v1413 = vld [vmem:[#allocation3 + $0x132] sm:$0xff]
  %v1414 = vld [vmem:[#allocation3 + $0x13a] sm:$0xff]
  %v1415 = vld [vmem:[#allocation3 + $0x142] sm:$0xff]
  %v1416 = vld [vmem:[#allocation3 + $0x14a] sm:$0xff]
  %v1417 = vld [vmem:[#allocation3 + $0x152] sm:$0xff]
  %v1418 = vld [vmem:[#allocation3 + $0x15a] sm:$0xff]
  %v1419 = vld [vmem:[#allocation3 + $0x162] sm:$0xff]
  %v1420 = vld [vmem:[#allocation3 + $0x16a] sm:$0xff]
  %v1421 = vld [vmem:[#allocation3 + $0x172] sm:$0xff]
  %v1422 = vld [vmem:[#allocation3 + $0x17a] sm:$0xff]
  %v1423 = vld [vmem:[#allocation3 + $0x182] sm:$0xff]
  %v1424 = vld [vmem:[#allocation3 + $0x18a] sm:$0xff]
  %v1425 = vld [vmem:[#allocation3 + $0x192] sm:$0xff]
  %v1426 = vld [vmem:[#allocation3 + $0x19a] sm:$0xff]
  %v1427 = vld [vmem:[#allocation3 + $0x1a2] sm:$0xff]
  %v1428 = vld [vmem:[#allocation3 + $0x1aa] sm:$0xff]
  %v1429 = vld [vmem:[#allocation3 + $0x1b2] sm:$0xff]
  %v1430 = vld [vmem:[#allocation3 + $0x1ba] sm:$0xff]
  %v1431 = vld [vmem:[#allocation3 + $0x1c2] sm:$0xff]
  %v1432 = vld [vmem:[#allocation3 + $0x1ca] sm:$0xff]
  %v1433 = vld [vmem:[#allocation3 + $0x1d2] sm:$0xff]
  %v1434 = vld [vmem:[#allocation3 + $0x1da] sm:$0xff]
  %v1435 = vld [vmem:[#allocation3 + $0x1e2] sm:$0xff]
  %v1436 = vld [vmem:[#allocation3 + $0x1ea] sm:$0xff]
  %v1437 = vld [vmem:[#allocation3 + $0x1f2] sm:$0xff]
  %v1438 = vld [vmem:[#allocation3 + $0x1fa] sm:$0xff]
  %v1439 = vld [vmem:[#allocation3 + $0x202] sm:$0xff]
  %v1440 = vld [vmem:[#allocation3 + $0x20a] sm:$0xff]
  %v1441 = vpack.c.bf16 %v1378, %v1377
  %v1442 = vpack.c.bf16 %v1380, %v1379
  %v1443 = vpack.c.bf16 %v1382, %v1381
  %v1444 = vpack.c.bf16 %v1384, %v1383
  %v1445 = vpack.c.bf16 %v1386, %v1385
  %v1446 = vpack.c.bf16 %v1388, %v1387
  %v1447 = vpack.c.bf16 %v1390, %v1389
  %v1448 = vpack.c.bf16 %v1392, %v1391
  %v1449 = vpack.c.bf16 %v1394, %v1393
  %v1450 = vpack.c.bf16 %v1396, %v1395
  %v1451 = vpack.c.bf16 %v1398, %v1397
  %v1452 = vpack.c.bf16 %v1400, %v1399
  %v1453 = vpack.c.bf16 %v1402, %v1401
  %v1454 = vpack.c.bf16 %v1404, %v1403
  %v1455 = vpack.c.bf16 %v1406, %v1405
  %v1456 = vpack.c.bf16 %v1408, %v1407
  %v1457 = vpack.c.bf16 %v1410, %v1409
  %v1458 = vpack.c.bf16 %v1412, %v1411
  %v1459 = vpack.c.bf16 %v1414, %v1413
  %v1460 = vpack.c.bf16 %v1416, %v1415
  %v1461 = vpack.c.bf16 %v1418, %v1417
  %v1462 = vpack.c.bf16 %v1420, %v1419
  %v1463 = vpack.c.bf16 %v1422, %v1421
  %v1464 = vpack.c.bf16 %v1424, %v1423
  %v1465 = vpack.c.bf16 %v1426, %v1425
  %v1466 = vpack.c.bf16 %v1428, %v1427
  %v1467 = vpack.c.bf16 %v1430, %v1429
  %v1468 = vpack.c.bf16 %v1432, %v1431
  %v1469 = vpack.c.bf16 %v1434, %v1433
  %v1470 = vpack.c.bf16 %v1436, %v1435
  %v1471 = vpack.c.bf16 %v1438, %v1437
  %v1472 = vpack.c.bf16 %v1440, %v1439
  %1473 = vst [vmem:[#allocation4 + $0x40] sm:$0xff] %v1441
  %1474 = vst [vmem:[#allocation4 + $0x88] sm:$0xff] %v1442
  %1475 = vst [vmem:[#allocation4 + $0xd0] sm:$0xff] %v1443
  %1476 = vst [vmem:[#allocation4 + $0x118] sm:$0xff] %v1444
  %1477 = vst [vmem:[#allocation4 + $0x160] sm:$0xff] %v1445
  %1478 = vst [vmem:[#allocation4 + $0x1a8] sm:$0xff] %v1446
  %1479 = vst [vmem:[#allocation4 + $0x1f0] sm:$0xff] %v1447
  %1480 = vst [vmem:[#allocation4 + $0x238] sm:$0xff] %v1448
  %1481 = vst [vmem:[#allocation4 + $0x280] sm:$0xff] %v1449
  %1482 = vst [vmem:[#allocation4 + $0x2c8] sm:$0xff] %v1450
  %1483 = vst [vmem:[#allocation4 + $0x310] sm:$0xff] %v1451
  %1484 = vst [vmem:[#allocation4 + $0x358] sm:$0xff] %v1452
  %1485 = vst [vmem:[#allocation4 + $0x3a0] sm:$0xff] %v1453
  %1486 = vst [vmem:[#allocation4 + $0x3e8] sm:$0xff] %v1454
  %1487 = vst [vmem:[#allocation4 + $0x430] sm:$0xff] %v1455
  %1488 = vst [vmem:[#allocation4 + $0x478] sm:$0xff] %v1456
  %1489 = vst [vmem:[#allocation4 + $0x4c0] sm:$0xff] %v1457
  %1490 = vst [vmem:[#allocation4 + $0x508] sm:$0xff] %v1458
  %1491 = vst [vmem:[#allocation4 + $0x550] sm:$0xff] %v1459
  %1492 = vst [vmem:[#allocation4 + $0x598] sm:$0xff] %v1460
  %1493 = vst [vmem:[#allocation4 + $0x5e0] sm:$0xff] %v1461
  %1494 = vst [vmem:[#allocation4 + $0x628] sm:$0xff] %v1462
  %1495 = vst [vmem:[#allocation4 + $0x670] sm:$0xff] %v1463
  %1496 = vst [vmem:[#allocation4 + $0x6b8] sm:$0xff] %v1464
  %1497 = vst [vmem:[#allocation4 + $0x700] sm:$0xff] %v1465
  %1498 = vst [vmem:[#allocation4 + $0x748] sm:$0xff] %v1466
  %1499 = vst [vmem:[#allocation4 + $0x790] sm:$0xff] %v1467
  %1500 = vst [vmem:[#allocation4 + $0x7d8] sm:$0xff] %v1468
  %1501 = vst [vmem:[#allocation4 + $0x820] sm:$0xff] %v1469
  %1502 = vst [vmem:[#allocation4 + $0x868] sm:$0xff] %v1470
  %1503 = vst [vmem:[#allocation4 + $0x8b0] sm:$0xff] %v1471
  %1504 = vst [vmem:[#allocation4 + $0x8f8] sm:$0xff] %v1472
  %v1505 = vld [vmem:[#allocation2] sm:$0xff]
  %v1506 = vld [vmem:[#allocation2 + $0x8] sm:$0xff]
  %v1507 = vld [vmem:[#allocation2 + $0x10] sm:$0xff]
  %v1508 = vld [vmem:[#allocation2 + $0x18] sm:$0xff]
  %v1509 = vld [vmem:[#allocation2 + $0x20] sm:$0xff]
  %v1510 = vld [vmem:[#allocation2 + $0x28] sm:$0xff]
  %v1511 = vld [vmem:[#allocation2 + $0x30] sm:$0xff]
  %v1512 = vld [vmem:[#allocation2 + $0x38] sm:$0xff]
  %v1513 = vld [vmem:[#allocation2 + $0x40] sm:$0xff]
  %v1514 = vld [vmem:[#allocation2 + $0x48] sm:$0xff]
  %v1515 = vld [vmem:[#allocation2 + $0x50] sm:$0xff]
  %v1516 = vld [vmem:[#allocation2 + $0x58] sm:$0xff]
  %v1517 = vld [vmem:[#allocation2 + $0x60] sm:$0xff]
  %v1518 = vld [vmem:[#allocation2 + $0x68] sm:$0xff]
  %v1519 = vld [vmem:[#allocation2 + $0x70] sm:$0xff]
  %v1520 = vld [vmem:[#allocation2 + $0x78] sm:$0xff]
  %v1521 = vld [vmem:[#allocation2 + $0x80] sm:$0xff]
  %v1522 = vld [vmem:[#allocation2 + $0x88] sm:$0xff]
  %v1523 = vld [vmem:[#allocation2 + $0x90] sm:$0xff]
  %v1524 = vld [vmem:[#allocation2 + $0x98] sm:$0xff]
  %v1525 = vld [vmem:[#allocation2 + $0xa0] sm:$0xff]
  %v1526 = vld [vmem:[#allocation2 + $0xa8] sm:$0xff]
  %v1527 = vld [vmem:[#allocation2 + $0xb0] sm:$0xff]
  %v1528 = vld [vmem:[#allocation2 + $0xb8] sm:$0xff]
  %v1529 = vld [vmem:[#allocation2 + $0xc0] sm:$0xff]
  %v1530 = vld [vmem:[#allocation2 + $0xc8] sm:$0xff]
  %v1531 = vld [vmem:[#allocation2 + $0xd0] sm:$0xff]
  %v1532 = vld [vmem:[#allocation2 + $0xd8] sm:$0xff]
  %v1533 = vld [vmem:[#allocation2 + $0xe0] sm:$0xff]
  %v1534 = vld [vmem:[#allocation2 + $0xe8] sm:$0xff]
  %v1535 = vld [vmem:[#allocation2 + $0xf0] sm:$0xff]
  %v1536 = vld [vmem:[#allocation2 + $0xf8] sm:$0xff]
  %v1537 = vld [vmem:[#allocation2 + $0x100] sm:$0xff]
  %v1538 = vld [vmem:[#allocation2 + $0x108] sm:$0xff]
  %v1539 = vld [vmem:[#allocation2 + $0x110] sm:$0xff]
  %v1540 = vld [vmem:[#allocation2 + $0x118] sm:$0xff]
  %v1541 = vld [vmem:[#allocation2 + $0x120] sm:$0xff]
  %v1542 = vld [vmem:[#allocation2 + $0x128] sm:$0xff]
  %v1543 = vld [vmem:[#allocation2 + $0x130] sm:$0xff]
  %v1544 = vld [vmem:[#allocation2 + $0x138] sm:$0xff]
  %v1545 = vld [vmem:[#allocation2 + $0x140] sm:$0xff]
  %v1546 = vld [vmem:[#allocation2 + $0x148] sm:$0xff]
  %v1547 = vld [vmem:[#allocation2 + $0x150] sm:$0xff]
  %v1548 = vld [vmem:[#allocation2 + $0x158] sm:$0xff]
  %v1549 = vld [vmem:[#allocation2 + $0x160] sm:$0xff]
  %v1550 = vld [vmem:[#allocation2 + $0x168] sm:$0xff]
  %v1551 = vld [vmem:[#allocation2 + $0x170] sm:$0xff]
  %v1552 = vld [vmem:[#allocation2 + $0x178] sm:$0xff]
  %v1553 = vld [vmem:[#allocation2 + $0x180] sm:$0xff]
  %v1554 = vld [vmem:[#allocation2 + $0x188] sm:$0xff]
  %v1555 = vld [vmem:[#allocation2 + $0x190] sm:$0xff]
  %v1556 = vld [vmem:[#allocation2 + $0x198] sm:$0xff]
  %v1557 = vld [vmem:[#allocation2 + $0x1a0] sm:$0xff]
  %v1558 = vld [vmem:[#allocation2 + $0x1a8] sm:$0xff]
  %v1559 = vld [vmem:[#allocation2 + $0x1b0] sm:$0xff]
  %v1560 = vld [vmem:[#allocation2 + $0x1b8] sm:$0xff]
  %v1561 = vld [vmem:[#allocation2 + $0x1c0] sm:$0xff]
  %v1562 = vld [vmem:[#allocation2 + $0x1c8] sm:$0xff]
  %v1563 = vld [vmem:[#allocation2 + $0x1d0] sm:$0xff]
  %v1564 = vld [vmem:[#allocation2 + $0x1d8] sm:$0xff]
  %v1565 = vld [vmem:[#allocation2 + $0x1e0] sm:$0xff]
  %v1566 = vld [vmem:[#allocation2 + $0x1e8] sm:$0xff]
  %v1567 = vld [vmem:[#allocation2 + $0x1f0] sm:$0xff]
  %v1568 = vld [vmem:[#allocation2 + $0x1f8] sm:$0xff]
  %v1569 = vld [vmem:[#allocation4] sm:$0xff]
  %v1570 = vld [vmem:[#allocation4 + $0x8] sm:$0xff]
  %v1571 = vld [vmem:[#allocation4 + $0x10] sm:$0xff]
  %v1572 = vld [vmem:[#allocation4 + $0x18] sm:$0xff]
  %v1573 = vld [vmem:[#allocation4 + $0x20] sm:$0xff]
  %v1574 = vld [vmem:[#allocation4 + $0x28] sm:$0xff]
  %v1575 = vld [vmem:[#allocation4 + $0x30] sm:$0xff]
  %v1576 = vld [vmem:[#allocation4 + $0x38] sm:$0xff]
  %v1577 = vld [vmem:[#allocation4 + $0x40] sm:$0xff]
  %v1578 = vld [vmem:[#allocation4 + $0x48] sm:$0xff]
  %v1579 = vld [vmem:[#allocation4 + $0x50] sm:$0xff]
  %v1580 = vld [vmem:[#allocation4 + $0x58] sm:$0xff]
  %v1581 = vld [vmem:[#allocation4 + $0x60] sm:$0xff]
  %v1582 = vld [vmem:[#allocation4 + $0x68] sm:$0xff]
  %v1583 = vld [vmem:[#allocation4 + $0x70] sm:$0xff]
  %v1584 = vld [vmem:[#allocation4 + $0x78] sm:$0xff]
  %v1585 = vld [vmem:[#allocation4 + $0x80] sm:$0xff]
  %v1586 = vld [vmem:[#allocation4 + $0x88] sm:$0xff]
  %v1587 = vld [vmem:[#allocation4 + $0x90] sm:$0xff]
  %v1588 = vld [vmem:[#allocation4 + $0x98] sm:$0xff]
  %v1589 = vld [vmem:[#allocation4 + $0xa0] sm:$0xff]
  %v1590 = vld [vmem:[#allocation4 + $0xa8] sm:$0xff]
  %v1591 = vld [vmem:[#allocation4 + $0xb0] sm:$0xff]
  %v1592 = vld [vmem:[#allocation4 + $0xb8] sm:$0xff]
  %v1593 = vld [vmem:[#allocation4 + $0xc0] sm:$0xff]
  %v1594 = vld [vmem:[#allocation4 + $0xc8] sm:$0xff]
  %v1595 = vld [vmem:[#allocation4 + $0xd0] sm:$0xff]
  %v1596 = vld [vmem:[#allocation4 + $0xd8] sm:$0xff]
  %v1597 = vld [vmem:[#allocation4 + $0xe0] sm:$0xff]
  %v1598 = vld [vmem:[#allocation4 + $0xe8] sm:$0xff]
  %v1599 = vld [vmem:[#allocation4 + $0xf0] sm:$0xff]
  %v1600 = vld [vmem:[#allocation4 + $0xf8] sm:$0xff]
  %v1601 = vld [vmem:[#allocation4 + $0x100] sm:$0xff]
  %v1602 = vld [vmem:[#allocation4 + $0x108] sm:$0xff]
  %v1603 = vld [vmem:[#allocation4 + $0x110] sm:$0xff]
  %v1604 = vld [vmem:[#allocation4 + $0x118] sm:$0xff]
  %v1605 = vld [vmem:[#allocation4 + $0x120] sm:$0xff]
  %v1606 = vld [vmem:[#allocation4 + $0x128] sm:$0xff]
  %v1607 = vld [vmem:[#allocation4 + $0x130] sm:$0xff]
  %v1608 = vld [vmem:[#allocation4 + $0x138] sm:$0xff]
  %v1609 = vld [vmem:[#allocation4 + $0x140] sm:$0xff]
  %v1610 = vld [vmem:[#allocation4 + $0x148] sm:$0xff]
  %v1611 = vld [vmem:[#allocation4 + $0x150] sm:$0xff]
  %v1612 = vld [vmem:[#allocation4 + $0x158] sm:$0xff]
  %v1613 = vld [vmem:[#allocation4 + $0x160] sm:$0xff]
  %v1614 = vld [vmem:[#allocation4 + $0x168] sm:$0xff]
  %v1615 = vld [vmem:[#allocation4 + $0x170] sm:$0xff]
  %v1616 = vld [vmem:[#allocation4 + $0x178] sm:$0xff]
  %v1617 = vld [vmem:[#allocation4 + $0x180] sm:$0xff]
  %v1618 = vld [vmem:[#allocation4 + $0x188] sm:$0xff]
  %v1619 = vld [vmem:[#allocation4 + $0x190] sm:$0xff]
  %v1620 = vld [vmem:[#allocation4 + $0x198] sm:$0xff]
  %v1621 = vld [vmem:[#allocation4 + $0x1a0] sm:$0xff]
  %v1622 = vld [vmem:[#allocation4 + $0x1a8] sm:$0xff]
  %v1623 = vld [vmem:[#allocation4 + $0x1b0] sm:$0xff]
  %v1624 = vld [vmem:[#allocation4 + $0x1b8] sm:$0xff]
  %v1625 = vld [vmem:[#allocation4 + $0x1c0] sm:$0xff]
  %v1626 = vld [vmem:[#allocation4 + $0x1c8] sm:$0xff]
  %v1627 = vld [vmem:[#allocation4 + $0x1d0] sm:$0xff]
  %v1628 = vld [vmem:[#allocation4 + $0x1d8] sm:$0xff]
  %v1629 = vld [vmem:[#allocation4 + $0x1e0] sm:$0xff]
  %v1630 = vld [vmem:[#allocation4 + $0x1e8] sm:$0xff]
  %v1631 = vld [vmem:[#allocation4 + $0x1f0] sm:$0xff]
  %v1632 = vld [vmem:[#allocation4 + $0x1f8] sm:$0xff]
  %v1633 = vld [vmem:[#allocation4 + $0x200] sm:$0xff]
  %v1634 = vld [vmem:[#allocation4 + $0x208] sm:$0xff]
  %v1635 = vld [vmem:[#allocation4 + $0x210] sm:$0xff]
  %v1636 = vld [vmem:[#allocation4 + $0x218] sm:$0xff]
  %v1637 = vld [vmem:[#allocation4 + $0x220] sm:$0xff]
  %v1638 = vld [vmem:[#allocation4 + $0x228] sm:$0xff]
  %v1639 = vld [vmem:[#allocation4 + $0x230] sm:$0xff]
  %v1640 = vld [vmem:[#allocation4 + $0x238] sm:$0xff]
  %v1641 = vld [vmem:[#allocation4 + $0x240] sm:$0xff]
  %v1642 = vld [vmem:[#allocation4 + $0x248] sm:$0xff]
  %v1643 = vld [vmem:[#allocation4 + $0x250] sm:$0xff]
  %v1644 = vld [vmem:[#allocation4 + $0x258] sm:$0xff]
  %v1645 = vld [vmem:[#allocation4 + $0x260] sm:$0xff]
  %v1646 = vld [vmem:[#allocation4 + $0x268] sm:$0xff]
  %v1647 = vld [vmem:[#allocation4 + $0x270] sm:$0xff]
  %v1648 = vld [vmem:[#allocation4 + $0x278] sm:$0xff]
  %v1649 = vld [vmem:[#allocation4 + $0x280] sm:$0xff]
  %v1650 = vld [vmem:[#allocation4 + $0x288] sm:$0xff]
  %v1651 = vld [vmem:[#allocation4 + $0x290] sm:$0xff]
  %v1652 = vld [vmem:[#allocation4 + $0x298] sm:$0xff]
  %v1653 = vld [vmem:[#allocation4 + $0x2a0] sm:$0xff]
  %v1654 = vld [vmem:[#allocation4 + $0x2a8] sm:$0xff]
  %v1655 = vld [vmem:[#allocation4 + $0x2b0] sm:$0xff]
  %v1656 = vld [vmem:[#allocation4 + $0x2b8] sm:$0xff]
  %v1657 = vld [vmem:[#allocation4 + $0x2c0] sm:$0xff]
  %v1658 = vld [vmem:[#allocation4 + $0x2c8] sm:$0xff]
  %v1659 = vld [vmem:[#allocation4 + $0x2d0] sm:$0xff]
  %v1660 = vld [vmem:[#allocation4 + $0x2d8] sm:$0xff]
  %v1661 = vld [vmem:[#allocation4 + $0x2e0] sm:$0xff]
  %v1662 = vld [vmem:[#allocation4 + $0x2e8] sm:$0xff]
  %v1663 = vld [vmem:[#allocation4 + $0x2f0] sm:$0xff]
  %v1664 = vld [vmem:[#allocation4 + $0x2f8] sm:$0xff]
  %v1665 = vld [vmem:[#allocation4 + $0x300] sm:$0xff]
  %v1666 = vld [vmem:[#allocation4 + $0x308] sm:$0xff]
  %v1667 = vld [vmem:[#allocation4 + $0x310] sm:$0xff]
  %v1668 = vld [vmem:[#allocation4 + $0x318] sm:$0xff]
  %v1669 = vld [vmem:[#allocation4 + $0x320] sm:$0xff]
  %v1670 = vld [vmem:[#allocation4 + $0x328] sm:$0xff]
  %v1671 = vld [vmem:[#allocation4 + $0x330] sm:$0xff]
  %v1672 = vld [vmem:[#allocation4 + $0x338] sm:$0xff]
  %v1673 = vld [vmem:[#allocation4 + $0x340] sm:$0xff]
  %v1674 = vld [vmem:[#allocation4 + $0x348] sm:$0xff]
  %v1675 = vld [vmem:[#allocation4 + $0x350] sm:$0xff]
  %v1676 = vld [vmem:[#allocation4 + $0x358] sm:$0xff]
  %v1677 = vld [vmem:[#allocation4 + $0x360] sm:$0xff]
  %v1678 = vld [vmem:[#allocation4 + $0x368] sm:$0xff]
  %v1679 = vld [vmem:[#allocation4 + $0x370] sm:$0xff]
  %v1680 = vld [vmem:[#allocation4 + $0x378] sm:$0xff]
  %v1681 = vld [vmem:[#allocation4 + $0x380] sm:$0xff]
  %v1682 = vld [vmem:[#allocation4 + $0x388] sm:$0xff]
  %v1683 = vld [vmem:[#allocation4 + $0x390] sm:$0xff]
  %v1684 = vld [vmem:[#allocation4 + $0x398] sm:$0xff]
  %v1685 = vld [vmem:[#allocation4 + $0x3a0] sm:$0xff]
  %v1686 = vld [vmem:[#allocation4 + $0x3a8] sm:$0xff]
  %v1687 = vld [vmem:[#allocation4 + $0x3b0] sm:$0xff]
  %v1688 = vld [vmem:[#allocation4 + $0x3b8] sm:$0xff]
  %v1689 = vld [vmem:[#allocation4 + $0x3c0] sm:$0xff]
  %v1690 = vld [vmem:[#allocation4 + $0x3c8] sm:$0xff]
  %v1691 = vld [vmem:[#allocation4 + $0x3d0] sm:$0xff]
  %v1692 = vld [vmem:[#allocation4 + $0x3d8] sm:$0xff]
  %v1693 = vld [vmem:[#allocation4 + $0x3e0] sm:$0xff]
  %v1694 = vld [vmem:[#allocation4 + $0x3e8] sm:$0xff]
  %v1695 = vld [vmem:[#allocation4 + $0x3f0] sm:$0xff]
  %v1696 = vld [vmem:[#allocation4 + $0x3f8] sm:$0xff]
  %v1697 = vld [vmem:[#allocation4 + $0x400] sm:$0xff]
  %v1698 = vld [vmem:[#allocation4 + $0x408] sm:$0xff]
  %v1699 = vld [vmem:[#allocation4 + $0x410] sm:$0xff]
  %v1700 = vld [vmem:[#allocation4 + $0x418] sm:$0xff]
  %v1701 = vld [vmem:[#allocation4 + $0x420] sm:$0xff]
  %v1702 = vld [vmem:[#allocation4 + $0x428] sm:$0xff]
  %v1703 = vld [vmem:[#allocation4 + $0x430] sm:$0xff]
  %v1704 = vld [vmem:[#allocation4 + $0x438] sm:$0xff]
  %v1705 = vld [vmem:[#allocation4 + $0x440] sm:$0xff]
  %v1706 = vld [vmem:[#allocation4 + $0x448] sm:$0xff]
  %v1707 = vld [vmem:[#allocation4 + $0x450] sm:$0xff]
  %v1708 = vld [vmem:[#allocation4 + $0x458] sm:$0xff]
  %v1709 = vld [vmem:[#allocation4 + $0x460] sm:$0xff]
  %v1710 = vld [vmem:[#allocation4 + $0x468] sm:$0xff]
  %v1711 = vld [vmem:[#allocation4 + $0x470] sm:$0xff]
  %v1712 = vld [vmem:[#allocation4 + $0x478] sm:$0xff]
  %v1713 = vld [vmem:[#allocation4 + $0x480] sm:$0xff]
  %v1714 = vld [vmem:[#allocation4 + $0x488] sm:$0xff]
  %v1715 = vld [vmem:[#allocation4 + $0x490] sm:$0xff]
  %v1716 = vld [vmem:[#allocation4 + $0x498] sm:$0xff]
  %v1717 = vld [vmem:[#allocation4 + $0x4a0] sm:$0xff]
  %v1718 = vld [vmem:[#allocation4 + $0x4a8] sm:$0xff]
  %v1719 = vld [vmem:[#allocation4 + $0x4b0] sm:$0xff]
  %v1720 = vld [vmem:[#allocation4 + $0x4b8] sm:$0xff]
  %v1721 = vld [vmem:[#allocation4 + $0x4c0] sm:$0xff]
  %v1722 = vld [vmem:[#allocation4 + $0x4c8] sm:$0xff]
  %v1723 = vld [vmem:[#allocation4 + $0x4d0] sm:$0xff]
  %v1724 = vld [vmem:[#allocation4 + $0x4d8] sm:$0xff]
  %v1725 = vld [vmem:[#allocation4 + $0x4e0] sm:$0xff]
  %v1726 = vld [vmem:[#allocation4 + $0x4e8] sm:$0xff]
  %v1727 = vld [vmem:[#allocation4 + $0x4f0] sm:$0xff]
  %v1728 = vld [vmem:[#allocation4 + $0x4f8] sm:$0xff]
  %v1729 = vld [vmem:[#allocation4 + $0x500] sm:$0xff]
  %v1730 = vld [vmem:[#allocation4 + $0x508] sm:$0xff]
  %v1731 = vld [vmem:[#allocation4 + $0x510] sm:$0xff]
  %v1732 = vld [vmem:[#allocation4 + $0x518] sm:$0xff]
  %v1733 = vld [vmem:[#allocation4 + $0x520] sm:$0xff]
  %v1734 = vld [vmem:[#allocation4 + $0x528] sm:$0xff]
  %v1735 = vld [vmem:[#allocation4 + $0x530] sm:$0xff]
  %v1736 = vld [vmem:[#allocation4 + $0x538] sm:$0xff]
  %v1737 = vld [vmem:[#allocation4 + $0x540] sm:$0xff]
  %v1738 = vld [vmem:[#allocation4 + $0x548] sm:$0xff]
  %v1739 = vld [vmem:[#allocation4 + $0x550] sm:$0xff]
  %v1740 = vld [vmem:[#allocation4 + $0x558] sm:$0xff]
  %v1741 = vld [vmem:[#allocation4 + $0x560] sm:$0xff]
  %v1742 = vld [vmem:[#allocation4 + $0x568] sm:$0xff]
  %v1743 = vld [vmem:[#allocation4 + $0x570] sm:$0xff]
  %v1744 = vld [vmem:[#allocation4 + $0x578] sm:$0xff]
  %v1745 = vld [vmem:[#allocation4 + $0x580] sm:$0xff]
  %v1746 = vld [vmem:[#allocation4 + $0x588] sm:$0xff]
  %v1747 = vld [vmem:[#allocation4 + $0x590] sm:$0xff]
  %v1748 = vld [vmem:[#allocation4 + $0x598] sm:$0xff]
  %v1749 = vld [vmem:[#allocation4 + $0x5a0] sm:$0xff]
  %v1750 = vld [vmem:[#allocation4 + $0x5a8] sm:$0xff]
  %v1751 = vld [vmem:[#allocation4 + $0x5b0] sm:$0xff]
  %v1752 = vld [vmem:[#allocation4 + $0x5b8] sm:$0xff]
  %v1753 = vld [vmem:[#allocation4 + $0x5c0] sm:$0xff]
  %v1754 = vld [vmem:[#allocation4 + $0x5c8] sm:$0xff]
  %v1755 = vld [vmem:[#allocation4 + $0x5d0] sm:$0xff]
  %v1756 = vld [vmem:[#allocation4 + $0x5d8] sm:$0xff]
  %v1757 = vld [vmem:[#allocation4 + $0x5e0] sm:$0xff]
  %v1758 = vld [vmem:[#allocation4 + $0x5e8] sm:$0xff]
  %v1759 = vld [vmem:[#allocation4 + $0x5f0] sm:$0xff]
  %v1760 = vld [vmem:[#allocation4 + $0x5f8] sm:$0xff]
  %v1761 = vld [vmem:[#allocation4 + $0x600] sm:$0xff]
  %v1762 = vld [vmem:[#allocation4 + $0x608] sm:$0xff]
  %v1763 = vld [vmem:[#allocation4 + $0x610] sm:$0xff]
  %v1764 = vld [vmem:[#allocation4 + $0x618] sm:$0xff]
  %v1765 = vld [vmem:[#allocation4 + $0x620] sm:$0xff]
  %v1766 = vld [vmem:[#allocation4 + $0x628] sm:$0xff]
  %v1767 = vld [vmem:[#allocation4 + $0x630] sm:$0xff]
  %v1768 = vld [vmem:[#allocation4 + $0x638] sm:$0xff]
  %v1769 = vld [vmem:[#allocation4 + $0x640] sm:$0xff]
  %v1770 = vld [vmem:[#allocation4 + $0x648] sm:$0xff]
  %v1771 = vld [vmem:[#allocation4 + $0x650] sm:$0xff]
  %v1772 = vld [vmem:[#allocation4 + $0x658] sm:$0xff]
  %v1773 = vld [vmem:[#allocation4 + $0x660] sm:$0xff]
  %v1774 = vld [vmem:[#allocation4 + $0x668] sm:$0xff]
  %v1775 = vld [vmem:[#allocation4 + $0x670] sm:$0xff]
  %v1776 = vld [vmem:[#allocation4 + $0x678] sm:$0xff]
  %v1777 = vld [vmem:[#allocation4 + $0x680] sm:$0xff]
  %v1778 = vld [vmem:[#allocation4 + $0x688] sm:$0xff]
  %v1779 = vld [vmem:[#allocation4 + $0x690] sm:$0xff]
  %v1780 = vld [vmem:[#allocation4 + $0x698] sm:$0xff]
  %v1781 = vld [vmem:[#allocation4 + $0x6a0] sm:$0xff]
  %v1782 = vld [vmem:[#allocation4 + $0x6a8] sm:$0xff]
  %v1783 = vld [vmem:[#allocation4 + $0x6b0] sm:$0xff]
  %v1784 = vld [vmem:[#allocation4 + $0x6b8] sm:$0xff]
  %v1785 = vld [vmem:[#allocation4 + $0x6c0] sm:$0xff]
  %v1786 = vld [vmem:[#allocation4 + $0x6c8] sm:$0xff]
  %v1787 = vld [vmem:[#allocation4 + $0x6d0] sm:$0xff]
  %v1788 = vld [vmem:[#allocation4 + $0x6d8] sm:$0xff]
  %v1789 = vld [vmem:[#allocation4 + $0x6e0] sm:$0xff]
  %v1790 = vld [vmem:[#allocation4 + $0x6e8] sm:$0xff]
  %v1791 = vld [vmem:[#allocation4 + $0x6f0] sm:$0xff]
  %v1792 = vld [vmem:[#allocation4 + $0x6f8] sm:$0xff]
  %v1793 = vld [vmem:[#allocation4 + $0x700] sm:$0xff]
  %v1794 = vld [vmem:[#allocation4 + $0x708] sm:$0xff]
  %v1795 = vld [vmem:[#allocation4 + $0x710] sm:$0xff]
  %v1796 = vld [vmem:[#allocation4 + $0x718] sm:$0xff]
  %v1797 = vld [vmem:[#allocation4 + $0x720] sm:$0xff]
  %v1798 = vld [vmem:[#allocation4 + $0x728] sm:$0xff]
  %v1799 = vld [vmem:[#allocation4 + $0x730] sm:$0xff]
  %v1800 = vld [vmem:[#allocation4 + $0x738] sm:$0xff]
  %v1801 = vld [vmem:[#allocation4 + $0x740] sm:$0xff]
  %v1802 = vld [vmem:[#allocation4 + $0x748] sm:$0xff]
  %v1803 = vld [vmem:[#allocation4 + $0x750] sm:$0xff]
  %v1804 = vld [vmem:[#allocation4 + $0x758] sm:$0xff]
  %v1805 = vld [vmem:[#allocation4 + $0x760] sm:$0xff]
  %v1806 = vld [vmem:[#allocation4 + $0x768] sm:$0xff]
  %v1807 = vld [vmem:[#allocation4 + $0x770] sm:$0xff]
  %v1808 = vld [vmem:[#allocation4 + $0x778] sm:$0xff]
  %v1809 = vld [vmem:[#allocation4 + $0x780] sm:$0xff]
  %v1810 = vld [vmem:[#allocation4 + $0x788] sm:$0xff]
  %v1811 = vld [vmem:[#allocation4 + $0x790] sm:$0xff]
  %v1812 = vld [vmem:[#allocation4 + $0x798] sm:$0xff]
  %v1813 = vld [vmem:[#allocation4 + $0x7a0] sm:$0xff]
  %v1814 = vld [vmem:[#allocation4 + $0x7a8] sm:$0xff]
  %v1815 = vld [vmem:[#allocation4 + $0x7b0] sm:$0xff]
  %v1816 = vld [vmem:[#allocation4 + $0x7b8] sm:$0xff]
  %v1817 = vld [vmem:[#allocation4 + $0x7c0] sm:$0xff]
  %v1818 = vld [vmem:[#allocation4 + $0x7c8] sm:$0xff]
  %v1819 = vld [vmem:[#allocation4 + $0x7d0] sm:$0xff]
  %v1820 = vld [vmem:[#allocation4 + $0x7d8] sm:$0xff]
  %v1821 = vld [vmem:[#allocation4 + $0x7e0] sm:$0xff]
  %v1822 = vld [vmem:[#allocation4 + $0x7e8] sm:$0xff]
  %v1823 = vld [vmem:[#allocation4 + $0x7f0] sm:$0xff]
  %v1824 = vld [vmem:[#allocation4 + $0x7f8] sm:$0xff]
  %v1825 = vld [vmem:[#allocation4 + $0x800] sm:$0xff]
  %v1826 = vld [vmem:[#allocation4 + $0x808] sm:$0xff]
  %v1827 = vld [vmem:[#allocation4 + $0x810] sm:$0xff]
  %v1828 = vld [vmem:[#allocation4 + $0x818] sm:$0xff]
  %v1829 = vld [vmem:[#allocation4 + $0x820] sm:$0xff]
  %v1830 = vld [vmem:[#allocation4 + $0x828] sm:$0xff]
  %v1831 = vld [vmem:[#allocation4 + $0x830] sm:$0xff]
  %v1832 = vld [vmem:[#allocation4 + $0x838] sm:$0xff]
  %v1833 = vld [vmem:[#allocation4 + $0x840] sm:$0xff]
  %v1834 = vld [vmem:[#allocation4 + $0x848] sm:$0xff]
  %v1835 = vld [vmem:[#allocation4 + $0x850] sm:$0xff]
  %v1836 = vld [vmem:[#allocation4 + $0x858] sm:$0xff]
  %v1837 = vld [vmem:[#allocation4 + $0x860] sm:$0xff]
  %v1838 = vld [vmem:[#allocation4 + $0x868] sm:$0xff]
  %v1839 = vld [vmem:[#allocation4 + $0x870] sm:$0xff]
  %v1840 = vld [vmem:[#allocation4 + $0x878] sm:$0xff]
  %v1841 = vld [vmem:[#allocation4 + $0x880] sm:$0xff]
  %v1842 = vld [vmem:[#allocation4 + $0x888] sm:$0xff]
  %v1843 = vld [vmem:[#allocation4 + $0x890] sm:$0xff]
  %v1844 = vld [vmem:[#allocation4 + $0x898] sm:$0xff]
  %v1845 = vld [vmem:[#allocation4 + $0x8a0] sm:$0xff]
  %v1846 = vld [vmem:[#allocation4 + $0x8a8] sm:$0xff]
  %v1847 = vld [vmem:[#allocation4 + $0x8b0] sm:$0xff]
  %v1848 = vld [vmem:[#allocation4 + $0x8b8] sm:$0xff]
  %v1849 = vld [vmem:[#allocation4 + $0x8c0] sm:$0xff]
  %v1850 = vld [vmem:[#allocation4 + $0x8c8] sm:$0xff]
  %v1851 = vld [vmem:[#allocation4 + $0x8d0] sm:$0xff]
  %v1852 = vld [vmem:[#allocation4 + $0x8d8] sm:$0xff]
  %v1853 = vld [vmem:[#allocation4 + $0x8e0] sm:$0xff]
  %v1854 = vld [vmem:[#allocation4 + $0x8e8] sm:$0xff]
  %v1855 = vld [vmem:[#allocation4 + $0x8f0] sm:$0xff]
  %v1856 = vld [vmem:[#allocation4 + $0x8f8] sm:$0xff]
  %v1857 = vld [vmem:[%s2] sm:$0xf]
  %v1858 = vld [vmem:[%s2 + $0x4] sm:$0xf]
  %v1859 = vld [vmem:[%s2 + $0x8] sm:$0xf]
  %v1860 = vld [vmem:[%s2 + $0xc] sm:$0xf]
  %v1861 = vld [vmem:[%s2 + $0x10] sm:$0xf]
  %v1862 = vld [vmem:[%s2 + $0x14] sm:$0xf]
  %v1863 = vld [vmem:[%s2 + $0x18] sm:$0xf]
  %v1864 = vld [vmem:[%s2 + $0x1c] sm:$0xf]
  %v1865 = vld [vmem:[%s2 + $0x20] sm:$0xf]
  %v1866 = vld [vmem:[%s2 + $0x24] sm:$0xf]
  %v1867 = vld [vmem:[%s2 + $0x28] sm:$0xf]
  %v1868 = vld [vmem:[%s2 + $0x2c] sm:$0xf]
  %v1869 = vld [vmem:[%s2 + $0x30] sm:$0xf]
  %v1870 = vld [vmem:[%s2 + $0x34] sm:$0xf]
  %v1871 = vld [vmem:[%s2 + $0x38] sm:$0xf]
  %v1872 = vld [vmem:[%s2 + $0x3c] sm:$0xf]
  %v1873 = vld [vmem:[%s2 + $0x40] sm:$0xf]
  %v1874 = vld [vmem:[%s2 + $0x44] sm:$0xf]
  %v1875 = vld [vmem:[%s2 + $0x48] sm:$0xf]
  %v1876 = vld [vmem:[%s2 + $0x4c] sm:$0xf]
  %v1877 = vld [vmem:[%s2 + $0x50] sm:$0xf]
  %v1878 = vld [vmem:[%s2 + $0x54] sm:$0xf]
  %v1879 = vld [vmem:[%s2 + $0x58] sm:$0xf]
  %v1880 = vld [vmem:[%s2 + $0x5c] sm:$0xf]
  %v1881 = vld [vmem:[%s2 + $0x60] sm:$0xf]
  %v1882 = vld [vmem:[%s2 + $0x64] sm:$0xf]
  %v1883 = vld [vmem:[%s2 + $0x68] sm:$0xf]
  %v1884 = vld [vmem:[%s2 + $0x6c] sm:$0xf]
  %v1885 = vld [vmem:[%s2 + $0x70] sm:$0xf]
  %v1886 = vld [vmem:[%s2 + $0x74] sm:$0xf]
  %v1887 = vld [vmem:[%s2 + $0x78] sm:$0xf]
  %v1888 = vld [vmem:[%s2 + $0x7c] sm:$0xf]
  %v1889 = vld [vmem:[%s2 + $0x80] sm:$0xf]
  %v1890 = vld [vmem:[%s2 + $0x84] sm:$0xf]
  %v1891 = vld [vmem:[%s2 + $0x88] sm:$0xf]
  %v1892 = vld [vmem:[%s2 + $0x8c] sm:$0xf]
  %v1893 = vld [vmem:[%s2 + $0x90] sm:$0xf]
  %v1894 = vld [vmem:[%s2 + $0x94] sm:$0xf]
  %v1895 = vld [vmem:[%s2 + $0x98] sm:$0xf]
  %v1896 = vld [vmem:[%s2 + $0x9c] sm:$0xf]
  %v1897 = vld [vmem:[%s2 + $0xa0] sm:$0xf]
  %v1898 = vld [vmem:[%s2 + $0xa4] sm:$0xf]
  %v1899 = vld [vmem:[%s2 + $0xa8] sm:$0xf]
  %v1900 = vld [vmem:[%s2 + $0xac] sm:$0xf]
  %v1901 = vld [vmem:[%s2 + $0xb0] sm:$0xf]
  %v1902 = vld [vmem:[%s2 + $0xb4] sm:$0xf]
  %v1903 = vld [vmem:[%s2 + $0xb8] sm:$0xf]
  %v1904 = vld [vmem:[%s2 + $0xbc] sm:$0xf]
  %v1905 = vld [vmem:[%s2 + $0xc0] sm:$0xf]
  %v1906 = vld [vmem:[%s2 + $0xc4] sm:$0xf]
  %v1907 = vld [vmem:[%s2 + $0xc8] sm:$0xf]
  %v1908 = vld [vmem:[%s2 + $0xcc] sm:$0xf]
  %v1909 = vld [vmem:[%s2 + $0xd0] sm:$0xf]
  %v1910 = vld [vmem:[%s2 + $0xd4] sm:$0xf]
  %v1911 = vld [vmem:[%s2 + $0xd8] sm:$0xf]
  %v1912 = vld [vmem:[%s2 + $0xdc] sm:$0xf]
  %v1913 = vld [vmem:[%s2 + $0xe0] sm:$0xf]
  %v1914 = vld [vmem:[%s2 + $0xe4] sm:$0xf]
  %v1915 = vld [vmem:[%s2 + $0xe8] sm:$0xf]
  %v1916 = vld [vmem:[%s2 + $0xec] sm:$0xf]
  %v1917 = vld [vmem:[%s2 + $0xf0] sm:$0xf]
  %v1918 = vld [vmem:[%s2 + $0xf4] sm:$0xf]
  %v1919 = vld [vmem:[%s2 + $0xf8] sm:$0xf]
  %v1920 = vld [vmem:[%s2 + $0xfc] sm:$0xf]
  %v1921 = vld [vmem:[%s2 + $0x100] sm:$0xf]
  %v1922 = vld [vmem:[%s2 + $0x104] sm:$0xf]
  %v1923 = vld [vmem:[%s2 + $0x108] sm:$0xf]
  %v1924 = vld [vmem:[%s2 + $0x10c] sm:$0xf]
  %v1925 = vld [vmem:[%s2 + $0x110] sm:$0xf]
  %v1926 = vld [vmem:[%s2 + $0x114] sm:$0xf]
  %v1927 = vld [vmem:[%s2 + $0x118] sm:$0xf]
  %v1928 = vld [vmem:[%s2 + $0x11c] sm:$0xf]
  %v1929 = vld [vmem:[%s2 + $0x120] sm:$0xf]
  %v1930 = vld [vmem:[%s2 + $0x124] sm:$0xf]
  %v1931 = vld [vmem:[%s2 + $0x128] sm:$0xf]
  %v1932 = vld [vmem:[%s2 + $0x12c] sm:$0xf]
  %v1933 = vld [vmem:[%s2 + $0x130] sm:$0xf]
  %v1934 = vld [vmem:[%s2 + $0x134] sm:$0xf]
  %v1935 = vld [vmem:[%s2 + $0x138] sm:$0xf]
  %v1936 = vld [vmem:[%s2 + $0x13c] sm:$0xf]
  %v1937 = vld [vmem:[%s2 + $0x140] sm:$0xf]
  %v1938 = vld [vmem:[%s2 + $0x144] sm:$0xf]
  %v1939 = vld [vmem:[%s2 + $0x148] sm:$0xf]
  %v1940 = vld [vmem:[%s2 + $0x14c] sm:$0xf]
  %v1941 = vld [vmem:[%s2 + $0x150] sm:$0xf]
  %v1942 = vld [vmem:[%s2 + $0x154] sm:$0xf]
  %v1943 = vld [vmem:[%s2 + $0x158] sm:$0xf]
  %v1944 = vld [vmem:[%s2 + $0x15c] sm:$0xf]
  %v1945 = vld [vmem:[%s2 + $0x160] sm:$0xf]
  %v1946 = vld [vmem:[%s2 + $0x164] sm:$0xf]
  %v1947 = vld [vmem:[%s2 + $0x168] sm:$0xf]
  %v1948 = vld [vmem:[%s2 + $0x16c] sm:$0xf]
  %v1949 = vld [vmem:[%s2 + $0x170] sm:$0xf]
  %v1950 = vld [vmem:[%s2 + $0x174] sm:$0xf]
  %v1951 = vld [vmem:[%s2 + $0x178] sm:$0xf]
  %v1952 = vld [vmem:[%s2 + $0x17c] sm:$0xf]
  %v1953 = vld [vmem:[%s2 + $0x180] sm:$0xf]
  %v1954 = vld [vmem:[%s2 + $0x184] sm:$0xf]
  %v1955 = vld [vmem:[%s2 + $0x188] sm:$0xf]
  %v1956 = vld [vmem:[%s2 + $0x18c] sm:$0xf]
  %v1957 = vld [vmem:[%s2 + $0x190] sm:$0xf]
  %v1958 = vld [vmem:[%s2 + $0x194] sm:$0xf]
  %v1959 = vld [vmem:[%s2 + $0x198] sm:$0xf]
  %v1960 = vld [vmem:[%s2 + $0x19c] sm:$0xf]
  %v1961 = vld [vmem:[%s2 + $0x1a0] sm:$0xf]
  %v1962 = vld [vmem:[%s2 + $0x1a4] sm:$0xf]
  %v1963 = vld [vmem:[%s2 + $0x1a8] sm:$0xf]
  %v1964 = vld [vmem:[%s2 + $0x1ac] sm:$0xf]
  %v1965 = vld [vmem:[%s2 + $0x1b0] sm:$0xf]
  %v1966 = vld [vmem:[%s2 + $0x1b4] sm:$0xf]
  %v1967 = vld [vmem:[%s2 + $0x1b8] sm:$0xf]
  %v1968 = vld [vmem:[%s2 + $0x1bc] sm:$0xf]
  %v1969 = vld [vmem:[%s2 + $0x1c0] sm:$0xf]
  %v1970 = vld [vmem:[%s2 + $0x1c4] sm:$0xf]
  %v1971 = vld [vmem:[%s2 + $0x1c8] sm:$0xf]
  %v1972 = vld [vmem:[%s2 + $0x1cc] sm:$0xf]
  %v1973 = vld [vmem:[%s2 + $0x1d0] sm:$0xf]
  %v1974 = vld [vmem:[%s2 + $0x1d4] sm:$0xf]
  %v1975 = vld [vmem:[%s2 + $0x1d8] sm:$0xf]
  %v1976 = vld [vmem:[%s2 + $0x1dc] sm:$0xf]
  %v1977 = vld [vmem:[%s2 + $0x1e0] sm:$0xf]
  %v1978 = vld [vmem:[%s2 + $0x1e4] sm:$0xf]
  %v1979 = vld [vmem:[%s2 + $0x1e8] sm:$0xf]
  %v1980 = vld [vmem:[%s2 + $0x1ec] sm:$0xf]
  %v1981 = vld [vmem:[%s2 + $0x1f0] sm:$0xf]
  %v1982 = vld [vmem:[%s2 + $0x1f4] sm:$0xf]
  %v1983 = vld [vmem:[%s2 + $0x1f8] sm:$0xf]
  %v1984 = vld [vmem:[%s2 + $0x1fc] sm:$0xf]
  %v1985 = vld [vmem:[%s2 + $0x200] sm:$0xf]
  %v1986 = vld [vmem:[%s2 + $0x204] sm:$0xf]
  %v1987 = vld [vmem:[%s2 + $0x208] sm:$0xf]
  %v1988 = vld [vmem:[%s2 + $0x20c] sm:$0xf]
  %v1989 = vld [vmem:[%s2 + $0x210] sm:$0xf]
  %v1990 = vld [vmem:[%s2 + $0x214] sm:$0xf]
  %v1991 = vld [vmem:[%s2 + $0x218] sm:$0xf]
  %v1992 = vld [vmem:[%s2 + $0x21c] sm:$0xf]
  %v1993 = vld [vmem:[%s2 + $0x220] sm:$0xf]
  %v1994 = vld [vmem:[%s2 + $0x224] sm:$0xf]
  %v1995 = vld [vmem:[%s2 + $0x228] sm:$0xf]
  %v1996 = vld [vmem:[%s2 + $0x22c] sm:$0xf]
  %v1997 = vld [vmem:[%s2 + $0x230] sm:$0xf]
  %v1998 = vld [vmem:[%s2 + $0x234] sm:$0xf]
  %v1999 = vld [vmem:[%s2 + $0x238] sm:$0xf]
  %v2000 = vld [vmem:[%s2 + $0x23c] sm:$0xf]
  %v2145 = vunpack.c.l.b16 %v1857
  %v2146 = vunpack.c.l.b16 %v1858
  %v2147 = vunpack.c.l.b16 %v1859
  %v2148 = vunpack.c.l.b16 %v1860
  %v2149 = vunpack.c.l.b16 %v1861
  %v2150 = vunpack.c.l.b16 %v1862
  %v2151 = vunpack.c.l.b16 %v1863
  %v2152 = vunpack.c.l.b16 %v1864
  %v2153 = vunpack.c.l.b16 %v1865
  %v2154 = vunpack.c.l.b16 %v1866
  %v2155 = vunpack.c.l.b16 %v1867
  %v2156 = vunpack.c.l.b16 %v1868
  %v2157 = vunpack.c.l.b16 %v1869
  %v2158 = vunpack.c.l.b16 %v1870
  %v2159 = vunpack.c.l.b16 %v1871
  %v2160 = vunpack.c.l.b16 %v1872
  %v2161 = vunpack.c.l.b16 %v1873
  %v2162 = vunpack.c.l.b16 %v1874
  %v2163 = vunpack.c.l.b16 %v1875
  %v2164 = vunpack.c.l.b16 %v1876
  %v2165 = vunpack.c.l.b16 %v1877
  %v2166 = vunpack.c.l.b16 %v1878
  %v2167 = vunpack.c.l.b16 %v1879
  %v2168 = vunpack.c.l.b16 %v1880
  %v2169 = vunpack.c.l.b16 %v1881
  %v2170 = vunpack.c.l.b16 %v1882
  %v2171 = vunpack.c.l.b16 %v1883
  %v2172 = vunpack.c.l.b16 %v1884
  %v2173 = vunpack.c.l.b16 %v1885
  %v2174 = vunpack.c.l.b16 %v1886
  %v2175 = vunpack.c.l.b16 %v1887
  %v2176 = vunpack.c.l.b16 %v1888
  %v2177 = vunpack.c.l.b16 %v1889
  %v2178 = vunpack.c.l.b16 %v1890
  %v2179 = vunpack.c.l.b16 %v1891
  %v2180 = vunpack.c.l.b16 %v1892
  %v2181 = vunpack.c.l.b16 %v1893
  %v2182 = vunpack.c.l.b16 %v1894
  %v2183 = vunpack.c.l.b16 %v1895
  %v2184 = vunpack.c.l.b16 %v1896
  %v2185 = vunpack.c.l.b16 %v1897
  %v2186 = vunpack.c.l.b16 %v1898
  %v2187 = vunpack.c.l.b16 %v1899
  %v2188 = vunpack.c.l.b16 %v1900
  %v2189 = vunpack.c.l.b16 %v1901
  %v2190 = vunpack.c.l.b16 %v1902
  %v2191 = vunpack.c.l.b16 %v1903
  %v2192 = vunpack.c.l.b16 %v1904
  %v2193 = vunpack.c.l.b16 %v1905
  %v2194 = vunpack.c.l.b16 %v1906
  %v2195 = vunpack.c.l.b16 %v1907
  %v2196 = vunpack.c.l.b16 %v1908
  %v2197 = vunpack.c.l.b16 %v1909
  %v2198 = vunpack.c.l.b16 %v1910
  %v2199 = vunpack.c.l.b16 %v1911
  %v2200 = vunpack.c.l.b16 %v1912
  %v2201 = vunpack.c.l.b16 %v1913
  %v2202 = vunpack.c.l.b16 %v1914
  %v2203 = vunpack.c.l.b16 %v1915
  %v2204 = vunpack.c.l.b16 %v1916
  %v2205 = vunpack.c.l.b16 %v1917
  %v2206 = vunpack.c.l.b16 %v1918
  %v2207 = vunpack.c.l.b16 %v1919
  %v2208 = vunpack.c.l.b16 %v1920
  %v2209 = vunpack.c.l.b16 %v1921
  %v2210 = vunpack.c.l.b16 %v1922
  %v2211 = vunpack.c.l.b16 %v1923
  %v2212 = vunpack.c.l.b16 %v1924
  %v2213 = vunpack.c.l.b16 %v1925
  %v2214 = vunpack.c.l.b16 %v1926
  %v2215 = vunpack.c.l.b16 %v1927
  %v2216 = vunpack.c.l.b16 %v1928
  %v2217 = vunpack.c.l.b16 %v1929
  %v2218 = vunpack.c.l.b16 %v1930
  %v2219 = vunpack.c.l.b16 %v1931
  %v2220 = vunpack.c.l.b16 %v1932
  %v2221 = vunpack.c.l.b16 %v1933
  %v2222 = vunpack.c.l.b16 %v1934
  %v2223 = vunpack.c.l.b16 %v1935
  %v2224 = vunpack.c.l.b16 %v1936
  %v2225 = vunpack.c.l.b16 %v1937
  %v2226 = vunpack.c.l.b16 %v1938
  %v2227 = vunpack.c.l.b16 %v1939
  %v2228 = vunpack.c.l.b16 %v1940
  %v2229 = vunpack.c.l.b16 %v1941
  %v2230 = vunpack.c.l.b16 %v1942
  %v2231 = vunpack.c.l.b16 %v1943
  %v2232 = vunpack.c.l.b16 %v1944
  %v2233 = vunpack.c.l.b16 %v1945
  %v2234 = vunpack.c.l.b16 %v1946
  %v2235 = vunpack.c.l.b16 %v1947
  %v2236 = vunpack.c.l.b16 %v1948
  %v2237 = vunpack.c.l.b16 %v1949
  %v2238 = vunpack.c.l.b16 %v1950
  %v2239 = vunpack.c.l.b16 %v1951
  %v2240 = vunpack.c.l.b16 %v1952
  %v2241 = vunpack.c.l.b16 %v1953
  %v2242 = vunpack.c.l.b16 %v1954
  %v2243 = vunpack.c.l.b16 %v1955
  %v2244 = vunpack.c.l.b16 %v1956
  %v2245 = vunpack.c.l.b16 %v1957
  %v2246 = vunpack.c.l.b16 %v1958
  %v2247 = vunpack.c.l.b16 %v1959
  %v2248 = vunpack.c.l.b16 %v1960
  %v2249 = vunpack.c.l.b16 %v1961
  %v2250 = vunpack.c.l.b16 %v1962
  %v2251 = vunpack.c.l.b16 %v1963
  %v2252 = vunpack.c.l.b16 %v1964
  %v2253 = vunpack.c.l.b16 %v1965
  %v2254 = vunpack.c.l.b16 %v1966
  %v2255 = vunpack.c.l.b16 %v1967
  %v2256 = vunpack.c.l.b16 %v1968
  %v2257 = vunpack.c.l.b16 %v1969
  %v2258 = vunpack.c.l.b16 %v1970
  %v2259 = vunpack.c.l.b16 %v1971
  %v2260 = vunpack.c.l.b16 %v1972
  %v2261 = vunpack.c.l.b16 %v1973
  %v2262 = vunpack.c.l.b16 %v1974
  %v2263 = vunpack.c.l.b16 %v1975
  %v2264 = vunpack.c.l.b16 %v1976
  %v2265 = vunpack.c.l.b16 %v1977
  %v2266 = vunpack.c.l.b16 %v1978
  %v2267 = vunpack.c.l.b16 %v1979
  %v2268 = vunpack.c.l.b16 %v1980
  %v2269 = vunpack.c.l.b16 %v1981
  %v2270 = vunpack.c.l.b16 %v1982
  %v2271 = vunpack.c.l.b16 %v1983
  %v2272 = vunpack.c.l.b16 %v1984
  %v2273 = vunpack.c.l.b16 %v1985
  %v2274 = vunpack.c.l.b16 %v1986
  %v2275 = vunpack.c.l.b16 %v1987
  %v2276 = vunpack.c.l.b16 %v1988
  %v2277 = vunpack.c.l.b16 %v1989
  %v2278 = vunpack.c.l.b16 %v1990
  %v2279 = vunpack.c.l.b16 %v1991
  %v2280 = vunpack.c.l.b16 %v1992
  %v2281 = vunpack.c.l.b16 %v1993
  %v2282 = vunpack.c.l.b16 %v1994
  %v2283 = vunpack.c.l.b16 %v1995
  %v2284 = vunpack.c.l.b16 %v1996
  %v2285 = vunpack.c.l.b16 %v1997
  %v2286 = vunpack.c.l.b16 %v1998
  %v2287 = vunpack.c.l.b16 %v1999
  %v2288 = vunpack.c.l.b16 %v2000
  %v2289 = vpack.c.b16 %v2146, %v2145
  %v2290 = vpack.c.b16 %v2148, %v2147
  %v2291 = vpack.c.b16 %v2150, %v2149
  %v2292 = vpack.c.b16 %v2152, %v2151
  %v2293 = vpack.c.b16 %v2154, %v2153
  %v2294 = vpack.c.b16 %v2156, %v2155
  %v2295 = vpack.c.b16 %v2158, %v2157
  %v2296 = vpack.c.b16 %v2160, %v2159
  %v2297 = vpack.c.b16 %v2162, %v2161
  %v2298 = vpack.c.b16 %v2164, %v2163
  %v2299 = vpack.c.b16 %v2166, %v2165
  %v2300 = vpack.c.b16 %v2168, %v2167
  %v2301 = vpack.c.b16 %v2170, %v2169
  %v2302 = vpack.c.b16 %v2172, %v2171
  %v2303 = vpack.c.b16 %v2174, %v2173
  %v2304 = vpack.c.b16 %v2176, %v2175
  %v2305 = vpack.c.b16 %v2178, %v2177
  %v2306 = vpack.c.b16 %v2180, %v2179
  %v2307 = vpack.c.b16 %v2182, %v2181
  %v2308 = vpack.c.b16 %v2184, %v2183
  %v2309 = vpack.c.b16 %v2186, %v2185
  %v2310 = vpack.c.b16 %v2188, %v2187
  %v2311 = vpack.c.b16 %v2190, %v2189
  %v2312 = vpack.c.b16 %v2192, %v2191
  %v2313 = vpack.c.b16 %v2194, %v2193
  %v2314 = vpack.c.b16 %v2196, %v2195
  %v2315 = vpack.c.b16 %v2198, %v2197
  %v2316 = vpack.c.b16 %v2200, %v2199
  %v2317 = vpack.c.b16 %v2202, %v2201
  %v2318 = vpack.c.b16 %v2204, %v2203
  %v2319 = vpack.c.b16 %v2206, %v2205
  %v2320 = vpack.c.b16 %v2208, %v2207
  %v2321 = vpack.c.b16 %v2210, %v2209
  %v2322 = vpack.c.b16 %v2212, %v2211
  %v2323 = vpack.c.b16 %v2214, %v2213
  %v2324 = vpack.c.b16 %v2216, %v2215
  %v2325 = vpack.c.b16 %v2218, %v2217
  %v2326 = vpack.c.b16 %v2220, %v2219
  %v2327 = vpack.c.b16 %v2222, %v2221
  %v2328 = vpack.c.b16 %v2224, %v2223
  %v2329 = vpack.c.b16 %v2226, %v2225
  %v2330 = vpack.c.b16 %v2228, %v2227
  %v2331 = vpack.c.b16 %v2230, %v2229
  %v2332 = vpack.c.b16 %v2232, %v2231
  %v2333 = vpack.c.b16 %v2234, %v2233
  %v2334 = vpack.c.b16 %v2236, %v2235
  %v2335 = vpack.c.b16 %v2238, %v2237
  %v2336 = vpack.c.b16 %v2240, %v2239
  %v2337 = vpack.c.b16 %v2242, %v2241
  %v2338 = vpack.c.b16 %v2244, %v2243
  %v2339 = vpack.c.b16 %v2246, %v2245
  %v2340 = vpack.c.b16 %v2248, %v2247
  %v2341 = vpack.c.b16 %v2250, %v2249
  %v2342 = vpack.c.b16 %v2252, %v2251
  %v2343 = vpack.c.b16 %v2254, %v2253
  %v2344 = vpack.c.b16 %v2256, %v2255
  %v2345 = vpack.c.b16 %v2258, %v2257
  %v2346 = vpack.c.b16 %v2260, %v2259
  %v2347 = vpack.c.b16 %v2262, %v2261
  %v2348 = vpack.c.b16 %v2264, %v2263
  %v2349 = vpack.c.b16 %v2266, %v2265
  %v2350 = vpack.c.b16 %v2268, %v2267
  %v2351 = vpack.c.b16 %v2270, %v2269
  %v2352 = vpack.c.b16 %v2272, %v2271
  %v2353 = vpack.c.b16 %v2274, %v2273
  %v2354 = vpack.c.b16 %v2276, %v2275
  %v2355 = vpack.c.b16 %v2278, %v2277
  %v2356 = vpack.c.b16 %v2280, %v2279
  %v2357 = vpack.c.b16 %v2282, %v2281
  %v2358 = vpack.c.b16 %v2284, %v2283
  %v2359 = vpack.c.b16 %v2286, %v2285
  %v2360 = vpack.c.b16 %v2288, %v2287
  %2433 = vmatprep.subr.bf16.mxu0 0
  %2434 = vmatpush1.bf16.msra.mxu0 %v2289
  %2435 = vmatprep.subr.bf16.mxu0 0
  %2436 = vmatpush1.bf16.msra.mxu0 %v2290
  %2437 = vmatprep.subr.bf16.mxu0 0
  %2438 = vmatpush1.bf16.msra.mxu0 %v2291
  %2439 = vmatprep.subr.bf16.mxu0 0
  %2440 = vmatpush1.bf16.msra.mxu0 %v2292
  %2441 = vmatprep.subr.bf16.mxu0 0
  %2442 = vmatpush1.bf16.msra.mxu0 %v2293
  %2443 = vmatprep.subr.bf16.mxu0 0
  %2444 = vmatpush1.bf16.msra.mxu0 %v2294
  %2445 = vmatprep.subr.bf16.mxu0 0
  %2446 = vmatpush1.bf16.msra.mxu0 %v2295
  %2447 = vmatprep.subr.bf16.mxu0 0
  %2448 = vmatpush1.bf16.msra.mxu0 %v2296
  %2449 = vmatprep.subr.bf16.mxu0 0
  %2450 = vmatpush1.bf16.msra.mxu0 %v2297
  %2451 = vmatprep.subr.bf16.mxu0 0
  %2452 = vmatpush1.bf16.msra.mxu0 %v2298
  %2453 = vmatprep.subr.bf16.mxu0 0
  %2454 = vmatpush1.bf16.msra.mxu0 %v2299
  %2455 = vmatprep.subr.bf16.mxu0 0
  %2456 = vmatpush1.bf16.msra.mxu0 %v2300
  %2457 = vmatprep.subr.bf16.mxu0 0
  %2458 = vmatpush1.bf16.msra.mxu0 %v2301
  %2459 = vmatprep.subr.bf16.mxu0 0
  %2460 = vmatpush1.bf16.msra.mxu0 %v2302
  %2461 = vmatprep.subr.bf16.mxu0 0
  %2462 = vmatpush1.bf16.msra.mxu0 %v2303
  %2463 = vmatprep.subr.bf16.mxu0 0
  %2464 = vmatpush1.bf16.msra.mxu0 %v2304
  %2465 = vmatprep.mubr.bf16.mxu0 %v1570
  %2466 = vmatmul.mubr.bf16.gmra.mrb[0].mxu0 %v1569
  %v2467 = vpop.f32.mrb[0].mxu0
  %v2468 = vadd.f32 0.0, %v2467
  %v2469 = vpop.f32.mrb[0].mxu0
  %v2470 = vpop.f32.mrb[0].mxu0
  %v2471 = vadd.f32 0.0, %v2470
  %v2472 = vpop.f32.mrb[0].mxu0
  %2473 = vmatprep.mubr.bf16.mxu0 %v1579
  %2474 = vmatmul.mubr.bf16.gmra.mrb[0].mxu0 %v1578
  %v2475 = vpop.f32.mrb[0].mxu0
  %v2476 = vadd.f32 0.0, %v2475
  %v2477 = vpop.f32.mrb[0].mxu0
  %v2478 = vpop.f32.mrb[0].mxu0
  %v2479 = vadd.f32 0.0, %v2478
  %v2480 = vpop.f32.mrb[0].mxu0
  %2481 = vmatprep.mubr.bf16.mxu0 %v1588
  %2482 = vmatmul.mubr.bf16.gmra.mrb[0].mxu0 %v1587
  %v2483 = vpop.f32.mrb[0].mxu0
  %v2484 = vadd.f32 0.0, %v2483
  %v2485 = vpop.f32.mrb[0].mxu0
  %v2486 = vpop.f32.mrb[0].mxu0
  %v2487 = vadd.f32 0.0, %v2486
  %v2488 = vpop.f32.mrb[0].mxu0
  %2489 = vmatprep.mubr.bf16.mxu0 %v1597
  %2490 = vmatmul.mubr.bf16.gmra.mrb[0].mxu0 %v1596
  %v2491 = vpop.f32.mrb[0].mxu0
  %v2492 = vadd.f32 0.0, %v2491
  %v2493 = vpop.f32.mrb[0].mxu0
  %v2494 = vpop.f32.mrb[0].mxu0
  %v2495 = vadd.f32 0.0, %v2494
  %v2496 = vpop.f32.mrb[0].mxu0
  %2497 = vmatprep.mubr.bf16.mxu0 %v1606
  %2498 = vmatmul.mubr.bf16.gmra.mrb[0].mxu0 %v1605
  %v2499 = vpop.f32.mrb[0].mxu0
  %v2500 = vadd.f32 0.0, %v2499
  %v2501 = vpop.f32.mrb[0].mxu0
  %v2502 = vpop.f32.mrb[0].mxu0
  %v2503 = vadd.f32 0.0, %v2502
  %v2504 = vpop.f32.mrb[0].mxu0
  %2505 = vmatprep.mubr.bf16.mxu0 %v1615
  %2506 = vmatmul.mubr.bf16.gmra.mrb[0].mxu0 %v1614
  %v2507 = vpop.f32.mrb[0].mxu0
  %v2508 = vadd.f32 0.0, %v2507
  %v2509 = vpop.f32.mrb[0].mxu0
  %v2510 = vpop.f32.mrb[0].mxu0
  %v2511 = vadd.f32 0.0, %v2510
  %v2512 = vpop.f32.mrb[0].mxu0
  %2513 = vmatprep.mubr.bf16.mxu0 %v1624
  %2514 = vmatmul.mubr.bf16.gmra.mrb[0].mxu0 %v1623
  %v2515 = vpop.f32.mrb[0].mxu0
  %v2516 = vadd.f32 0.0, %v2515
  %v2517 = vpop.f32.mrb[0].mxu0
  %v2518 = vpop.f32.mrb[0].mxu0
  %v2519 = vadd.f32 0.0, %v2518
  %v2520 = vpop.f32.mrb[0].mxu0
  %2521 = vmatprep.mubr.bf16.mxu0 %v1633
  %2522 = vmatmul.mubr.bf16.gmra.mrb[0].mxu0 %v1632
  %v2523 = vpop.f32.mrb[0].mxu0
  %v2524 = vadd.f32 0.0, %v2523
  %v2525 = vpop.f32.mrb[0].mxu0
  %v2526 = vpop.f32.mrb[0].mxu0
  %v2527 = vadd.f32 0.0, %v2526
  %v2528 = vpop.f32.mrb[0].mxu0
  %2529 = vmatprep.mubr.bf16.mxu0 %v1642
  %2530 = vmatmul.mubr.bf16.gmra.mrb[0].mxu0 %v1641
  %v2531 = vpop.f32.mrb[0].mxu0
  %v2532 = vadd.f32 0.0, %v2531
  %v2533 = vpop.f32.mrb[0].mxu0
  %v2534 = vpop.f32.mrb[0].mxu0
  %v2535 = vadd.f32 0.0, %v2534
  %v2536 = vpop.f32.mrb[0].mxu0
  %2537 = vmatprep.mubr.bf16.mxu0 %v1651
  %2538 = vmatmul.mubr.bf16.gmra.mrb[0].mxu0 %v1650
  %v2539 = vpop.f32.mrb[0].mxu0
  %v2540 = vadd.f32 0.0, %v2539
  %v2541 = vpop.f32.mrb[0].mxu0
  %v2542 = vpop.f32.mrb[0].mxu0
  %v2543 = vadd.f32 0.0, %v2542
  %v2544 = vpop.f32.mrb[0].mxu0
  %2545 = vmatprep.mubr.bf16.mxu0 %v1660
  %2546 = vmatmul.mubr.bf16.gmra.mrb[0].mxu0 %v1659
  %v2547 = vpop.f32.mrb[0].mxu0
  %v2548 = vadd.f32 0.0, %v2547
  %v2549 = vpop.f32.mrb[0].mxu0
  %v2550 = vpop.f32.mrb[0].mxu0
  %v2551 = vadd.f32 0.0, %v2550
  %v2552 = vpop.f32.mrb[0].mxu0
  %2553 = vmatprep.mubr.bf16.mxu0 %v1669
  %2554 = vmatmul.mubr.bf16.gmra.mrb[0].mxu0 %v1668
  %v2555 = vpop.f32.mrb[0].mxu0
  %v2556 = vadd.f32 0.0, %v2555
  %v2557 = vpop.f32.mrb[0].mxu0
  %v2558 = vpop.f32.mrb[0].mxu0
  %v2559 = vadd.f32 0.0, %v2558
  %v2560 = vpop.f32.mrb[0].mxu0
  %2561 = vmatprep.mubr.bf16.mxu0 %v1678
  %2562 = vmatmul.mubr.bf16.gmra.mrb[0].mxu0 %v1677
  %v2563 = vpop.f32.mrb[0].mxu0
  %v2564 = vadd.f32 0.0, %v2563
  %v2565 = vpop.f32.mrb[0].mxu0
  %v2566 = vpop.f32.mrb[0].mxu0
  %v2567 = vadd.f32 0.0, %v2566
  %v2568 = vpop.f32.mrb[0].mxu0
  %2569 = vmatprep.mubr.bf16.mxu0 %v1687
  %2570 = vmatmul.mubr.bf16.gmra.mrb[0].mxu0 %v1686
  %v2571 = vpop.f32.mrb[0].mxu0
  %v2572 = vadd.f32 0.0, %v2571
  %v2573 = vpop.f32.mrb[0].mxu0
  %v2574 = vpop.f32.mrb[0].mxu0
  %v2575 = vadd.f32 0.0, %v2574
  %v2576 = vpop.f32.mrb[0].mxu0
  %2577 = vmatprep.mubr.bf16.mxu0 %v1696
  %2578 = vmatmul.mubr.bf16.gmra.mrb[0].mxu0 %v1695
  %v2579 = vpop.f32.mrb[0].mxu0
  %v2580 = vadd.f32 0.0, %v2579
  %v2581 = vpop.f32.mrb[0].mxu0
  %v2582 = vpop.f32.mrb[0].mxu0
  %v2583 = vadd.f32 0.0, %v2582
  %v2584 = vpop.f32.mrb[0].mxu0
  %2585 = vmatprep.mubr.bf16.mxu0 %v1705
  %2586 = vmatmul.mubr.bf16.gmra.mrb[0].mxu0 %v1704
  %v2587 = vpop.f32.mrb[0].mxu0
  %v2588 = vadd.f32 0.0, %v2587
  %v2589 = vpop.f32.mrb[0].mxu0
  %v2590 = vpop.f32.mrb[0].mxu0
  %v2591 = vadd.f32 0.0, %v2590
  %v2592 = vpop.f32.mrb[0].mxu0
  %2593 = vmatprep.mubr.bf16.mxu0 %v1714
  %2594 = vmatmul.mubr.bf16.gmra.mrb[0].mxu0 %v1713
  %v2595 = vpop.f32.mrb[0].mxu0
  %v2596 = vadd.f32 0.0, %v2595
  %v2597 = vpop.f32.mrb[0].mxu0
  %v2598 = vpop.f32.mrb[0].mxu0
  %v2599 = vadd.f32 0.0, %v2598
  %v2600 = vpop.f32.mrb[0].mxu0
  %2601 = vmatprep.mubr.bf16.mxu0 %v1723
  %2602 = vmatmul.mubr.bf16.gmra.mrb[0].mxu0 %v1722
  %v2603 = vpop.f32.mrb[0].mxu0
  %v2604 = vadd.f32 0.0, %v2603
  %v2605 = vpop.f32.mrb[0].mxu0
  %v2606 = vpop.f32.mrb[0].mxu0
  %v2607 = vadd.f32 0.0, %v2606
  %v2608 = vpop.f32.mrb[0].mxu0
  %2609 = vmatprep.mubr.bf16.mxu0 %v1732
  %2610 = vmatmul.mubr.bf16.gmra.mrb[0].mxu0 %v1731
  %v2611 = vpop.f32.mrb[0].mxu0
  %v2612 = vadd.f32 0.0, %v2611
  %v2613 = vpop.f32.mrb[0].mxu0
  %v2614 = vpop.f32.mrb[0].mxu0
  %v2615 = vadd.f32 0.0, %v2614
  %v2616 = vpop.f32.mrb[0].mxu0
  %2617 = vmatprep.mubr.bf16.mxu0 %v1741
  %2618 = vmatmul.mubr.bf16.gmra.mrb[0].mxu0 %v1740
  %v2619 = vpop.f32.mrb[0].mxu0
  %v2620 = vadd.f32 0.0, %v2619
  %v2621 = vpop.f32.mrb[0].mxu0
  %v2622 = vpop.f32.mrb[0].mxu0
  %v2623 = vadd.f32 0.0, %v2622
  %v2624 = vpop.f32.mrb[0].mxu0
  %2625 = vmatprep.mubr.bf16.mxu0 %v1750
  %2626 = vmatmul.mubr.bf16.gmra.mrb[0].mxu0 %v1749
  %v2627 = vpop.f32.mrb[0].mxu0
  %v2628 = vadd.f32 0.0, %v2627
  %v2629 = vpop.f32.mrb[0].mxu0
  %v2630 = vpop.f32.mrb[0].mxu0
  %v2631 = vadd.f32 0.0, %v2630
  %v2632 = vpop.f32.mrb[0].mxu0
  %2633 = vmatprep.mubr.bf16.mxu0 %v1759
  %2634 = vmatmul.mubr.bf16.gmra.mrb[0].mxu0 %v1758
  %v2635 = vpop.f32.mrb[0].mxu0
  %v2636 = vadd.f32 0.0, %v2635
  %v2637 = vpop.f32.mrb[0].mxu0
  %v2638 = vpop.f32.mrb[0].mxu0
  %v2639 = vadd.f32 0.0, %v2638
  %v2640 = vpop.f32.mrb[0].mxu0
  %2641 = vmatprep.mubr.bf16.mxu0 %v1768
  %2642 = vmatmul.mubr.bf16.gmra.mrb[0].mxu0 %v1767
  %v2643 = vpop.f32.mrb[0].mxu0
  %v2644 = vadd.f32 0.0, %v2643
  %v2645 = vpop.f32.mrb[0].mxu0
  %v2646 = vpop.f32.mrb[0].mxu0
  %v2647 = vadd.f32 0.0, %v2646
  %v2648 = vpop.f32.mrb[0].mxu0
  %2649 = vmatprep.mubr.bf16.mxu0 %v1777
  %2650 = vmatmul.mubr.bf16.gmra.mrb[0].mxu0 %v1776
  %v2651 = vpop.f32.mrb[0].mxu0
  %v2652 = vadd.f32 0.0, %v2651
  %v2653 = vpop.f32.mrb[0].mxu0
  %v2654 = vpop.f32.mrb[0].mxu0
  %v2655 = vadd.f32 0.0, %v2654
  %v2656 = vpop.f32.mrb[0].mxu0
  %2657 = vmatprep.mubr.bf16.mxu0 %v1786
  %2658 = vmatmul.mubr.bf16.gmra.mrb[0].mxu0 %v1785
  %v2659 = vpop.f32.mrb[0].mxu0
  %v2660 = vadd.f32 0.0, %v2659
  %v2661 = vpop.f32.mrb[0].mxu0
  %v2662 = vpop.f32.mrb[0].mxu0
  %v2663 = vadd.f32 0.0, %v2662
  %v2664 = vpop.f32.mrb[0].mxu0
  %2665 = vmatprep.mubr.bf16.mxu0 %v1795
  %2666 = vmatmul.mubr.bf16.gmra.mrb[0].mxu0 %v1794
  %v2667 = vpop.f32.mrb[0].mxu0
  %v2668 = vadd.f32 0.0, %v2667
  %v2669 = vpop.f32.mrb[0].mxu0
  %v2670 = vpop.f32.mrb[0].mxu0
  %v2671 = vadd.f32 0.0, %v2670
  %v2672 = vpop.f32.mrb[0].mxu0
  %2673 = vmatprep.mubr.bf16.mxu0 %v1804
  %2674 = vmatmul.mubr.bf16.gmra.mrb[0].mxu0 %v1803
  %v2675 = vpop.f32.mrb[0].mxu0
  %v2676 = vadd.f32 0.0, %v2675
  %v2677 = vpop.f32.mrb[0].mxu0
  %v2678 = vpop.f32.mrb[0].mxu0
  %v2679 = vadd.f32 0.0, %v2678
  %v2680 = vpop.f32.mrb[0].mxu0
  %2681 = vmatprep.mubr.bf16.mxu0 %v1813
  %2682 = vmatmul.mubr.bf16.gmra.mrb[0].mxu0 %v1812
  %v2683 = vpop.f32.mrb[0].mxu0
  %v2684 = vadd.f32 0.0, %v2683
  %v2685 = vpop.f32.mrb[0].mxu0
  %v2686 = vpop.f32.mrb[0].mxu0
  %v2687 = vadd.f32 0.0, %v2686
  %v2688 = vpop.f32.mrb[0].mxu0
  %2689 = vmatprep.mubr.bf16.mxu0 %v1822
  %2690 = vmatmul.mubr.bf16.gmra.mrb[0].mxu0 %v1821
  %v2691 = vpop.f32.mrb[0].mxu0
  %v2692 = vadd.f32 0.0, %v2691
  %v2693 = vpop.f32.mrb[0].mxu0
  %v2694 = vpop.f32.mrb[0].mxu0
  %v2695 = vadd.f32 0.0, %v2694
  %v2696 = vpop.f32.mrb[0].mxu0
  %2697 = vmatprep.mubr.bf16.mxu0 %v1831
  %2698 = vmatmul.mubr.bf16.gmra.mrb[0].mxu0 %v1830
  %v2699 = vpop.f32.mrb[0].mxu0
  %v2700 = vadd.f32 0.0, %v2699
  %v2701 = vpop.f32.mrb[0].mxu0
  %v2702 = vpop.f32.mrb[0].mxu0
  %v2703 = vadd.f32 0.0, %v2702
  %v2704 = vpop.f32.mrb[0].mxu0
  %2705 = vmatprep.mubr.bf16.mxu0 %v1840
  %2706 = vmatmul.mubr.bf16.gmra.mrb[0].mxu0 %v1839
  %v2707 = vpop.f32.mrb[0].mxu0
  %v2708 = vadd.f32 0.0, %v2707
  %v2709 = vpop.f32.mrb[0].mxu0
  %v2710 = vpop.f32.mrb[0].mxu0
  %v2711 = vadd.f32 0.0, %v2710
  %v2712 = vpop.f32.mrb[0].mxu0
  %2713 = vmatprep.mubr.bf16.mxu0 %v1849
  %2714 = vmatmul.mubr.bf16.gmra.mrb[0].mxu0 %v1848
  %v2715 = vpop.f32.mrb[0].mxu0
  %v2716 = vadd.f32 0.0, %v2715
  %v2717 = vpop.f32.mrb[0].mxu0
  %v2718 = vpop.f32.mrb[0].mxu0
  %v2719 = vadd.f32 0.0, %v2718
  %v2720 = vpop.f32.mrb[0].mxu0
  %2721 = vdwg.mxu0
  %2722 = vmatprep.subr.bf16.mxu0 0
  %2723 = vmatpush1.bf16.msra.mxu0 %v2305
  %2724 = vmatprep.subr.bf16.mxu0 0
  %2725 = vmatpush1.bf16.msra.mxu0 %v2306
  %2726 = vmatprep.subr.bf16.mxu0 0
  %2727 = vmatpush1.bf16.msra.mxu0 %v2307
  %2728 = vmatprep.subr.bf16.mxu0 0
  %2729 = vmatpush1.bf16.msra.mxu0 %v2308
  %2730 = vmatprep.subr.bf16.mxu0 0
  %2731 = vmatpush1.bf16.msra.mxu0 %v2309
  %2732 = vmatprep.subr.bf16.mxu0 0
  %2733 = vmatpush1.bf16.msra.mxu0 %v2310
  %2734 = vmatprep.subr.bf16.mxu0 0
  %2735 = vmatpush1.bf16.msra.mxu0 %v2311
  %2736 = vmatprep.subr.bf16.mxu0 0
  %2737 = vmatpush1.bf16.msra.mxu0 %v2312
  %2738 = vmatprep.subr.bf16.mxu0 0
  %2739 = vmatpush1.bf16.msra.mxu0 %v2313
  %2740 = vmatprep.subr.bf16.mxu0 0
  %2741 = vmatpush1.bf16.msra.mxu0 %v2314
  %2742 = vmatprep.subr.bf16.mxu0 0
  %2743 = vmatpush1.bf16.msra.mxu0 %v2315
  %2744 = vmatprep.subr.bf16.mxu0 0
  %2745 = vmatpush1.bf16.msra.mxu0 %v2316
  %2746 = vmatprep.subr.bf16.mxu0 0
  %2747 = vmatpush1.bf16.msra.mxu0 %v2317
  %2748 = vmatprep.subr.bf16.mxu0 0
  %2749 = vmatpush1.bf16.msra.mxu0 %v2318
  %2750 = vmatprep.subr.bf16.mxu0 0
  %2751 = vmatpush1.bf16.msra.mxu0 %v2319
  %2752 = vmatprep.subr.bf16.mxu0 0
  %2753 = vmatpush1.bf16.msra.mxu0 %v2320
  %2754 = vmatprep.mubr.bf16.mxu0 %v1572
  %2755 = vmatmul.mubr.bf16.gmra.mrb[0].mxu0 %v1571
  %v2756 = vpop.f32.mrb[0].mxu0
  %v2757 = vadd.f32 %v2468, %v2756
  %v2758 = vpop.f32.mrb[0].mxu0
  %v2759 = vpop.f32.mrb[0].mxu0
  %v2760 = vadd.f32 %v2471, %v2759
  %v2761 = vpop.f32.mrb[0].mxu0
  %2762 = vmatprep.mubr.bf16.mxu0 %v1581
  %2763 = vmatmul.mubr.bf16.gmra.mrb[0].mxu0 %v1580
  %v2764 = vpop.f32.mrb[0].mxu0
  %v2765 = vadd.f32 %v2476, %v2764
  %v2766 = vpop.f32.mrb[0].mxu0
  %v2767 = vpop.f32.mrb[0].mxu0
  %v2768 = vadd.f32 %v2479, %v2767
  %v2769 = vpop.f32.mrb[0].mxu0
  %2770 = vmatprep.mubr.bf16.mxu0 %v1590
  %2771 = vmatmul.mubr.bf16.gmra.mrb[0].mxu0 %v1589
  %v2772 = vpop.f32.mrb[0].mxu0
  %v2773 = vadd.f32 %v2484, %v2772
  %v2774 = vpop.f32.mrb[0].mxu0
  %v2775 = vpop.f32.mrb[0].mxu0
  %v2776 = vadd.f32 %v2487, %v2775
  %v2777 = vpop.f32.mrb[0].mxu0
  %2778 = vmatprep.mubr.bf16.mxu0 %v1599
  %2779 = vmatmul.mubr.bf16.gmra.mrb[0].mxu0 %v1598
  %v2780 = vpop.f32.mrb[0].mxu0
  %v2781 = vadd.f32 %v2492, %v2780
  %v2782 = vpop.f32.mrb[0].mxu0
  %v2783 = vpop.f32.mrb[0].mxu0
  %v2784 = vadd.f32 %v2495, %v2783
  %v2785 = vpop.f32.mrb[0].mxu0
  %2786 = vmatprep.mubr.bf16.mxu0 %v1608
  %2787 = vmatmul.mubr.bf16.gmra.mrb[0].mxu0 %v1607
  %v2788 = vpop.f32.mrb[0].mxu0
  %v2789 = vadd.f32 %v2500, %v2788
  %v2790 = vpop.f32.mrb[0].mxu0
  %v2791 = vpop.f32.mrb[0].mxu0
  %v2792 = vadd.f32 %v2503, %v2791
  %v2793 = vpop.f32.mrb[0].mxu0
  %2794 = vmatprep.mubr.bf16.mxu0 %v1617
  %2795 = vmatmul.mubr.bf16.gmra.mrb[0].mxu0 %v1616
  %v2796 = vpop.f32.mrb[0].mxu0
  %v2797 = vadd.f32 %v2508, %v2796
  %v2798 = vpop.f32.mrb[0].mxu0
  %v2799 = vpop.f32.mrb[0].mxu0
  %v2800 = vadd.f32 %v2511, %v2799
  %v2801 = vpop.f32.mrb[0].mxu0
  %2802 = vmatprep.mubr.bf16.mxu0 %v1626
  %2803 = vmatmul.mubr.bf16.gmra.mrb[0].mxu0 %v1625
  %v2804 = vpop.f32.mrb[0].mxu0
  %v2805 = vadd.f32 %v2516, %v2804
  %v2806 = vpop.f32.mrb[0].mxu0
  %v2807 = vpop.f32.mrb[0].mxu0
  %v2808 = vadd.f32 %v2519, %v2807
  %v2809 = vpop.f32.mrb[0].mxu0
  %2810 = vmatprep.mubr.bf16.mxu0 %v1635
  %2811 = vmatmul.mubr.bf16.gmra.mrb[0].mxu0 %v1634
  %v2812 = vpop.f32.mrb[0].mxu0
  %v2813 = vadd.f32 %v2524, %v2812
  %v2814 = vpop.f32.mrb[0].mxu0
  %v2815 = vpop.f32.mrb[0].mxu0
  %v2816 = vadd.f32 %v2527, %v2815
  %v2817 = vpop.f32.mrb[0].mxu0
  %2818 = vmatprep.mubr.bf16.mxu0 %v1644
  %2819 = vmatmul.mubr.bf16.gmra.mrb[0].mxu0 %v1643
  %v2820 = vpop.f32.mrb[0].mxu0
  %v2821 = vadd.f32 %v2532, %v2820
  %v2822 = vpop.f32.mrb[0].mxu0
  %v2823 = vpop.f32.mrb[0].mxu0
  %v2824 = vadd.f32 %v2535, %v2823
  %v2825 = vpop.f32.mrb[0].mxu0
  %2826 = vmatprep.mubr.bf16.mxu0 %v1653
  %2827 = vmatmul.mubr.bf16.gmra.mrb[0].mxu0 %v1652
  %v2828 = vpop.f32.mrb[0].mxu0
  %v2829 = vadd.f32 %v2540, %v2828
  %v2830 = vpop.f32.mrb[0].mxu0
  %v2831 = vpop.f32.mrb[0].mxu0
  %v2832 = vadd.f32 %v2543, %v2831
  %v2833 = vpop.f32.mrb[0].mxu0
  %2834 = vmatprep.mubr.bf16.mxu0 %v1662
  %2835 = vmatmul.mubr.bf16.gmra.mrb[0].mxu0 %v1661
  %v2836 = vpop.f32.mrb[0].mxu0
  %v2837 = vadd.f32 %v2548, %v2836
  %v2838 = vpop.f32.mrb[0].mxu0
  %v2839 = vpop.f32.mrb[0].mxu0
  %v2840 = vadd.f32 %v2551, %v2839
  %v2841 = vpop.f32.mrb[0].mxu0
  %2842 = vmatprep.mubr.bf16.mxu0 %v1671
  %2843 = vmatmul.mubr.bf16.gmra.mrb[0].mxu0 %v1670
  %v2844 = vpop.f32.mrb[0].mxu0
  %v2845 = vadd.f32 %v2556, %v2844
  %v2846 = vpop.f32.mrb[0].mxu0
  %v2847 = vpop.f32.mrb[0].mxu0
  %v2848 = vadd.f32 %v2559, %v2847
  %v2849 = vpop.f32.mrb[0].mxu0
  %2850 = vmatprep.mubr.bf16.mxu0 %v1680
  %2851 = vmatmul.mubr.bf16.gmra.mrb[0].mxu0 %v1679
  %v2852 = vpop.f32.mrb[0].mxu0
  %v2853 = vadd.f32 %v2564, %v2852
  %v2854 = vpop.f32.mrb[0].mxu0
  %v2855 = vpop.f32.mrb[0].mxu0
  %v2856 = vadd.f32 %v2567, %v2855
  %v2857 = vpop.f32.mrb[0].mxu0
  %2858 = vmatprep.mubr.bf16.mxu0 %v1689
  %2859 = vmatmul.mubr.bf16.gmra.mrb[0].mxu0 %v1688
  %v2860 = vpop.f32.mrb[0].mxu0
  %v2861 = vadd.f32 %v2572, %v2860
  %v2862 = vpop.f32.mrb[0].mxu0
  %v2863 = vpop.f32.mrb[0].mxu0
  %v2864 = vadd.f32 %v2575, %v2863
  %v2865 = vpop.f32.mrb[0].mxu0
  %2866 = vmatprep.mubr.bf16.mxu0 %v1698
  %2867 = vmatmul.mubr.bf16.gmra.mrb[0].mxu0 %v1697
  %v2868 = vpop.f32.mrb[0].mxu0
  %v2869 = vadd.f32 %v2580, %v2868
  %v2870 = vpop.f32.mrb[0].mxu0
  %v2871 = vpop.f32.mrb[0].mxu0
  %v2872 = vadd.f32 %v2583, %v2871
  %v2873 = vpop.f32.mrb[0].mxu0
  %2874 = vmatprep.mubr.bf16.mxu0 %v1707
  %2875 = vmatmul.mubr.bf16.gmra.mrb[0].mxu0 %v1706
  %v2876 = vpop.f32.mrb[0].mxu0
  %v2877 = vadd.f32 %v2588, %v2876
  %v2878 = vpop.f32.mrb[0].mxu0
  %v2879 = vpop.f32.mrb[0].mxu0
  %v2880 = vadd.f32 %v2591, %v2879
  %v2881 = vpop.f32.mrb[0].mxu0
  %2882 = vmatprep.mubr.bf16.mxu0 %v1716
  %2883 = vmatmul.mubr.bf16.gmra.mrb[0].mxu0 %v1715
  %v2884 = vpop.f32.mrb[0].mxu0
  %v2885 = vadd.f32 %v2596, %v2884
  %v2886 = vpop.f32.mrb[0].mxu0
  %v2887 = vpop.f32.mrb[0].mxu0
  %v2888 = vadd.f32 %v2599, %v2887
  %v2889 = vpop.f32.mrb[0].mxu0
  %2890 = vmatprep.mubr.bf16.mxu0 %v1725
  %2891 = vmatmul.mubr.bf16.gmra.mrb[0].mxu0 %v1724
  %v2892 = vpop.f32.mrb[0].mxu0
  %v2893 = vadd.f32 %v2604, %v2892
  %v2894 = vpop.f32.mrb[0].mxu0
  %v2895 = vpop.f32.mrb[0].mxu0
  %v2896 = vadd.f32 %v2607, %v2895
  %v2897 = vpop.f32.mrb[0].mxu0
  %2898 = vmatprep.mubr.bf16.mxu0 %v1734
  %2899 = vmatmul.mubr.bf16.gmra.mrb[0].mxu0 %v1733
  %v2900 = vpop.f32.mrb[0].mxu0
  %v2901 = vadd.f32 %v2612, %v2900
  %v2902 = vpop.f32.mrb[0].mxu0
  %v2903 = vpop.f32.mrb[0].mxu0
  %v2904 = vadd.f32 %v2615, %v2903
  %v2905 = vpop.f32.mrb[0].mxu0
  %2906 = vmatprep.mubr.bf16.mxu0 %v1743
  %2907 = vmatmul.mubr.bf16.gmra.mrb[0].mxu0 %v1742
  %v2908 = vpop.f32.mrb[0].mxu0
  %v2909 = vadd.f32 %v2620, %v2908
  %v2910 = vpop.f32.mrb[0].mxu0
  %v2911 = vpop.f32.mrb[0].mxu0
  %v2912 = vadd.f32 %v2623, %v2911
  %v2913 = vpop.f32.mrb[0].mxu0
  %2914 = vmatprep.mubr.bf16.mxu0 %v1752
  %2915 = vmatmul.mubr.bf16.gmra.mrb[0].mxu0 %v1751
  %v2916 = vpop.f32.mrb[0].mxu0
  %v2917 = vadd.f32 %v2628, %v2916
  %v2918 = vpop.f32.mrb[0].mxu0
  %v2919 = vpop.f32.mrb[0].mxu0
  %v2920 = vadd.f32 %v2631, %v2919
  %v2921 = vpop.f32.mrb[0].mxu0
  %2922 = vmatprep.mubr.bf16.mxu0 %v1761
  %2923 = vmatmul.mubr.bf16.gmra.mrb[0].mxu0 %v1760
  %v2924 = vpop.f32.mrb[0].mxu0
  %v2925 = vadd.f32 %v2636, %v2924
  %v2926 = vpop.f32.mrb[0].mxu0
  %v2927 = vpop.f32.mrb[0].mxu0
  %v2928 = vadd.f32 %v2639, %v2927
  %v2929 = vpop.f32.mrb[0].mxu0
  %2930 = vmatprep.mubr.bf16.mxu0 %v1770
  %2931 = vmatmul.mubr.bf16.gmra.mrb[0].mxu0 %v1769
  %v2932 = vpop.f32.mrb[0].mxu0
  %v2933 = vadd.f32 %v2644, %v2932
  %v2934 = vpop.f32.mrb[0].mxu0
  %v2935 = vpop.f32.mrb[0].mxu0
  %v2936 = vadd.f32 %v2647, %v2935
  %v2937 = vpop.f32.mrb[0].mxu0
  %2938 = vmatprep.mubr.bf16.mxu0 %v1779
  %2939 = vmatmul.mubr.bf16.gmra.mrb[0].mxu0 %v1778
  %v2940 = vpop.f32.mrb[0].mxu0
  %v2941 = vadd.f32 %v2652, %v2940
  %v2942 = vpop.f32.mrb[0].mxu0
  %v2943 = vpop.f32.mrb[0].mxu0
  %v2944 = vadd.f32 %v2655, %v2943
  %v2945 = vpop.f32.mrb[0].mxu0
  %2946 = vmatprep.mubr.bf16.mxu0 %v1788
  %2947 = vmatmul.mubr.bf16.gmra.mrb[0].mxu0 %v1787
  %v2948 = vpop.f32.mrb[0].mxu0
  %v2949 = vadd.f32 %v2660, %v2948
  %v2950 = vpop.f32.mrb[0].mxu0
  %v2951 = vpop.f32.mrb[0].mxu0
  %v2952 = vadd.f32 %v2663, %v2951
  %v2953 = vpop.f32.mrb[0].mxu0
  %2954 = vmatprep.mubr.bf16.mxu0 %v1797
  %2955 = vmatmul.mubr.bf16.gmra.mrb[0].mxu0 %v1796
  %v2956 = vpop.f32.mrb[0].mxu0
  %v2957 = vadd.f32 %v2668, %v2956
  %v2958 = vpop.f32.mrb[0].mxu0
  %v2959 = vpop.f32.mrb[0].mxu0
  %v2960 = vadd.f32 %v2671, %v2959
  %v2961 = vpop.f32.mrb[0].mxu0
  %2962 = vmatprep.mubr.bf16.mxu0 %v1806
  %2963 = vmatmul.mubr.bf16.gmra.mrb[0].mxu0 %v1805
  %v2964 = vpop.f32.mrb[0].mxu0
  %v2965 = vadd.f32 %v2676, %v2964
  %v2966 = vpop.f32.mrb[0].mxu0
  %v2967 = vpop.f32.mrb[0].mxu0
  %v2968 = vadd.f32 %v2679, %v2967
  %v2969 = vpop.f32.mrb[0].mxu0
  %2970 = vmatprep.mubr.bf16.mxu0 %v1815
  %2971 = vmatmul.mubr.bf16.gmra.mrb[0].mxu0 %v1814
  %v2972 = vpop.f32.mrb[0].mxu0
  %v2973 = vadd.f32 %v2684, %v2972
  %v2974 = vpop.f32.mrb[0].mxu0
  %v2975 = vpop.f32.mrb[0].mxu0
  %v2976 = vadd.f32 %v2687, %v2975
  %v2977 = vpop.f32.mrb[0].mxu0
  %2978 = vmatprep.mubr.bf16.mxu0 %v1824
  %2979 = vmatmul.mubr.bf16.gmra.mrb[0].mxu0 %v1823
  %v2980 = vpop.f32.mrb[0].mxu0
  %v2981 = vadd.f32 %v2692, %v2980
  %v2982 = vpop.f32.mrb[0].mxu0
  %v2983 = vpop.f32.mrb[0].mxu0
  %v2984 = vadd.f32 %v2695, %v2983
  %v2985 = vpop.f32.mrb[0].mxu0
  %2986 = vmatprep.mubr.bf16.mxu0 %v1833
  %2987 = vmatmul.mubr.bf16.gmra.mrb[0].mxu0 %v1832
  %v2988 = vpop.f32.mrb[0].mxu0
  %v2989 = vadd.f32 %v2700, %v2988
  %v2990 = vpop.f32.mrb[0].mxu0
  %v2991 = vpop.f32.mrb[0].mxu0
  %v2992 = vadd.f32 %v2703, %v2991
  %v2993 = vpop.f32.mrb[0].mxu0
  %2994 = vmatprep.mubr.bf16.mxu0 %v1842
  %2995 = vmatmul.mubr.bf16.gmra.mrb[0].mxu0 %v1841
  %v2996 = vpop.f32.mrb[0].mxu0
  %v2997 = vadd.f32 %v2708, %v2996
  %v2998 = vpop.f32.mrb[0].mxu0
  %v2999 = vpop.f32.mrb[0].mxu0
  %v3000 = vadd.f32 %v2711, %v2999
  %v3001 = vpop.f32.mrb[0].mxu0
  %3002 = vmatprep.mubr.bf16.mxu0 %v1851
  %3003 = vmatmul.mubr.bf16.gmra.mrb[0].mxu0 %v1850
  %v3004 = vpop.f32.mrb[0].mxu0
  %v3005 = vadd.f32 %v2716, %v3004
  %v3006 = vpop.f32.mrb[0].mxu0
  %v3007 = vpop.f32.mrb[0].mxu0
  %v3008 = vadd.f32 %v2719, %v3007
  %v3009 = vpop.f32.mrb[0].mxu0
  %3010 = vdwg.mxu0
  %3011 = vmatprep.subr.bf16.mxu0 0
  %3012 = vmatpush1.bf16.msra.mxu0 %v2321
  %3013 = vmatprep.subr.bf16.mxu0 0
  %3014 = vmatpush1.bf16.msra.mxu0 %v2322
  %3015 = vmatprep.subr.bf16.mxu0 0
  %3016 = vmatpush1.bf16.msra.mxu0 %v2323
  %3017 = vmatprep.subr.bf16.mxu0 0
  %3018 = vmatpush1.bf16.msra.mxu0 %v2324
  %3019 = vmatprep.subr.bf16.mxu0 0
  %3020 = vmatpush1.bf16.msra.mxu0 %v2325
  %3021 = vmatprep.subr.bf16.mxu0 0
  %3022 = vmatpush1.bf16.msra.mxu0 %v2326
  %3023 = vmatprep.subr.bf16.mxu0 0
  %3024 = vmatpush1.bf16.msra.mxu0 %v2327
  %3025 = vmatprep.subr.bf16.mxu0 0
  %3026 = vmatpush1.bf16.msra.mxu0 %v2328
  %3027 = vmatprep.subr.bf16.mxu0 0
  %3028 = vmatpush1.bf16.msra.mxu0 %v2329
  %3029 = vmatprep.subr.bf16.mxu0 0
  %3030 = vmatpush1.bf16.msra.mxu0 %v2330
  %3031 = vmatprep.subr.bf16.mxu0 0
  %3032 = vmatpush1.bf16.msra.mxu0 %v2331
  %3033 = vmatprep.subr.bf16.mxu0 0
  %3034 = vmatpush1.bf16.msra.mxu0 %v2332
  %3035 = vmatprep.subr.bf16.mxu0 0
  %3036 = vmatpush1.bf16.msra.mxu0 %v2333
  %3037 = vmatprep.subr.bf16.mxu0 0
  %3038 = vmatpush1.bf16.msra.mxu0 %v2334
  %3039 = vmatprep.subr.bf16.mxu0 0
  %3040 = vmatpush1.bf16.msra.mxu0 %v2335
  %3041 = vmatprep.subr.bf16.mxu0 0
  %3042 = vmatpush1.bf16.msra.mxu0 %v2336
  %3043 = vmatprep.mubr.bf16.mxu0 %v1574
  %3044 = vmatmul.mubr.bf16.gmra.mrb[0].mxu0 %v1573
  %v3045 = vpop.f32.mrb[0].mxu0
  %v3046 = vadd.f32 %v2757, %v3045
  %v3047 = vpop.f32.mrb[0].mxu0
  %v3048 = vpop.f32.mrb[0].mxu0
  %v3049 = vadd.f32 %v2760, %v3048
  %v3050 = vpop.f32.mrb[0].mxu0
  %3051 = vmatprep.mubr.bf16.mxu0 %v1583
  %3052 = vmatmul.mubr.bf16.gmra.mrb[0].mxu0 %v1582
  %v3053 = vpop.f32.mrb[0].mxu0
  %v3054 = vadd.f32 %v2765, %v3053
  %v3055 = vpop.f32.mrb[0].mxu0
  %v3056 = vpop.f32.mrb[0].mxu0
  %v3057 = vadd.f32 %v2768, %v3056
  %v3058 = vpop.f32.mrb[0].mxu0
  %3059 = vmatprep.mubr.bf16.mxu0 %v1592
  %3060 = vmatmul.mubr.bf16.gmra.mrb[0].mxu0 %v1591
  %v3061 = vpop.f32.mrb[0].mxu0
  %v3062 = vadd.f32 %v2773, %v3061
  %v3063 = vpop.f32.mrb[0].mxu0
  %v3064 = vpop.f32.mrb[0].mxu0
  %v3065 = vadd.f32 %v2776, %v3064
  %v3066 = vpop.f32.mrb[0].mxu0
  %3067 = vmatprep.mubr.bf16.mxu0 %v1601
  %3068 = vmatmul.mubr.bf16.gmra.mrb[0].mxu0 %v1600
  %v3069 = vpop.f32.mrb[0].mxu0
  %v3070 = vadd.f32 %v2781, %v3069
  %v3071 = vpop.f32.mrb[0].mxu0
  %v3072 = vpop.f32.mrb[0].mxu0
  %v3073 = vadd.f32 %v2784, %v3072
  %v3074 = vpop.f32.mrb[0].mxu0
  %3075 = vmatprep.mubr.bf16.mxu0 %v1610
  %3076 = vmatmul.mubr.bf16.gmra.mrb[0].mxu0 %v1609
  %v3077 = vpop.f32.mrb[0].mxu0
  %v3078 = vadd.f32 %v2789, %v3077
  %v3079 = vpop.f32.mrb[0].mxu0
  %v3080 = vpop.f32.mrb[0].mxu0
  %v3081 = vadd.f32 %v2792, %v3080
  %v3082 = vpop.f32.mrb[0].mxu0
  %3083 = vmatprep.mubr.bf16.mxu0 %v1619
  %3084 = vmatmul.mubr.bf16.gmra.mrb[0].mxu0 %v1618
  %v3085 = vpop.f32.mrb[0].mxu0
  %v3086 = vadd.f32 %v2797, %v3085
  %v3087 = vpop.f32.mrb[0].mxu0
  %v3088 = vpop.f32.mrb[0].mxu0
  %v3089 = vadd.f32 %v2800, %v3088
  %v3090 = vpop.f32.mrb[0].mxu0
  %3091 = vmatprep.mubr.bf16.mxu0 %v1628
  %3092 = vmatmul.mubr.bf16.gmra.mrb[0].mxu0 %v1627
  %v3093 = vpop.f32.mrb[0].mxu0
  %v3094 = vadd.f32 %v2805, %v3093
  %v3095 = vpop.f32.mrb[0].mxu0
  %v3096 = vpop.f32.mrb[0].mxu0
  %v3097 = vadd.f32 %v2808, %v3096
  %v3098 = vpop.f32.mrb[0].mxu0
  %3099 = vmatprep.mubr.bf16.mxu0 %v1637
  %3100 = vmatmul.mubr.bf16.gmra.mrb[0].mxu0 %v1636
  %v3101 = vpop.f32.mrb[0].mxu0
  %v3102 = vadd.f32 %v2813, %v3101
  %v3103 = vpop.f32.mrb[0].mxu0
  %v3104 = vpop.f32.mrb[0].mxu0
  %v3105 = vadd.f32 %v2816, %v3104
  %v3106 = vpop.f32.mrb[0].mxu0
  %3107 = vmatprep.mubr.bf16.mxu0 %v1646
  %3108 = vmatmul.mubr.bf16.gmra.mrb[0].mxu0 %v1645
  %v3109 = vpop.f32.mrb[0].mxu0
  %v3110 = vadd.f32 %v2821, %v3109
  %v3111 = vpop.f32.mrb[0].mxu0
  %v3112 = vpop.f32.mrb[0].mxu0
  %v3113 = vadd.f32 %v2824, %v3112
  %v3114 = vpop.f32.mrb[0].mxu0
  %3115 = vmatprep.mubr.bf16.mxu0 %v1655
  %3116 = vmatmul.mubr.bf16.gmra.mrb[0].mxu0 %v1654
  %v3117 = vpop.f32.mrb[0].mxu0
  %v3118 = vadd.f32 %v2829, %v3117
  %v3119 = vpop.f32.mrb[0].mxu0
  %v3120 = vpop.f32.mrb[0].mxu0
  %v3121 = vadd.f32 %v2832, %v3120
  %v3122 = vpop.f32.mrb[0].mxu0
  %3123 = vmatprep.mubr.bf16.mxu0 %v1664
  %3124 = vmatmul.mubr.bf16.gmra.mrb[0].mxu0 %v1663
  %v3125 = vpop.f32.mrb[0].mxu0
  %v3126 = vadd.f32 %v2837, %v3125
  %v3127 = vpop.f32.mrb[0].mxu0
  %v3128 = vpop.f32.mrb[0].mxu0
  %v3129 = vadd.f32 %v2840, %v3128
  %v3130 = vpop.f32.mrb[0].mxu0
  %3131 = vmatprep.mubr.bf16.mxu0 %v1673
  %3132 = vmatmul.mubr.bf16.gmra.mrb[0].mxu0 %v1672
  %v3133 = vpop.f32.mrb[0].mxu0
  %v3134 = vadd.f32 %v2845, %v3133
  %v3135 = vpop.f32.mrb[0].mxu0
  %v3136 = vpop.f32.mrb[0].mxu0
  %v3137 = vadd.f32 %v2848, %v3136
  %v3138 = vpop.f32.mrb[0].mxu0
  %3139 = vmatprep.mubr.bf16.mxu0 %v1682
  %3140 = vmatmul.mubr.bf16.gmra.mrb[0].mxu0 %v1681
  %v3141 = vpop.f32.mrb[0].mxu0
  %v3142 = vadd.f32 %v2853, %v3141
  %v3143 = vpop.f32.mrb[0].mxu0
  %v3144 = vpop.f32.mrb[0].mxu0
  %v3145 = vadd.f32 %v2856, %v3144
  %v3146 = vpop.f32.mrb[0].mxu0
  %3147 = vmatprep.mubr.bf16.mxu0 %v1691
  %3148 = vmatmul.mubr.bf16.gmra.mrb[0].mxu0 %v1690
  %v3149 = vpop.f32.mrb[0].mxu0
  %v3150 = vadd.f32 %v2861, %v3149
  %v3151 = vpop.f32.mrb[0].mxu0
  %v3152 = vpop.f32.mrb[0].mxu0
  %v3153 = vadd.f32 %v2864, %v3152
  %v3154 = vpop.f32.mrb[0].mxu0
  %3155 = vmatprep.mubr.bf16.mxu0 %v1700
  %3156 = vmatmul.mubr.bf16.gmra.mrb[0].mxu0 %v1699
  %v3157 = vpop.f32.mrb[0].mxu0
  %v3158 = vadd.f32 %v2869, %v3157
  %v3159 = vpop.f32.mrb[0].mxu0
  %v3160 = vpop.f32.mrb[0].mxu0
  %v3161 = vadd.f32 %v2872, %v3160
  %v3162 = vpop.f32.mrb[0].mxu0
  %3163 = vmatprep.mubr.bf16.mxu0 %v1709
  %3164 = vmatmul.mubr.bf16.gmra.mrb[0].mxu0 %v1708
  %v3165 = vpop.f32.mrb[0].mxu0
  %v3166 = vadd.f32 %v2877, %v3165
  %v3167 = vpop.f32.mrb[0].mxu0
  %v3168 = vpop.f32.mrb[0].mxu0
  %v3169 = vadd.f32 %v2880, %v3168
  %v3170 = vpop.f32.mrb[0].mxu0
  %3171 = vmatprep.mubr.bf16.mxu0 %v1718
  %3172 = vmatmul.mubr.bf16.gmra.mrb[0].mxu0 %v1717
  %v3173 = vpop.f32.mrb[0].mxu0
  %v3174 = vadd.f32 %v2885, %v3173
  %v3175 = vpop.f32.mrb[0].mxu0
  %v3176 = vpop.f32.mrb[0].mxu0
  %v3177 = vadd.f32 %v2888, %v3176
  %v3178 = vpop.f32.mrb[0].mxu0
  %3179 = vmatprep.mubr.bf16.mxu0 %v1727
  %3180 = vmatmul.mubr.bf16.gmra.mrb[0].mxu0 %v1726
  %v3181 = vpop.f32.mrb[0].mxu0
  %v3182 = vadd.f32 %v2893, %v3181
  %v3183 = vpop.f32.mrb[0].mxu0
  %v3184 = vpop.f32.mrb[0].mxu0
  %v3185 = vadd.f32 %v2896, %v3184
  %v3186 = vpop.f32.mrb[0].mxu0
  %3187 = vmatprep.mubr.bf16.mxu0 %v1736
  %3188 = vmatmul.mubr.bf16.gmra.mrb[0].mxu0 %v1735
  %v3189 = vpop.f32.mrb[0].mxu0
  %v3190 = vadd.f32 %v2901, %v3189
  %v3191 = vpop.f32.mrb[0].mxu0
  %v3192 = vpop.f32.mrb[0].mxu0
  %v3193 = vadd.f32 %v2904, %v3192
  %v3194 = vpop.f32.mrb[0].mxu0
  %3195 = vmatprep.mubr.bf16.mxu0 %v1745
  %3196 = vmatmul.mubr.bf16.gmra.mrb[0].mxu0 %v1744
  %v3197 = vpop.f32.mrb[0].mxu0
  %v3198 = vadd.f32 %v2909, %v3197
  %v3199 = vpop.f32.mrb[0].mxu0
  %v3200 = vpop.f32.mrb[0].mxu0
  %v3201 = vadd.f32 %v2912, %v3200
  %v3202 = vpop.f32.mrb[0].mxu0
  %3203 = vmatprep.mubr.bf16.mxu0 %v1754
  %3204 = vmatmul.mubr.bf16.gmra.mrb[0].mxu0 %v1753
  %v3205 = vpop.f32.mrb[0].mxu0
  %v3206 = vadd.f32 %v2917, %v3205
  %v3207 = vpop.f32.mrb[0].mxu0
  %v3208 = vpop.f32.mrb[0].mxu0
  %v3209 = vadd.f32 %v2920, %v3208
  %v3210 = vpop.f32.mrb[0].mxu0
  %3211 = vmatprep.mubr.bf16.mxu0 %v1763
  %3212 = vmatmul.mubr.bf16.gmra.mrb[0].mxu0 %v1762
  %v3213 = vpop.f32.mrb[0].mxu0
  %v3214 = vadd.f32 %v2925, %v3213
  %v3215 = vpop.f32.mrb[0].mxu0
  %v3216 = vpop.f32.mrb[0].mxu0
  %v3217 = vadd.f32 %v2928, %v3216
  %v3218 = vpop.f32.mrb[0].mxu0
  %3219 = vmatprep.mubr.bf16.mxu0 %v1772
  %3220 = vmatmul.mubr.bf16.gmra.mrb[0].mxu0 %v1771
  %v3221 = vpop.f32.mrb[0].mxu0
  %v3222 = vadd.f32 %v2933, %v3221
  %v3223 = vpop.f32.mrb[0].mxu0
  %v3224 = vpop.f32.mrb[0].mxu0
  %v3225 = vadd.f32 %v2936, %v3224
  %v3226 = vpop.f32.mrb[0].mxu0
  %3227 = vmatprep.mubr.bf16.mxu0 %v1781
  %3228 = vmatmul.mubr.bf16.gmra.mrb[0].mxu0 %v1780
  %v3229 = vpop.f32.mrb[0].mxu0
  %v3230 = vadd.f32 %v2941, %v3229
  %v3231 = vpop.f32.mrb[0].mxu0
  %v3232 = vpop.f32.mrb[0].mxu0
  %v3233 = vadd.f32 %v2944, %v3232
  %v3234 = vpop.f32.mrb[0].mxu0
  %3235 = vmatprep.mubr.bf16.mxu0 %v1790
  %3236 = vmatmul.mubr.bf16.gmra.mrb[0].mxu0 %v1789
  %v3237 = vpop.f32.mrb[0].mxu0
  %v3238 = vadd.f32 %v2949, %v3237
  %v3239 = vpop.f32.mrb[0].mxu0
  %v3240 = vpop.f32.mrb[0].mxu0
  %v3241 = vadd.f32 %v2952, %v3240
  %v3242 = vpop.f32.mrb[0].mxu0
  %3243 = vmatprep.mubr.bf16.mxu0 %v1799
  %3244 = vmatmul.mubr.bf16.gmra.mrb[0].mxu0 %v1798
  %v3245 = vpop.f32.mrb[0].mxu0
  %v3246 = vadd.f32 %v2957, %v3245
  %v3247 = vpop.f32.mrb[0].mxu0
  %v3248 = vpop.f32.mrb[0].mxu0
  %v3249 = vadd.f32 %v2960, %v3248
  %v3250 = vpop.f32.mrb[0].mxu0
  %3251 = vmatprep.mubr.bf16.mxu0 %v1808
  %3252 = vmatmul.mubr.bf16.gmra.mrb[0].mxu0 %v1807
  %v3253 = vpop.f32.mrb[0].mxu0
  %v3254 = vadd.f32 %v2965, %v3253
  %v3255 = vpop.f32.mrb[0].mxu0
  %v3256 = vpop.f32.mrb[0].mxu0
  %v3257 = vadd.f32 %v2968, %v3256
  %v3258 = vpop.f32.mrb[0].mxu0
  %3259 = vmatprep.mubr.bf16.mxu0 %v1817
  %3260 = vmatmul.mubr.bf16.gmra.mrb[0].mxu0 %v1816
  %v3261 = vpop.f32.mrb[0].mxu0
  %v3262 = vadd.f32 %v2973, %v3261
  %v3263 = vpop.f32.mrb[0].mxu0
  %v3264 = vpop.f32.mrb[0].mxu0
  %v3265 = vadd.f32 %v2976, %v3264
  %v3266 = vpop.f32.mrb[0].mxu0
  %3267 = vmatprep.mubr.bf16.mxu0 %v1826
  %3268 = vmatmul.mubr.bf16.gmra.mrb[0].mxu0 %v1825
  %v3269 = vpop.f32.mrb[0].mxu0
  %v3270 = vadd.f32 %v2981, %v3269
  %v3271 = vpop.f32.mrb[0].mxu0
  %v3272 = vpop.f32.mrb[0].mxu0
  %v3273 = vadd.f32 %v2984, %v3272
  %v3274 = vpop.f32.mrb[0].mxu0
  %3275 = vmatprep.mubr.bf16.mxu0 %v1835
  %3276 = vmatmul.mubr.bf16.gmra.mrb[0].mxu0 %v1834
  %v3277 = vpop.f32.mrb[0].mxu0
  %v3278 = vadd.f32 %v2989, %v3277
  %v3279 = vpop.f32.mrb[0].mxu0
  %v3280 = vpop.f32.mrb[0].mxu0
  %v3281 = vadd.f32 %v2992, %v3280
  %v3282 = vpop.f32.mrb[0].mxu0
  %3283 = vmatprep.mubr.bf16.mxu0 %v1844
  %3284 = vmatmul.mubr.bf16.gmra.mrb[0].mxu0 %v1843
  %v3285 = vpop.f32.mrb[0].mxu0
  %v3286 = vadd.f32 %v2997, %v3285
  %v3287 = vpop.f32.mrb[0].mxu0
  %v3288 = vpop.f32.mrb[0].mxu0
  %v3289 = vadd.f32 %v3000, %v3288
  %v3290 = vpop.f32.mrb[0].mxu0
  %3291 = vmatprep.mubr.bf16.mxu0 %v1853
  %3292 = vmatmul.mubr.bf16.gmra.mrb[0].mxu0 %v1852
  %v3293 = vpop.f32.mrb[0].mxu0
  %v3294 = vadd.f32 %v3005, %v3293
  %v3295 = vpop.f32.mrb[0].mxu0
  %v3296 = vpop.f32.mrb[0].mxu0
  %v3297 = vadd.f32 %v3008, %v3296
  %v3298 = vpop.f32.mrb[0].mxu0
  %3299 = vdwg.mxu0
  %3300 = vmatprep.subr.bf16.mxu0 0
  %3301 = vmatpush1.bf16.msra.mxu0 %v2337
  %3302 = vmatprep.subr.bf16.mxu0 0
  %3303 = vmatpush1.bf16.msra.mxu0 %v2338
  %3304 = vmatprep.subr.bf16.mxu0 0
  %3305 = vmatpush1.bf16.msra.mxu0 %v2339
  %3306 = vmatprep.subr.bf16.mxu0 0
  %3307 = vmatpush1.bf16.msra.mxu0 %v2340
  %3308 = vmatprep.subr.bf16.mxu0 0
  %3309 = vmatpush1.bf16.msra.mxu0 %v2341
  %3310 = vmatprep.subr.bf16.mxu0 0
  %3311 = vmatpush1.bf16.msra.mxu0 %v2342
  %3312 = vmatprep.subr.bf16.mxu0 0
  %3313 = vmatpush1.bf16.msra.mxu0 %v2343
  %3314 = vmatprep.subr.bf16.mxu0 0
  %3315 = vmatpush1.bf16.msra.mxu0 %v2344
  %3316 = vmatprep.subr.bf16.mxu0 0
  %3317 = vmatpush1.bf16.msra.mxu0 %v2345
  %3318 = vmatprep.subr.bf16.mxu0 0
  %3319 = vmatpush1.bf16.msra.mxu0 %v2346
  %3320 = vmatprep.subr.bf16.mxu0 0
  %3321 = vmatpush1.bf16.msra.mxu0 %v2347
  %3322 = vmatprep.subr.bf16.mxu0 0
  %3323 = vmatpush1.bf16.msra.mxu0 %v2348
  %3324 = vmatprep.subr.bf16.mxu0 0
  %3325 = vmatpush1.bf16.msra.mxu0 %v2349
  %3326 = vmatprep.subr.bf16.mxu0 0
  %3327 = vmatpush1.bf16.msra.mxu0 %v2350
  %3328 = vmatprep.subr.bf16.mxu0 0
  %3329 = vmatpush1.bf16.msra.mxu0 %v2351
  %3330 = vmatprep.subr.bf16.mxu0 0
  %3331 = vmatpush1.bf16.msra.mxu0 %v2352
  %3332 = vmatprep.mubr.bf16.mxu0 %v1576
  %3333 = vmatmul.mubr.bf16.gmra.mrb[0].mxu0 %v1575
  %v3334 = vpop.f32.mrb[0].mxu0
  %v3335 = vadd.f32 %v3046, %v3334
  %v3336 = vpop.f32.mrb[0].mxu0
  %v3337 = vpop.f32.mrb[0].mxu0
  %v3338 = vadd.f32 %v3049, %v3337
  %v3339 = vpop.f32.mrb[0].mxu0
  %3340 = vmatprep.mubr.bf16.mxu0 %v1585
  %3341 = vmatmul.mubr.bf16.gmra.mrb[0].mxu0 %v1584
  %v3342 = vpop.f32.mrb[0].mxu0
  %v3343 = vadd.f32 %v3054, %v3342
  %v3344 = vpop.f32.mrb[0].mxu0
  %v3345 = vpop.f32.mrb[0].mxu0
  %v3346 = vadd.f32 %v3057, %v3345
  %v3347 = vpop.f32.mrb[0].mxu0
  %3348 = vmatprep.mubr.bf16.mxu0 %v1594
  %3349 = vmatmul.mubr.bf16.gmra.mrb[0].mxu0 %v1593
  %v3350 = vpop.f32.mrb[0].mxu0
  %v3351 = vadd.f32 %v3062, %v3350
  %v3352 = vpop.f32.mrb[0].mxu0
  %v3353 = vpop.f32.mrb[0].mxu0
  %v3354 = vadd.f32 %v3065, %v3353
  %v3355 = vpop.f32.mrb[0].mxu0
  %3356 = vmatprep.mubr.bf16.mxu0 %v1603
  %3357 = vmatmul.mubr.bf16.gmra.mrb[0].mxu0 %v1602
  %v3358 = vpop.f32.mrb[0].mxu0
  %v3359 = vadd.f32 %v3070, %v3358
  %v3360 = vpop.f32.mrb[0].mxu0
  %v3361 = vpop.f32.mrb[0].mxu0
  %v3362 = vadd.f32 %v3073, %v3361
  %v3363 = vpop.f32.mrb[0].mxu0
  %3364 = vmatprep.mubr.bf16.mxu0 %v1612
  %3365 = vmatmul.mubr.bf16.gmra.mrb[0].mxu0 %v1611
  %v3366 = vpop.f32.mrb[0].mxu0
  %v3367 = vadd.f32 %v3078, %v3366
  %v3368 = vpop.f32.mrb[0].mxu0
  %v3369 = vpop.f32.mrb[0].mxu0
  %v3370 = vadd.f32 %v3081, %v3369
  %v3371 = vpop.f32.mrb[0].mxu0
  %3372 = vmatprep.mubr.bf16.mxu0 %v1621
  %3373 = vmatmul.mubr.bf16.gmra.mrb[0].mxu0 %v1620
  %v3374 = vpop.f32.mrb[0].mxu0
  %v3375 = vadd.f32 %v3086, %v3374
  %v3376 = vpop.f32.mrb[0].mxu0
  %v3377 = vpop.f32.mrb[0].mxu0
  %v3378 = vadd.f32 %v3089, %v3377
  %v3379 = vpop.f32.mrb[0].mxu0
  %3380 = vmatprep.mubr.bf16.mxu0 %v1630
  %3381 = vmatmul.mubr.bf16.gmra.mrb[0].mxu0 %v1629
  %v3382 = vpop.f32.mrb[0].mxu0
  %v3383 = vadd.f32 %v3094, %v3382
  %v3384 = vpop.f32.mrb[0].mxu0
  %v3385 = vpop.f32.mrb[0].mxu0
  %v3386 = vadd.f32 %v3097, %v3385
  %v3387 = vpop.f32.mrb[0].mxu0
  %3388 = vmatprep.mubr.bf16.mxu0 %v1639
  %3389 = vmatmul.mubr.bf16.gmra.mrb[0].mxu0 %v1638
  %v3390 = vpop.f32.mrb[0].mxu0
  %v3391 = vadd.f32 %v3102, %v3390
  %v3392 = vpop.f32.mrb[0].mxu0
  %v3393 = vpop.f32.mrb[0].mxu0
  %v3394 = vadd.f32 %v3105, %v3393
  %v3395 = vpop.f32.mrb[0].mxu0
  %3396 = vmatprep.mubr.bf16.mxu0 %v1648
  %3397 = vmatmul.mubr.bf16.gmra.mrb[0].mxu0 %v1647
  %v3398 = vpop.f32.mrb[0].mxu0
  %v3399 = vadd.f32 %v3110, %v3398
  %v3400 = vpop.f32.mrb[0].mxu0
  %v3401 = vpop.f32.mrb[0].mxu0
  %v3402 = vadd.f32 %v3113, %v3401
  %v3403 = vpop.f32.mrb[0].mxu0
  %3404 = vmatprep.mubr.bf16.mxu0 %v1657
  %3405 = vmatmul.mubr.bf16.gmra.mrb[0].mxu0 %v1656
  %v3406 = vpop.f32.mrb[0].mxu0
  %v3407 = vadd.f32 %v3118, %v3406
  %v3408 = vpop.f32.mrb[0].mxu0
  %v3409 = vpop.f32.mrb[0].mxu0
  %v3410 = vadd.f32 %v3121, %v3409
  %v3411 = vpop.f32.mrb[0].mxu0
  %3412 = vmatprep.mubr.bf16.mxu0 %v1666
  %3413 = vmatmul.mubr.bf16.gmra.mrb[0].mxu0 %v1665
  %v3414 = vpop.f32.mrb[0].mxu0
  %v3415 = vadd.f32 %v3126, %v3414
  %v3416 = vpop.f32.mrb[0].mxu0
  %v3417 = vpop.f32.mrb[0].mxu0
  %v3418 = vadd.f32 %v3129, %v3417
  %v3419 = vpop.f32.mrb[0].mxu0
  %3420 = vmatprep.mubr.bf16.mxu0 %v1675
  %3421 = vmatmul.mubr.bf16.gmra.mrb[0].mxu0 %v1674
  %v3422 = vpop.f32.mrb[0].mxu0
  %v3423 = vadd.f32 %v3134, %v3422
  %v3424 = vpop.f32.mrb[0].mxu0
  %v3425 = vpop.f32.mrb[0].mxu0
  %v3426 = vadd.f32 %v3137, %v3425
  %v3427 = vpop.f32.mrb[0].mxu0
  %3428 = vmatprep.mubr.bf16.mxu0 %v1684
  %3429 = vmatmul.mubr.bf16.gmra.mrb[0].mxu0 %v1683
  %v3430 = vpop.f32.mrb[0].mxu0
  %v3431 = vadd.f32 %v3142, %v3430
  %v3432 = vpop.f32.mrb[0].mxu0
  %v3433 = vpop.f32.mrb[0].mxu0
  %v3434 = vadd.f32 %v3145, %v3433
  %v3435 = vpop.f32.mrb[0].mxu0
  %3436 = vmatprep.mubr.bf16.mxu0 %v1693
  %3437 = vmatmul.mubr.bf16.gmra.mrb[0].mxu0 %v1692
  %v3438 = vpop.f32.mrb[0].mxu0
  %v3439 = vadd.f32 %v3150, %v3438
  %v3440 = vpop.f32.mrb[0].mxu0
  %v3441 = vpop.f32.mrb[0].mxu0
  %v3442 = vadd.f32 %v3153, %v3441
  %v3443 = vpop.f32.mrb[0].mxu0
  %3444 = vmatprep.mubr.bf16.mxu0 %v1702
  %3445 = vmatmul.mubr.bf16.gmra.mrb[0].mxu0 %v1701
  %v3446 = vpop.f32.mrb[0].mxu0
  %v3447 = vadd.f32 %v3158, %v3446
  %v3448 = vpop.f32.mrb[0].mxu0
  %v3449 = vpop.f32.mrb[0].mxu0
  %v3450 = vadd.f32 %v3161, %v3449
  %v3451 = vpop.f32.mrb[0].mxu0
  %3452 = vmatprep.mubr.bf16.mxu0 %v1711
  %3453 = vmatmul.mubr.bf16.gmra.mrb[0].mxu0 %v1710
  %v3454 = vpop.f32.mrb[0].mxu0
  %v3455 = vadd.f32 %v3166, %v3454
  %v3456 = vpop.f32.mrb[0].mxu0
  %v3457 = vpop.f32.mrb[0].mxu0
  %v3458 = vadd.f32 %v3169, %v3457
  %v3459 = vpop.f32.mrb[0].mxu0
  %3460 = vmatprep.mubr.bf16.mxu0 %v1720
  %3461 = vmatmul.mubr.bf16.gmra.mrb[0].mxu0 %v1719
  %v3462 = vpop.f32.mrb[0].mxu0
  %v3463 = vadd.f32 %v3174, %v3462
  %v3464 = vpop.f32.mrb[0].mxu0
  %v3465 = vpop.f32.mrb[0].mxu0
  %v3466 = vadd.f32 %v3177, %v3465
  %v3467 = vpop.f32.mrb[0].mxu0
  %3468 = vmatprep.mubr.bf16.mxu0 %v1729
  %3469 = vmatmul.mubr.bf16.gmra.mrb[0].mxu0 %v1728
  %v3470 = vpop.f32.mrb[0].mxu0
  %v3471 = vadd.f32 %v3182, %v3470
  %v3472 = vpop.f32.mrb[0].mxu0
  %v3473 = vpop.f32.mrb[0].mxu0
  %v3474 = vadd.f32 %v3185, %v3473
  %v3475 = vpop.f32.mrb[0].mxu0
  %3476 = vmatprep.mubr.bf16.mxu0 %v1738
  %3477 = vmatmul.mubr.bf16.gmra.mrb[0].mxu0 %v1737
  %v3478 = vpop.f32.mrb[0].mxu0
  %v3479 = vadd.f32 %v3190, %v3478
  %v3480 = vpop.f32.mrb[0].mxu0
  %v3481 = vpop.f32.mrb[0].mxu0
  %v3482 = vadd.f32 %v3193, %v3481
  %v3483 = vpop.f32.mrb[0].mxu0
  %3484 = vmatprep.mubr.bf16.mxu0 %v1747
  %3485 = vmatmul.mubr.bf16.gmra.mrb[0].mxu0 %v1746
  %v3486 = vpop.f32.mrb[0].mxu0
  %v3487 = vadd.f32 %v3198, %v3486
  %v3488 = vpop.f32.mrb[0].mxu0
  %v3489 = vpop.f32.mrb[0].mxu0
  %v3490 = vadd.f32 %v3201, %v3489
  %v3491 = vpop.f32.mrb[0].mxu0
  %3492 = vmatprep.mubr.bf16.mxu0 %v1756
  %3493 = vmatmul.mubr.bf16.gmra.mrb[0].mxu0 %v1755
  %v3494 = vpop.f32.mrb[0].mxu0
  %v3495 = vadd.f32 %v3206, %v3494
  %v3496 = vpop.f32.mrb[0].mxu0
  %v3497 = vpop.f32.mrb[0].mxu0
  %v3498 = vadd.f32 %v3209, %v3497
  %v3499 = vpop.f32.mrb[0].mxu0
  %3500 = vmatprep.mubr.bf16.mxu0 %v1765
  %3501 = vmatmul.mubr.bf16.gmra.mrb[0].mxu0 %v1764
  %v3502 = vpop.f32.mrb[0].mxu0
  %v3503 = vadd.f32 %v3214, %v3502
  %v3504 = vpop.f32.mrb[0].mxu0
  %v3505 = vpop.f32.mrb[0].mxu0
  %v3506 = vadd.f32 %v3217, %v3505
  %v3507 = vpop.f32.mrb[0].mxu0
  %3508 = vmatprep.mubr.bf16.mxu0 %v1774
  %3509 = vmatmul.mubr.bf16.gmra.mrb[0].mxu0 %v1773
  %v3510 = vpop.f32.mrb[0].mxu0
  %v3511 = vadd.f32 %v3222, %v3510
  %v3512 = vpop.f32.mrb[0].mxu0
  %v3513 = vpop.f32.mrb[0].mxu0
  %v3514 = vadd.f32 %v3225, %v3513
  %v3515 = vpop.f32.mrb[0].mxu0
  %3516 = vmatprep.mubr.bf16.mxu0 %v1783
  %3517 = vmatmul.mubr.bf16.gmra.mrb[0].mxu0 %v1782
  %v3518 = vpop.f32.mrb[0].mxu0
  %v3519 = vadd.f32 %v3230, %v3518
  %v3520 = vpop.f32.mrb[0].mxu0
  %v3521 = vpop.f32.mrb[0].mxu0
  %v3522 = vadd.f32 %v3233, %v3521
  %v3523 = vpop.f32.mrb[0].mxu0
  %3524 = vmatprep.mubr.bf16.mxu0 %v1792
  %3525 = vmatmul.mubr.bf16.gmra.mrb[0].mxu0 %v1791
  %v3526 = vpop.f32.mrb[0].mxu0
  %v3527 = vadd.f32 %v3238, %v3526
  %v3528 = vpop.f32.mrb[0].mxu0
  %v3529 = vpop.f32.mrb[0].mxu0
  %v3530 = vadd.f32 %v3241, %v3529
  %v3531 = vpop.f32.mrb[0].mxu0
  %3532 = vmatprep.mubr.bf16.mxu0 %v1801
  %3533 = vmatmul.mubr.bf16.gmra.mrb[0].mxu0 %v1800
  %v3534 = vpop.f32.mrb[0].mxu0
  %v3535 = vadd.f32 %v3246, %v3534
  %v3536 = vpop.f32.mrb[0].mxu0
  %v3537 = vpop.f32.mrb[0].mxu0
  %v3538 = vadd.f32 %v3249, %v3537
  %v3539 = vpop.f32.mrb[0].mxu0
  %3540 = vmatprep.mubr.bf16.mxu0 %v1810
  %3541 = vmatmul.mubr.bf16.gmra.mrb[0].mxu0 %v1809
  %v3542 = vpop.f32.mrb[0].mxu0
  %v3543 = vadd.f32 %v3254, %v3542
  %v3544 = vpop.f32.mrb[0].mxu0
  %v3545 = vpop.f32.mrb[0].mxu0
  %v3546 = vadd.f32 %v3257, %v3545
  %v3547 = vpop.f32.mrb[0].mxu0
  %3548 = vmatprep.mubr.bf16.mxu0 %v1819
  %3549 = vmatmul.mubr.bf16.gmra.mrb[0].mxu0 %v1818
  %v3550 = vpop.f32.mrb[0].mxu0
  %v3551 = vadd.f32 %v3262, %v3550
  %v3552 = vpop.f32.mrb[0].mxu0
  %v3553 = vpop.f32.mrb[0].mxu0
  %v3554 = vadd.f32 %v3265, %v3553
  %v3555 = vpop.f32.mrb[0].mxu0
  %3556 = vmatprep.mubr.bf16.mxu0 %v1828
  %3557 = vmatmul.mubr.bf16.gmra.mrb[0].mxu0 %v1827
  %v3558 = vpop.f32.mrb[0].mxu0
  %v3559 = vadd.f32 %v3270, %v3558
  %v3560 = vpop.f32.mrb[0].mxu0
  %v3561 = vpop.f32.mrb[0].mxu0
  %v3562 = vadd.f32 %v3273, %v3561
  %v3563 = vpop.f32.mrb[0].mxu0
  %3564 = vmatprep.mubr.bf16.mxu0 %v1837
  %3565 = vmatmul.mubr.bf16.gmra.mrb[0].mxu0 %v1836
  %v3566 = vpop.f32.mrb[0].mxu0
  %v3567 = vadd.f32 %v3278, %v3566
  %v3568 = vpop.f32.mrb[0].mxu0
  %v3569 = vpop.f32.mrb[0].mxu0
  %v3570 = vadd.f32 %v3281, %v3569
  %v3571 = vpop.f32.mrb[0].mxu0
  %3572 = vmatprep.mubr.bf16.mxu0 %v1846
  %3573 = vmatmul.mubr.bf16.gmra.mrb[0].mxu0 %v1845
  %v3574 = vpop.f32.mrb[0].mxu0
  %v3575 = vadd.f32 %v3286, %v3574
  %v3576 = vpop.f32.mrb[0].mxu0
  %v3577 = vpop.f32.mrb[0].mxu0
  %v3578 = vadd.f32 %v3289, %v3577
  %v3579 = vpop.f32.mrb[0].mxu0
  %3580 = vmatprep.mubr.bf16.mxu0 %v1855
  %3581 = vmatmul.mubr.bf16.gmra.mrb[0].mxu0 %v1854
  %v3582 = vpop.f32.mrb[0].mxu0
  %v3583 = vadd.f32 %v3294, %v3582
  %v3584 = vpop.f32.mrb[0].mxu0
  %v3585 = vpop.f32.mrb[0].mxu0
  %v3586 = vadd.f32 %v3297, %v3585
  %v3587 = vpop.f32.mrb[0].mxu0
  %3588 = vdwg.mxu0
  %3589 = vmatprep.subr.bf16.mxu0 0
  %3590 = vmatpush1.bf16.msra.mxu0 %v2353
  %3591 = vmatprep.subr.bf16.mxu0 0
  %3592 = vmatpush1.bf16.msra.mxu0 %v2354
  %3593 = vmatprep.subr.bf16.mxu0 0
  %3594 = vmatpush1.bf16.msra.mxu0 %v2355
  %3595 = vmatprep.subr.bf16.mxu0 0
  %3596 = vmatpush1.bf16.msra.mxu0 %v2356
  %3597 = vmatprep.subr.bf16.mxu0 0
  %3598 = vmatpush1.bf16.msra.mxu0 %v2357
  %3599 = vmatprep.subr.bf16.mxu0 0
  %3600 = vmatpush1.bf16.msra.mxu0 %v2358
  %3601 = vmatprep.subr.bf16.mxu0 0
  %3602 = vmatpush1.bf16.msra.mxu0 %v2359
  %3603 = vmatprep.subr.bf16.mxu0 0
  %3604 = vmatpush1.bf16.msra.mxu0 %v2360
  %3605 = vmatprep.subr.bf16.mxu0 0
  %3606 = vmatpush1.bf16.msra.mxu0 0
  %3607 = vmatprep.subr.bf16.mxu0 0
  %3608 = vmatpush1.bf16.msra.mxu0 0
  %3609 = vmatprep.subr.bf16.mxu0 0
  %3610 = vmatpush1.bf16.msra.mxu0 0
  %3611 = vmatprep.subr.bf16.mxu0 0
  %3612 = vmatpush1.bf16.msra.mxu0 0
  %3613 = vmatprep.subr.bf16.mxu0 0
  %3614 = vmatpush1.bf16.msra.mxu0 0
  %3615 = vmatprep.subr.bf16.mxu0 0
  %3616 = vmatpush1.bf16.msra.mxu0 0
  %3617 = vmatprep.subr.bf16.mxu0 0
  %3618 = vmatpush1.bf16.msra.mxu0 0
  %3619 = vmatprep.subr.bf16.mxu0 0
  %3620 = vmatpush1.bf16.msra.mxu0 0
  %3621 = vmatprep.mubr.bf16.mxu0 0
  %3622 = vmatmul.mubr.bf16.gmra.mrb[0].mxu0 %v1577
  %v3623 = vpop.f32.mrb[0].mxu0
  %v3624 = vadd.f32 %v3335, %v3623
  %v3625 = vpop.f32.mrb[0].mxu0
  %v3626 = vpop.f32.mrb[0].mxu0
  %v3627 = vadd.f32 %v3338, %v3626
  %v3628 = vpop.f32.mrb[0].mxu0
  %3629 = vmatprep.mubr.bf16.mxu0 0
  %3630 = vmatmul.mubr.bf16.gmra.mrb[0].mxu0 %v1586
  %v3631 = vpop.f32.mrb[0].mxu0
  %v3632 = vadd.f32 %v3343, %v3631
  %v3633 = vpop.f32.mrb[0].mxu0
  %v3634 = vpop.f32.mrb[0].mxu0
  %v3635 = vadd.f32 %v3346, %v3634
  %v3636 = vpop.f32.mrb[0].mxu0
  %3637 = vmatprep.mubr.bf16.mxu0 0
  %3638 = vmatmul.mubr.bf16.gmra.mrb[0].mxu0 %v1595
  %v3639 = vpop.f32.mrb[0].mxu0
  %v3640 = vadd.f32 %v3351, %v3639
  %v3641 = vpop.f32.mrb[0].mxu0
  %v3642 = vpop.f32.mrb[0].mxu0
  %v3643 = vadd.f32 %v3354, %v3642
  %v3644 = vpop.f32.mrb[0].mxu0
  %3645 = vmatprep.mubr.bf16.mxu0 0
  %3646 = vmatmul.mubr.bf16.gmra.mrb[0].mxu0 %v1604
  %v3647 = vpop.f32.mrb[0].mxu0
  %v3648 = vadd.f32 %v3359, %v3647
  %v3649 = vpop.f32.mrb[0].mxu0
  %v3650 = vpop.f32.mrb[0].mxu0
  %v3651 = vadd.f32 %v3362, %v3650
  %v3652 = vpop.f32.mrb[0].mxu0
  %3653 = vmatprep.mubr.bf16.mxu0 0
  %3654 = vmatmul.mubr.bf16.gmra.mrb[0].mxu0 %v1613
  %v3655 = vpop.f32.mrb[0].mxu0
  %v3656 = vadd.f32 %v3367, %v3655
  %v3657 = vpop.f32.mrb[0].mxu0
  %v3658 = vpop.f32.mrb[0].mxu0
  %v3659 = vadd.f32 %v3370, %v3658
  %v3660 = vpop.f32.mrb[0].mxu0
  %3661 = vmatprep.mubr.bf16.mxu0 0
  %3662 = vmatmul.mubr.bf16.gmra.mrb[0].mxu0 %v1622
  %v3663 = vpop.f32.mrb[0].mxu0
  %v3664 = vadd.f32 %v3375, %v3663
  %v3665 = vpop.f32.mrb[0].mxu0
  %v3666 = vpop.f32.mrb[0].mxu0
  %v3667 = vadd.f32 %v3378, %v3666
  %v3668 = vpop.f32.mrb[0].mxu0
  %3669 = vmatprep.mubr.bf16.mxu0 0
  %3670 = vmatmul.mubr.bf16.gmra.mrb[0].mxu0 %v1631
  %v3671 = vpop.f32.mrb[0].mxu0
  %v3672 = vadd.f32 %v3383, %v3671
  %v3673 = vpop.f32.mrb[0].mxu0
  %v3674 = vpop.f32.mrb[0].mxu0
  %v3675 = vadd.f32 %v3386, %v3674
  %v3676 = vpop.f32.mrb[0].mxu0
  %3677 = vmatprep.mubr.bf16.mxu0 0
  %3678 = vmatmul.mubr.bf16.gmra.mrb[0].mxu0 %v1640
  %v3679 = vpop.f32.mrb[0].mxu0
  %v3680 = vadd.f32 %v3391, %v3679
  %v3681 = vpop.f32.mrb[0].mxu0
  %v3682 = vpop.f32.mrb[0].mxu0
  %v3683 = vadd.f32 %v3394, %v3682
  %v3684 = vpop.f32.mrb[0].mxu0
  %3685 = vmatprep.mubr.bf16.mxu0 0
  %3686 = vmatmul.mubr.bf16.gmra.mrb[0].mxu0 %v1649
  %v3687 = vpop.f32.mrb[0].mxu0
  %v3688 = vadd.f32 %v3399, %v3687
  %v3689 = vpop.f32.mrb[0].mxu0
  %v3690 = vpop.f32.mrb[0].mxu0
  %v3691 = vadd.f32 %v3402, %v3690
  %v3692 = vpop.f32.mrb[0].mxu0
  %3693 = vmatprep.mubr.bf16.mxu0 0
  %3694 = vmatmul.mubr.bf16.gmra.mrb[0].mxu0 %v1658
  %v3695 = vpop.f32.mrb[0].mxu0
  %v3696 = vadd.f32 %v3407, %v3695
  %v3697 = vpop.f32.mrb[0].mxu0
  %v3698 = vpop.f32.mrb[0].mxu0
  %v3699 = vadd.f32 %v3410, %v3698
  %v3700 = vpop.f32.mrb[0].mxu0
  %3701 = vmatprep.mubr.bf16.mxu0 0
  %3702 = vmatmul.mubr.bf16.gmra.mrb[0].mxu0 %v1667
  %v3703 = vpop.f32.mrb[0].mxu0
  %v3704 = vadd.f32 %v3415, %v3703
  %v3705 = vpop.f32.mrb[0].mxu0
  %v3706 = vpop.f32.mrb[0].mxu0
  %v3707 = vadd.f32 %v3418, %v3706
  %v3708 = vpop.f32.mrb[0].mxu0
  %3709 = vmatprep.mubr.bf16.mxu0 0
  %3710 = vmatmul.mubr.bf16.gmra.mrb[0].mxu0 %v1676
  %v3711 = vpop.f32.mrb[0].mxu0
  %v3712 = vadd.f32 %v3423, %v3711
  %v3713 = vpop.f32.mrb[0].mxu0
  %v3714 = vpop.f32.mrb[0].mxu0
  %v3715 = vadd.f32 %v3426, %v3714
  %v3716 = vpop.f32.mrb[0].mxu0
  %3717 = vmatprep.mubr.bf16.mxu0 0
  %3718 = vmatmul.mubr.bf16.gmra.mrb[0].mxu0 %v1685
  %v3719 = vpop.f32.mrb[0].mxu0
  %v3720 = vadd.f32 %v3431, %v3719
  %v3721 = vpop.f32.mrb[0].mxu0
  %v3722 = vpop.f32.mrb[0].mxu0
  %v3723 = vadd.f32 %v3434, %v3722
  %v3724 = vpop.f32.mrb[0].mxu0
  %3725 = vmatprep.mubr.bf16.mxu0 0
  %3726 = vmatmul.mubr.bf16.gmra.mrb[0].mxu0 %v1694
  %v3727 = vpop.f32.mrb[0].mxu0
  %v3728 = vadd.f32 %v3439, %v3727
  %v3729 = vpop.f32.mrb[0].mxu0
  %v3730 = vpop.f32.mrb[0].mxu0
  %v3731 = vadd.f32 %v3442, %v3730
  %v3732 = vpop.f32.mrb[0].mxu0
  %3733 = vmatprep.mubr.bf16.mxu0 0
  %3734 = vmatmul.mubr.bf16.gmra.mrb[0].mxu0 %v1703
  %v3735 = vpop.f32.mrb[0].mxu0
  %v3736 = vadd.f32 %v3447, %v3735
  %v3737 = vpop.f32.mrb[0].mxu0
  %v3738 = vpop.f32.mrb[0].mxu0
  %v3739 = vadd.f32 %v3450, %v3738
  %v3740 = vpop.f32.mrb[0].mxu0
  %3741 = vmatprep.mubr.bf16.mxu0 0
  %3742 = vmatmul.mubr.bf16.gmra.mrb[0].mxu0 %v1712
  %v3743 = vpop.f32.mrb[0].mxu0
  %v3744 = vadd.f32 %v3455, %v3743
  %v3745 = vpop.f32.mrb[0].mxu0
  %v3746 = vpop.f32.mrb[0].mxu0
  %v3747 = vadd.f32 %v3458, %v3746
  %v3748 = vpop.f32.mrb[0].mxu0
  %3749 = vmatprep.mubr.bf16.mxu0 0
  %3750 = vmatmul.mubr.bf16.gmra.mrb[0].mxu0 %v1721
  %v3751 = vpop.f32.mrb[0].mxu0
  %v3752 = vadd.f32 %v3463, %v3751
  %v3753 = vpop.f32.mrb[0].mxu0
  %v3754 = vpop.f32.mrb[0].mxu0
  %v3755 = vadd.f32 %v3466, %v3754
  %v3756 = vpop.f32.mrb[0].mxu0
  %3757 = vmatprep.mubr.bf16.mxu0 0
  %3758 = vmatmul.mubr.bf16.gmra.mrb[0].mxu0 %v1730
  %v3759 = vpop.f32.mrb[0].mxu0
  %v3760 = vadd.f32 %v3471, %v3759
  %v3761 = vpop.f32.mrb[0].mxu0
  %v3762 = vpop.f32.mrb[0].mxu0
  %v3763 = vadd.f32 %v3474, %v3762
  %v3764 = vpop.f32.mrb[0].mxu0
  %3765 = vmatprep.mubr.bf16.mxu0 0
  %3766 = vmatmul.mubr.bf16.gmra.mrb[0].mxu0 %v1739
  %v3767 = vpop.f32.mrb[0].mxu0
  %v3768 = vadd.f32 %v3479, %v3767
  %v3769 = vpop.f32.mrb[0].mxu0
  %v3770 = vpop.f32.mrb[0].mxu0
  %v3771 = vadd.f32 %v3482, %v3770
  %v3772 = vpop.f32.mrb[0].mxu0
  %3773 = vmatprep.mubr.bf16.mxu0 0
  %3774 = vmatmul.mubr.bf16.gmra.mrb[0].mxu0 %v1748
  %v3775 = vpop.f32.mrb[0].mxu0
  %v3776 = vadd.f32 %v3487, %v3775
  %v3777 = vpop.f32.mrb[0].mxu0
  %v3778 = vpop.f32.mrb[0].mxu0
  %v3779 = vadd.f32 %v3490, %v3778
  %v3780 = vpop.f32.mrb[0].mxu0
  %3781 = vmatprep.mubr.bf16.mxu0 0
  %3782 = vmatmul.mubr.bf16.gmra.mrb[0].mxu0 %v1757
  %v3783 = vpop.f32.mrb[0].mxu0
  %v3784 = vadd.f32 %v3495, %v3783
  %v3785 = vpop.f32.mrb[0].mxu0
  %v3786 = vpop.f32.mrb[0].mxu0
  %v3787 = vadd.f32 %v3498, %v3786
  %v3788 = vpop.f32.mrb[0].mxu0
  %3789 = vmatprep.mubr.bf16.mxu0 0
  %3790 = vmatmul.mubr.bf16.gmra.mrb[0].mxu0 %v1766
  %v3791 = vpop.f32.mrb[0].mxu0
  %v3792 = vadd.f32 %v3503, %v3791
  %v3793 = vpop.f32.mrb[0].mxu0
  %v3794 = vpop.f32.mrb[0].mxu0
  %v3795 = vadd.f32 %v3506, %v3794
  %v3796 = vpop.f32.mrb[0].mxu0
  %3797 = vmatprep.mubr.bf16.mxu0 0
  %3798 = vmatmul.mubr.bf16.gmra.mrb[0].mxu0 %v1775
  %v3799 = vpop.f32.mrb[0].mxu0
  %v3800 = vadd.f32 %v3511, %v3799
  %v3801 = vpop.f32.mrb[0].mxu0
  %v3802 = vpop.f32.mrb[0].mxu0
  %v3803 = vadd.f32 %v3514, %v3802
  %v3804 = vpop.f32.mrb[0].mxu0
  %3805 = vmatprep.mubr.bf16.mxu0 0
  %3806 = vmatmul.mubr.bf16.gmra.mrb[0].mxu0 %v1784
  %v3807 = vpop.f32.mrb[0].mxu0
  %v3808 = vadd.f32 %v3519, %v3807
  %v3809 = vpop.f32.mrb[0].mxu0
  %v3810 = vpop.f32.mrb[0].mxu0
  %v3811 = vadd.f32 %v3522, %v3810
  %v3812 = vpop.f32.mrb[0].mxu0
  %3813 = vmatprep.mubr.bf16.mxu0 0
  %3814 = vmatmul.mubr.bf16.gmra.mrb[0].mxu0 %v1793
  %v3815 = vpop.f32.mrb[0].mxu0
  %v3816 = vadd.f32 %v3527, %v3815
  %v3817 = vpop.f32.mrb[0].mxu0
  %v3818 = vpop.f32.mrb[0].mxu0
  %v3819 = vadd.f32 %v3530, %v3818
  %v3820 = vpop.f32.mrb[0].mxu0
  %3821 = vmatprep.mubr.bf16.mxu0 0
  %3822 = vmatmul.mubr.bf16.gmra.mrb[0].mxu0 %v1802
  %v3823 = vpop.f32.mrb[0].mxu0
  %v3824 = vadd.f32 %v3535, %v3823
  %v3825 = vpop.f32.mrb[0].mxu0
  %v3826 = vpop.f32.mrb[0].mxu0
  %v3827 = vadd.f32 %v3538, %v3826
  %v3828 = vpop.f32.mrb[0].mxu0
  %3829 = vmatprep.mubr.bf16.mxu0 0
  %3830 = vmatmul.mubr.bf16.gmra.mrb[0].mxu0 %v1811
  %v3831 = vpop.f32.mrb[0].mxu0
  %v3832 = vadd.f32 %v3543, %v3831
  %v3833 = vpop.f32.mrb[0].mxu0
  %v3834 = vpop.f32.mrb[0].mxu0
  %v3835 = vadd.f32 %v3546, %v3834
  %v3836 = vpop.f32.mrb[0].mxu0
  %3837 = vmatprep.mubr.bf16.mxu0 0
  %3838 = vmatmul.mubr.bf16.gmra.mrb[0].mxu0 %v1820
  %v3839 = vpop.f32.mrb[0].mxu0
  %v3840 = vadd.f32 %v3551, %v3839
  %v3841 = vpop.f32.mrb[0].mxu0
  %v3842 = vpop.f32.mrb[0].mxu0
  %v3843 = vadd.f32 %v3554, %v3842
  %v3844 = vpop.f32.mrb[0].mxu0
  %3845 = vmatprep.mubr.bf16.mxu0 0
  %3846 = vmatmul.mubr.bf16.gmra.mrb[0].mxu0 %v1829
  %v3847 = vpop.f32.mrb[0].mxu0
  %v3848 = vadd.f32 %v3559, %v3847
  %v3849 = vpop.f32.mrb[0].mxu0
  %v3850 = vpop.f32.mrb[0].mxu0
  %v3851 = vadd.f32 %v3562, %v3850
  %v3852 = vpop.f32.mrb[0].mxu0
  %3853 = vmatprep.mubr.bf16.mxu0 0
  %3854 = vmatmul.mubr.bf16.gmra.mrb[0].mxu0 %v1838
  %v3855 = vpop.f32.mrb[0].mxu0
  %v3856 = vadd.f32 %v3567, %v3855
  %v3857 = vpop.f32.mrb[0].mxu0
  %v3858 = vpop.f32.mrb[0].mxu0
  %v3859 = vadd.f32 %v3570, %v3858
  %v3860 = vpop.f32.mrb[0].mxu0
  %3861 = vmatprep.mubr.bf16.mxu0 0
  %3862 = vmatmul.mubr.bf16.gmra.mrb[0].mxu0 %v1847
  %v3863 = vpop.f32.mrb[0].mxu0
  %v3864 = vadd.f32 %v3575, %v3863
  %v3865 = vpop.f32.mrb[0].mxu0
  %v3866 = vpop.f32.mrb[0].mxu0
  %v3867 = vadd.f32 %v3578, %v3866
  %v3868 = vpop.f32.mrb[0].mxu0
  %3869 = vmatprep.mubr.bf16.mxu0 0
  %3870 = vmatmul.mubr.bf16.gmra.mrb[0].mxu0 %v1856
  %v3871 = vpop.f32.mrb[0].mxu0
  %v3872 = vadd.f32 %v3583, %v3871
  %v3873 = vpop.f32.mrb[0].mxu0
  %v3874 = vpop.f32.mrb[0].mxu0
  %v3875 = vadd.f32 %v3586, %v3874
  %v3876 = vpop.f32.mrb[0].mxu0
  %3877 = vdwg.mxu0
  %v3878 = vadd.f32 %v1505, %v3624
  %v3879 = vadd.f32 %v1506, %v3627
  %v3880 = vadd.f32 %v1507, %v3632
  %v3881 = vadd.f32 %v1508, %v3635
  %v3882 = vadd.f32 %v1509, %v3640
  %v3883 = vadd.f32 %v1510, %v3643
  %v3884 = vadd.f32 %v1511, %v3648
  %v3885 = vadd.f32 %v1512, %v3651
  %v3886 = vadd.f32 %v1513, %v3656
  %v3887 = vadd.f32 %v1514, %v3659
  %v3888 = vadd.f32 %v1515, %v3664
  %v3889 = vadd.f32 %v1516, %v3667
  %v3890 = vadd.f32 %v1517, %v3672
  %v3891 = vadd.f32 %v1518, %v3675
  %v3892 = vadd.f32 %v1519, %v3680
  %v3893 = vadd.f32 %v1520, %v3683
  %v3894 = vadd.f32 %v1521, %v3688
  %v3895 = vadd.f32 %v1522, %v3691
  %v3896 = vadd.f32 %v1523, %v3696
  %v3897 = vadd.f32 %v1524, %v3699
  %v3898 = vadd.f32 %v1525, %v3704
  %v3899 = vadd.f32 %v1526, %v3707
  %v3900 = vadd.f32 %v1527, %v3712
  %v3901 = vadd.f32 %v1528, %v3715
  %v3902 = vadd.f32 %v1529, %v3720
  %v3903 = vadd.f32 %v1530, %v3723
  %v3904 = vadd.f32 %v1531, %v3728
  %v3905 = vadd.f32 %v1532, %v3731
  %v3906 = vadd.f32 %v1533, %v3736
  %v3907 = vadd.f32 %v1534, %v3739
  %v3908 = vadd.f32 %v1535, %v3744
  %v3909 = vadd.f32 %v1536, %v3747
  %v3910 = vadd.f32 %v1537, %v3752
  %v3911 = vadd.f32 %v1538, %v3755
  %v3912 = vadd.f32 %v1539, %v3760
  %v3913 = vadd.f32 %v1540, %v3763
  %v3914 = vadd.f32 %v1541, %v3768
  %v3915 = vadd.f32 %v1542, %v3771
  %v3916 = vadd.f32 %v1543, %v3776
  %v3917 = vadd.f32 %v1544, %v3779
  %v3918 = vadd.f32 %v1545, %v3784
  %v3919 = vadd.f32 %v1546, %v3787
  %v3920 = vadd.f32 %v1547, %v3792
  %v3921 = vadd.f32 %v1548, %v3795
  %v3922 = vadd.f32 %v1549, %v3800
  %v3923 = vadd.f32 %v1550, %v3803
  %v3924 = vadd.f32 %v1551, %v3808
  %v3925 = vadd.f32 %v1552, %v3811
  %v3926 = vadd.f32 %v1553, %v3816
  %v3927 = vadd.f32 %v1554, %v3819
  %v3928 = vadd.f32 %v1555, %v3824
  %v3929 = vadd.f32 %v1556, %v3827
  %v3930 = vadd.f32 %v1557, %v3832
  %v3931 = vadd.f32 %v1558, %v3835
  %v3932 = vadd.f32 %v1559, %v3840
  %v3933 = vadd.f32 %v1560, %v3843
  %v3934 = vadd.f32 %v1561, %v3848
  %v3935 = vadd.f32 %v1562, %v3851
  %v3936 = vadd.f32 %v1563, %v3856
  %v3937 = vadd.f32 %v1564, %v3859
  %v3938 = vadd.f32 %v1565, %v3864
  %v3939 = vadd.f32 %v1566, %v3867
  %v3940 = vadd.f32 %v1567, %v3872
  %v3941 = vadd.f32 %v1568, %v3875
  %3942 = vst [vmem:[#allocation2] sm:$0xff] %v3878
  %3943 = vst [vmem:[#allocation2 + $0x8] sm:$0xff] %v3879
  %3944 = vst [vmem:[#allocation2 + $0x10] sm:$0xff] %v3880
  %3945 = vst [vmem:[#allocation2 + $0x18] sm:$0xff] %v3881
  %3946 = vst [vmem:[#allocation2 + $0x20] sm:$0xff] %v3882
  %3947 = vst [vmem:[#allocation2 + $0x28] sm:$0xff] %v3883
  %3948 = vst [vmem:[#allocation2 + $0x30] sm:$0xff] %v3884
  %3949 = vst [vmem:[#allocation2 + $0x38] sm:$0xff] %v3885
  %3950 = vst [vmem:[#allocation2 + $0x40] sm:$0xff] %v3886
  %3951 = vst [vmem:[#allocation2 + $0x48] sm:$0xff] %v3887
  %3952 = vst [vmem:[#allocation2 + $0x50] sm:$0xff] %v3888
  %3953 = vst [vmem:[#allocation2 + $0x58] sm:$0xff] %v3889
  %3954 = vst [vmem:[#allocation2 + $0x60] sm:$0xff] %v3890
  %3955 = vst [vmem:[#allocation2 + $0x68] sm:$0xff] %v3891
  %3956 = vst [vmem:[#allocation2 + $0x70] sm:$0xff] %v3892
  %3957 = vst [vmem:[#allocation2 + $0x78] sm:$0xff] %v3893
  %3958 = vst [vmem:[#allocation2 + $0x80] sm:$0xff] %v3894
  %3959 = vst [vmem:[#allocation2 + $0x88] sm:$0xff] %v3895
  %3960 = vst [vmem:[#allocation2 + $0x90] sm:$0xff] %v3896
  %3961 = vst [vmem:[#allocation2 + $0x98] sm:$0xff] %v3897
  %3962 = vst [vmem:[#allocation2 + $0xa0] sm:$0xff] %v3898
  %3963 = vst [vmem:[#allocation2 + $0xa8] sm:$0xff] %v3899
  %3964 = vst [vmem:[#allocation2 + $0xb0] sm:$0xff] %v3900
  %3965 = vst [vmem:[#allocation2 + $0xb8] sm:$0xff] %v3901
  %3966 = vst [vmem:[#allocation2 + $0xc0] sm:$0xff] %v3902
  %3967 = vst [vmem:[#allocation2 + $0xc8] sm:$0xff] %v3903
  %3968 = vst [vmem:[#allocation2 + $0xd0] sm:$0xff] %v3904
  %3969 = vst [vmem:[#allocation2 + $0xd8] sm:$0xff] %v3905
  %3970 = vst [vmem:[#allocation2 + $0xe0] sm:$0xff] %v3906
  %3971 = vst [vmem:[#allocation2 + $0xe8] sm:$0xff] %v3907
  %3972 = vst [vmem:[#allocation2 + $0xf0] sm:$0xff] %v3908
  %3973 = vst [vmem:[#allocation2 + $0xf8] sm:$0xff] %v3909
  %3974 = vst [vmem:[#allocation2 + $0x100] sm:$0xff] %v3910
  %3975 = vst [vmem:[#allocation2 + $0x108] sm:$0xff] %v3911
  %3976 = vst [vmem:[#allocation2 + $0x110] sm:$0xff] %v3912
  %3977 = vst [vmem:[#allocation2 + $0x118] sm:$0xff] %v3913
  %3978 = vst [vmem:[#allocation2 + $0x120] sm:$0xff] %v3914
  %3979 = vst [vmem:[#allocation2 + $0x128] sm:$0xff] %v3915
  %3980 = vst [vmem:[#allocation2 + $0x130] sm:$0xff] %v3916
  %3981 = vst [vmem:[#allocation2 + $0x138] sm:$0xff] %v3917
  %3982 = vst [vmem:[#allocation2 + $0x140] sm:$0xff] %v3918
  %3983 = vst [vmem:[#allocation2 + $0x148] sm:$0xff] %v3919
  %3984 = vst [vmem:[#allocation2 + $0x150] sm:$0xff] %v3920
  %3985 = vst [vmem:[#allocation2 + $0x158] sm:$0xff] %v3921
  %3986 = vst [vmem:[#allocation2 + $0x160] sm:$0xff] %v3922
  %3987 = vst [vmem:[#allocation2 + $0x168] sm:$0xff] %v3923
  %3988 = vst [vmem:[#allocation2 + $0x170] sm:$0xff] %v3924
  %3989 = vst [vmem:[#allocation2 + $0x178] sm:$0xff] %v3925
  %3990 = vst [vmem:[#allocation2 + $0x180] sm:$0xff] %v3926
  %3991 = vst [vmem:[#allocation2 + $0x188] sm:$0xff] %v3927
  %3992 = vst [vmem:[#allocation2 + $0x190] sm:$0xff] %v3928
  %3993 = vst [vmem:[#allocation2 + $0x198] sm:$0xff] %v3929
  %3994 = vst [vmem:[#allocation2 + $0x1a0] sm:$0xff] %v3930
  %3995 = vst [vmem:[#allocation2 + $0x1a8] sm:$0xff] %v3931
  %3996 = vst [vmem:[#allocation2 + $0x1b0] sm:$0xff] %v3932
  %3997 = vst [vmem:[#allocation2 + $0x1b8] sm:$0xff] %v3933
  %3998 = vst [vmem:[#allocation2 + $0x1c0] sm:$0xff] %v3934
  %3999 = vst [vmem:[#allocation2 + $0x1c8] sm:$0xff] %v3935
  %4000 = vst [vmem:[#allocation2 + $0x1d0] sm:$0xff] %v3936
  %4001 = vst [vmem:[#allocation2 + $0x1d8] sm:$0xff] %v3937
  %4002 = vst [vmem:[#allocation2 + $0x1e0] sm:$0xff] %v3938
  %4003 = vst [vmem:[#allocation2 + $0x1e8] sm:$0xff] %v3939
  %4004 = vst [vmem:[#allocation2 + $0x1f0] sm:$0xff] %v3940
  %4005 = vst [vmem:[#allocation2 + $0x1f8] sm:$0xff] %v3941
  // Predicated region
  $region22: #{_conv3x3_s1.1} parent=0 // pred_check
    %p4006 = pneg %p45
  $region23: #{_conv3x3_s1.1} parent=0 // pred_check_branch
    %4008 = sbr.rel (%p4006) target = $region25
  $region24: #{_conv3x3_s1.1} parent=0 // pred_region
    %v4009 = vld [vmem:[#allocation2] sm:$0xff]
    %v4010 = vld [vmem:[#allocation2 + $0x8] sm:$0xff]
    %v4011 = vld [vmem:[#allocation2 + $0x10] sm:$0xff]
    %v4012 = vld [vmem:[#allocation2 + $0x18] sm:$0xff]
    %v4013 = vld [vmem:[#allocation2 + $0x20] sm:$0xff]
    %v4014 = vld [vmem:[#allocation2 + $0x28] sm:$0xff]
    %v4015 = vld [vmem:[#allocation2 + $0x30] sm:$0xff]
    %v4016 = vld [vmem:[#allocation2 + $0x38] sm:$0xff]
    %v4017 = vld [vmem:[#allocation2 + $0x40] sm:$0xff]
    %v4018 = vld [vmem:[#allocation2 + $0x48] sm:$0xff]
    %v4019 = vld [vmem:[#allocation2 + $0x50] sm:$0xff]
    %v4020 = vld [vmem:[#allocation2 + $0x58] sm:$0xff]
    %v4021 = vld [vmem:[#allocation2 + $0x60] sm:$0xff]
    %v4022 = vld [vmem:[#allocation2 + $0x68] sm:$0xff]
    %v4023 = vld [vmem:[#allocation2 + $0x70] sm:$0xff]
    %v4024 = vld [vmem:[#allocation2 + $0x78] sm:$0xff]
    %v4025 = vld [vmem:[#allocation2 + $0x80] sm:$0xff]
    %v4026 = vld [vmem:[#allocation2 + $0x88] sm:$0xff]
    %v4027 = vld [vmem:[#allocation2 + $0x90] sm:$0xff]
    %v4028 = vld [vmem:[#allocation2 + $0x98] sm:$0xff]
    %v4029 = vld [vmem:[#allocation2 + $0xa0] sm:$0xff]
    %v4030 = vld [vmem:[#allocation2 + $0xa8] sm:$0xff]
    %v4031 = vld [vmem:[#allocation2 + $0xb0] sm:$0xff]
    %v4032 = vld [vmem:[#allocation2 + $0xb8] sm:$0xff]
    %v4033 = vld [vmem:[#allocation2 + $0xc0] sm:$0xff]
    %v4034 = vld [vmem:[#allocation2 + $0xc8] sm:$0xff]
    %v4035 = vld [vmem:[#allocation2 + $0xd0] sm:$0xff]
    %v4036 = vld [vmem:[#allocation2 + $0xd8] sm:$0xff]
    %v4037 = vld [vmem:[#allocation2 + $0xe0] sm:$0xff]
    %v4038 = vld [vmem:[#allocation2 + $0xe8] sm:$0xff]
    %v4039 = vld [vmem:[#allocation2 + $0xf0] sm:$0xff]
    %v4040 = vld [vmem:[#allocation2 + $0xf8] sm:$0xff]
    %v4041 = vld [vmem:[#allocation2 + $0x100] sm:$0xff]
    %v4042 = vld [vmem:[#allocation2 + $0x108] sm:$0xff]
    %v4043 = vld [vmem:[#allocation2 + $0x110] sm:$0xff]
    %v4044 = vld [vmem:[#allocation2 + $0x118] sm:$0xff]
    %v4045 = vld [vmem:[#allocation2 + $0x120] sm:$0xff]
    %v4046 = vld [vmem:[#allocation2 + $0x128] sm:$0xff]
    %v4047 = vld [vmem:[#allocation2 + $0x130] sm:$0xff]
    %v4048 = vld [vmem:[#allocation2 + $0x138] sm:$0xff]
    %v4049 = vld [vmem:[#allocation2 + $0x140] sm:$0xff]
    %v4050 = vld [vmem:[#allocation2 + $0x148] sm:$0xff]
    %v4051 = vld [vmem:[#allocation2 + $0x150] sm:$0xff]
    %v4052 = vld [vmem:[#allocation2 + $0x158] sm:$0xff]
    %v4053 = vld [vmem:[#allocation2 + $0x160] sm:$0xff]
    %v4054 = vld [vmem:[#allocation2 + $0x168] sm:$0xff]
    %v4055 = vld [vmem:[#allocation2 + $0x170] sm:$0xff]
    %v4056 = vld [vmem:[#allocation2 + $0x178] sm:$0xff]
    %v4057 = vld [vmem:[#allocation2 + $0x180] sm:$0xff]
    %v4058 = vld [vmem:[#allocation2 + $0x188] sm:$0xff]
    %v4059 = vld [vmem:[#allocation2 + $0x190] sm:$0xff]
    %v4060 = vld [vmem:[#allocation2 + $0x198] sm:$0xff]
    %v4061 = vld [vmem:[#allocation2 + $0x1a0] sm:$0xff]
    %v4062 = vld [vmem:[#allocation2 + $0x1a8] sm:$0xff]
    %v4063 = vld [vmem:[#allocation2 + $0x1b0] sm:$0xff]
    %v4064 = vld [vmem:[#allocation2 + $0x1b8] sm:$0xff]
    %v4065 = vld [vmem:[#allocation2 + $0x1c0] sm:$0xff]
    %v4066 = vld [vmem:[#allocation2 + $0x1c8] sm:$0xff]
    %v4067 = vld [vmem:[#allocation2 + $0x1d0] sm:$0xff]
    %v4068 = vld [vmem:[#allocation2 + $0x1d8] sm:$0xff]
    %v4069 = vld [vmem:[#allocation2 + $0x1e0] sm:$0xff]
    %v4070 = vld [vmem:[#allocation2 + $0x1e8] sm:$0xff]
    %v4071 = vld [vmem:[#allocation2 + $0x1f0] sm:$0xff]
    %v4072 = vld [vmem:[#allocation2 + $0x1f8] sm:$0xff]
    %v4073 = vld [vmem:[%s3] sm:$0x1]
    %v4075 = vlaneseq
    %v4076 = vshrl.u32 %v4075, 7
    %v4077 = vsub.s32 0, %v4076
    %v4078 = vrot.slane %v4073, %v4077
    %v4080 = vadd.f32 %v4009, %v4078
    %v4081 = vadd.f32 %v4010, %v4078
    %v4082 = vadd.f32 %v4011, %v4078
    %v4083 = vadd.f32 %v4012, %v4078
    %v4084 = vadd.f32 %v4013, %v4078
    %v4085 = vadd.f32 %v4014, %v4078
    %v4086 = vadd.f32 %v4015, %v4078
    %v4087 = vadd.f32 %v4016, %v4078
    %v4088 = vadd.f32 %v4017, %v4078
    %v4089 = vadd.f32 %v4018, %v4078
    %v4090 = vadd.f32 %v4019, %v4078
    %v4091 = vadd.f32 %v4020, %v4078
    %v4092 = vadd.f32 %v4021, %v4078
    %v4093 = vadd.f32 %v4022, %v4078
    %v4094 = vadd.f32 %v4023, %v4078
    %v4095 = vadd.f32 %v4024, %v4078
    %v4096 = vadd.f32 %v4025, %v4078
    %v4097 = vadd.f32 %v4026, %v4078
    %v4098 = vadd.f32 %v4027, %v4078
    %v4099 = vadd.f32 %v4028, %v4078
    %v4100 = vadd.f32 %v4029, %v4078
    %v4101 = vadd.f32 %v4030, %v4078
    %v4102 = vadd.f32 %v4031, %v4078
    %v4103 = vadd.f32 %v4032, %v4078
    %v4104 = vadd.f32 %v4033, %v4078
    %v4105 = vadd.f32 %v4034, %v4078
    %v4106 = vadd.f32 %v4035, %v4078
    %v4107 = vadd.f32 %v4036, %v4078
    %v4108 = vadd.f32 %v4037, %v4078
    %v4109 = vadd.f32 %v4038, %v4078
    %v4110 = vadd.f32 %v4039, %v4078
    %v4111 = vadd.f32 %v4040, %v4078
    %v4112 = vadd.f32 %v4041, %v4078
    %v4113 = vadd.f32 %v4042, %v4078
    %v4114 = vadd.f32 %v4043, %v4078
    %v4115 = vadd.f32 %v4044, %v4078
    %v4116 = vadd.f32 %v4045, %v4078
    %v4117 = vadd.f32 %v4046, %v4078
    %v4118 = vadd.f32 %v4047, %v4078
    %v4119 = vadd.f32 %v4048, %v4078
    %v4120 = vadd.f32 %v4049, %v4078
    %v4121 = vadd.f32 %v4050, %v4078
    %v4122 = vadd.f32 %v4051, %v4078
    %v4123 = vadd.f32 %v4052, %v4078
    %v4124 = vadd.f32 %v4053, %v4078
    %v4125 = vadd.f32 %v4054, %v4078
    %v4126 = vadd.f32 %v4055, %v4078
    %v4127 = vadd.f32 %v4056, %v4078
    %v4128 = vadd.f32 %v4057, %v4078
    %v4129 = vadd.f32 %v4058, %v4078
    %v4130 = vadd.f32 %v4059, %v4078
    %v4131 = vadd.f32 %v4060, %v4078
    %v4132 = vadd.f32 %v4061, %v4078
    %v4133 = vadd.f32 %v4062, %v4078
    %v4134 = vadd.f32 %v4063, %v4078
    %v4135 = vadd.f32 %v4064, %v4078
    %v4136 = vadd.f32 %v4065, %v4078
    %v4137 = vadd.f32 %v4066, %v4078
    %v4138 = vadd.f32 %v4067, %v4078
    %v4139 = vadd.f32 %v4068, %v4078
    %v4140 = vadd.f32 %v4069, %v4078
    %v4141 = vadd.f32 %v4070, %v4078
    %v4142 = vadd.f32 %v4071, %v4078
    %v4143 = vadd.f32 %v4072, %v4078
    %4144 = vst [vmem:[%s4] sm:$0xff] %v4080
    %4145 = vst [vmem:[%s4 + $0x8] sm:$0xff] %v4081
    %4146 = vst [vmem:[%s4 + $0x10] sm:$0xff] %v4082
    %4147 = vst [vmem:[%s4 + $0x18] sm:$0xff] %v4083
    %4148 = vst [vmem:[%s4 + $0x20] sm:$0xff] %v4084
    %4149 = vst [vmem:[%s4 + $0x28] sm:$0xff] %v4085
    %4150 = vst [vmem:[%s4 + $0x30] sm:$0xff] %v4086
    %4151 = vst [vmem:[%s4 + $0x38] sm:$0xff] %v4087
    %4152 = vst [vmem:[%s4 + $0x40] sm:$0xff] %v4088
    %4153 = vst [vmem:[%s4 + $0x48] sm:$0xff] %v4089
    %4154 = vst [vmem:[%s4 + $0x50] sm:$0xff] %v4090
    %4155 = vst [vmem:[%s4 + $0x58] sm:$0xff] %v4091
    %4156 = vst [vmem:[%s4 + $0x60] sm:$0xff] %v4092
    %4157 = vst [vmem:[%s4 + $0x68] sm:$0xff] %v4093
    %4158 = vst [vmem:[%s4 + $0x70] sm:$0xff] %v4094
    %4159 = vst [vmem:[%s4 + $0x78] sm:$0xff] %v4095
    %4160 = vst [vmem:[%s4 + $0x80] sm:$0xff] %v4096
    %4161 = vst [vmem:[%s4 + $0x88] sm:$0xff] %v4097
    %4162 = vst [vmem:[%s4 + $0x90] sm:$0xff] %v4098
    %4163 = vst [vmem:[%s4 + $0x98] sm:$0xff] %v4099
    %4164 = vst [vmem:[%s4 + $0xa0] sm:$0xff] %v4100
    %4165 = vst [vmem:[%s4 + $0xa8] sm:$0xff] %v4101
    %4166 = vst [vmem:[%s4 + $0xb0] sm:$0xff] %v4102
    %4167 = vst [vmem:[%s4 + $0xb8] sm:$0xff] %v4103
    %4168 = vst [vmem:[%s4 + $0xc0] sm:$0xff] %v4104
    %4169 = vst [vmem:[%s4 + $0xc8] sm:$0xff] %v4105
    %4170 = vst [vmem:[%s4 + $0xd0] sm:$0xff] %v4106
    %4171 = vst [vmem:[%s4 + $0xd8] sm:$0xff] %v4107
    %4172 = vst [vmem:[%s4 + $0xe0] sm:$0xff] %v4108
    %4173 = vst [vmem:[%s4 + $0xe8] sm:$0xff] %v4109
    %4174 = vst [vmem:[%s4 + $0xf0] sm:$0xff] %v4110
    %4175 = vst [vmem:[%s4 + $0xf8] sm:$0xff] %v4111
    %4176 = vst [vmem:[%s4 + $0x100] sm:$0xff] %v4112
    %4177 = vst [vmem:[%s4 + $0x108] sm:$0xff] %v4113
    %4178 = vst [vmem:[%s4 + $0x110] sm:$0xff] %v4114
    %4179 = vst [vmem:[%s4 + $0x118] sm:$0xff] %v4115
    %4180 = vst [vmem:[%s4 + $0x120] sm:$0xff] %v4116
    %4181 = vst [vmem:[%s4 + $0x128] sm:$0xff] %v4117
    %4182 = vst [vmem:[%s4 + $0x130] sm:$0xff] %v4118
    %4183 = vst [vmem:[%s4 + $0x138] sm:$0xff] %v4119
    %4184 = vst [vmem:[%s4 + $0x140] sm:$0xff] %v4120
    %4185 = vst [vmem:[%s4 + $0x148] sm:$0xff] %v4121
    %4186 = vst [vmem:[%s4 + $0x150] sm:$0xff] %v4122
    %4187 = vst [vmem:[%s4 + $0x158] sm:$0xff] %v4123
    %4188 = vst [vmem:[%s4 + $0x160] sm:$0xff] %v4124
    %4189 = vst [vmem:[%s4 + $0x168] sm:$0xff] %v4125
    %4190 = vst [vmem:[%s4 + $0x170] sm:$0xff] %v4126
    %4191 = vst [vmem:[%s4 + $0x178] sm:$0xff] %v4127
    %4192 = vst [vmem:[%s4 + $0x180] sm:$0xff] %v4128
    %4193 = vst [vmem:[%s4 + $0x188] sm:$0xff] %v4129
    %4194 = vst [vmem:[%s4 + $0x190] sm:$0xff] %v4130
    %4195 = vst [vmem:[%s4 + $0x198] sm:$0xff] %v4131
    %4196 = vst [vmem:[%s4 + $0x1a0] sm:$0xff] %v4132
    %4197 = vst [vmem:[%s4 + $0x1a8] sm:$0xff] %v4133
    %4198 = vst [vmem:[%s4 + $0x1b0] sm:$0xff] %v4134
    %4199 = vst [vmem:[%s4 + $0x1b8] sm:$0xff] %v4135
    %4200 = vst [vmem:[%s4 + $0x1c0] sm:$0xff] %v4136
    %4201 = vst [vmem:[%s4 + $0x1c8] sm:$0xff] %v4137
    %4202 = vst [vmem:[%s4 + $0x1d0] sm:$0xff] %v4138
    %4203 = vst [vmem:[%s4 + $0x1d8] sm:$0xff] %v4139
    %4204 = vst [vmem:[%s4 + $0x1e0] sm:$0xff] %v4140
    %4205 = vst [vmem:[%s4 + $0x1e8] sm:$0xff] %v4141
    %4206 = vst [vmem:[%s4 + $0x1f0] sm:$0xff] %v4142
    %4207 = vst [vmem:[%s4 + $0x1f8] sm:$0xff] %v4143
  $region25: #{_conv3x3_s1.1} parent=0 // pred_fallthru
    _
  // Predicated region
  $region26: #{_conv3x3_s1.1} parent=0 // pred_check
    _
  $region27: #{_conv3x3_s1.1} parent=0 // pred_check_branch
    %4209 = sbr.rel (0) target = $region29
  $region28: #{_conv3x3_s1.1} parent=0 // pred_region
    _
  $region29: #{_conv3x3_s1.1} parent=0 // pred_fallthru
    _
  // Predicated region
  $region30: #{_conv3x3_s1.1} parent=0 // pred_check
    _
  $region31: #{_conv3x3_s1.1} parent=0 // pred_check_branch
    %4211 = sbr.rel (0) target = $region33
  $region32: #{_conv3x3_s1.1} parent=0 // pred_region
    _
  $region33: #{_conv3x3_s1.1} parent=0 // pred_fallthru
    _

</llo_original>
